<compile_context>
chip_gen: v7x
topology: tpu7x:2x2x1
jax: 0.10.0
libtpu: 0.0.40
codegen_flags: <defaults>
</compile_context>

<pallas_src>
import functools

import jax
import jax.numpy as jnp
from jax import lax
from jax.experimental import pallas as pl
from jax.experimental.pallas import tpu as pltpu

BN_EPS = 1e-5


# ---------------- fused Pallas kernel ----------------

def rrcnn_kernel(x_ref, w1_ref, b1_ref, wrb_ref, brb_ref, o_ref, pad_ref, col_ref,
                 *, H, W):
    """Fused RRCNN forward for one block of B images.

    x_ref:   (B, Cin, HW)        bf16 input images, channel-major per image
    w1_ref:  (Cout, Cin)         bf16 Conv_1x1 weight
    b1_ref:  (Cout, 1)           f32  Conv_1x1 bias
    wrb_ref: (2, Cout, 9*Cout)   bf16 BN-folded 3x3 weights (two Recurrent_blocks)
    brb_ref: (2, Cout, 1)        f32  BN-folded biases
    o_ref:   (B, Cout, HW)       output (input dtype)
    pad_ref: (Cout, B*S)         f32  zero-bordered staging for the +-W row taps
    col_ref: (9*Cout, B*HW)      f32  im2col matrix, written tap-by-tap
    """
    B, _, HW = x_ref.shape
    Cout = o_ref.shape[1]
    assert H * W == HW
    # Per-image staging region: [pad_side | HW interior | pad_side]; pad_side is
    # rounded to 128 lanes so every interior starts lane-aligned when HW is a
    # multiple of 128 (16x16 images -> HW=256: unmasked staging stores).
    pad_side = ((W + 127) // 128) * 128
    S = HW + 2 * pad_side

    # Lane masks for the W border, computed once per grid step and reused by all
    # 6 convs x B images (the zero border handles the H border).
    xcol = lax.broadcasted_iota(jnp.int32, (1, HW), 1) % W
    mask_l = (xcol > 0).astype(jnp.float32)       # valid lanes for dx == 0 taps
    mask_r = (xcol < W - 1).astype(jnp.float32)   # valid lanes for dx == 2 taps

    # Zero only the W-lane borders actually read by the +-W shifts; the interior
    # is rewritten by every conv, so no full-buffer zero is needed.
    zb = jnp.zeros((Cout, W), jnp.float32)
    for b in range(B):
        interior = b * S + pad_side
        pad_ref[:, interior - W:interior] = zb
        pad_ref[:, interior + HW:interior + HW + W] = zb

    def conv3x3_bn_relu(a, w_t, b_f):
        # a: (Cout, B*HW) f32 conv input; w_t: (Cout, 9*Cout) bf16 folded weight;
        # b_f: (Cout, 1) f32 folded bias.
        for b in range(B):
            a_b = a[:, b * HW:(b + 1) * HW]
            interior = b * S + pad_side
            # Stage this image inside its zero border (needed for the dy shifts).
            pad_ref[:, interior:interior + HW] = a_b
            for dy in range(3):
                if dy == 1:
                    slab = a_b                                   # center row: no halo
                else:
                    off = (dy - 1) * W
                    slab = pad_ref[:, interior + off:interior + off + HW]
                t = 3 * dy
                # dx = -1 / 0 / +1 taps: XLU rolls of the already-loaded slab
                # (single wrapped lane is killed by the mask), stored straight
                # into the col scratch at tile-aligned (8-row, 128-lane) offsets.
                col_ref[(t + 0) * Cout:(t + 1) * Cout, b * HW:(b + 1) * HW] = (
                    pltpu.roll(slab, shift=1, axis=1) * mask_l)
                col_ref[(t + 1) * Cout:(t + 2) * Cout, b * HW:(b + 1) * HW] = slab
                col_ref[(t + 2) * Cout:(t + 3) * Cout, b * HW:(b + 1) * HW] = (
                    pltpu.roll(slab, shift=HW - 1, axis=1) * mask_r)
        # One MXU dot over all 9 taps and all B images (K = 9*Cout, N = B*HW),
        # bf16 operands / f32 accumulation; bias(+BN) + ReLU on the VPU in f32.
        y = jnp.dot(w_t, col_ref[...].astype(jnp.bfloat16),
                    preferred_element_type=jnp.float32)
        return jnp.maximum(y + b_f, 0.0)

    # Conv_1x1: one bf16 dot over the whole image block.
    xin = jnp.concatenate([x_ref[b] for b in range(B)], axis=-1)   # (Cin, B*HW)
    x0 = jnp.dot(w1_ref[...], xin, preferred_element_type=jnp.float32) + b1_ref[...]

    # RCNN = two Recurrent_blocks, each: x1 = conv(h); x1 = conv(h+x1); x1 = conv(h+x1)
    h = x0
    for rb in range(2):
        w_t = wrb_ref[rb]          # (Cout, 9*Cout) bf16
        b_f = brb_ref[rb]          # (Cout, 1) f32
        x1 = conv3x3_bn_relu(h, w_t, b_f)
        x1 = conv3x3_bn_relu(h + x1, w_t, b_f)
        x1 = conv3x3_bn_relu(h + x1, w_t, b_f)
        h = x1

    # Final residual, written back per image as lane-dense (Cout, HW) slabs.
    y = x0 + h
    for b in range(B):
        o_ref[b] = y[:, b * HW:(b + 1) * HW].astype(o_ref.dtype)


# ---------------- wrapper ----------------

def _pick_batch_block(n, max_b=8):
    """Largest divisor of n that is <= max_b while keeping the grid >= 2 steps
    (so both v7x TensorCores get work under "parallel" semantics)."""
    best = 1
    for b in range(1, min(max_b, n) + 1):
        if n % b == 0 and (n // b >= 2 or n == 1):
            best = b
    return best


def rrcnn_block(x_nchw, params, *, max_images_per_step=8):
    N, Cin, H, W = x_nchw.shape
    Cout = params["w1x1"].shape[0]
    HW = H * W

    # One-time static parameter folding: BN (eval mode) -> conv weight/bias, done
    # in f32 then cast to bf16 for the MXU; biases stay f32 for the VPU epilogue.
    w1 = params["w1x1"].astype(jnp.bfloat16)                     # (Cout, Cin)
    b1 = params["b1x1"].reshape(Cout, 1).astype(jnp.float32)     # (Cout, 1)
    wrb_list, brb_list = [], []
    for name in ("rb1", "rb2"):
        p = params[name]
        scale = p["gamma"] / jnp.sqrt(p["var"] + BN_EPS)                 # (Cout,)
        w_f = p["w"] * scale[:, None, None, None]                        # (Cout,Cout,3,3)
        b_f = (p["b"] - p["mean"]) * scale + p["beta"]                   # (Cout,)
        w_t = jnp.transpose(w_f, (0, 2, 3, 1)).reshape(Cout, 9 * Cout)   # (co, dy,dx,ci)
        wrb_list.append(w_t)
        brb_list.append(b_f.reshape(Cout, 1))
    wrb = jnp.stack(wrb_list).astype(jnp.bfloat16)   # (2, Cout, 9*Cout)
    brb = jnp.stack(brb_list).astype(jnp.float32)    # (2, Cout, 1)

    B = _pick_batch_block(N, max_images_per_step)    # images per grid step
    G = N // B
    pad_side = ((W + 127) // 128) * 128
    S = HW + 2 * pad_side

    # channel-major, lane-dense; bf16 halves the input DMA
    x_flat = x_nchw.reshape(N, Cin, HW).astype(jnp.bfloat16)

    out_flat = pl.pallas_call(
        functools.partial(rrcnn_kernel, H=H, W=W),
        out_shape=jax.ShapeDtypeStruct((N, Cout, HW), x_nchw.dtype),
        grid=(G,),
        in_specs=[
            pl.BlockSpec((B, Cin, HW), lambda n: (n, 0, 0)),
            pl.BlockSpec((Cout, Cin), lambda n: (0, 0)),
            pl.BlockSpec((Cout, 1), lambda n: (0, 0)),
            pl.BlockSpec((2, Cout, 9 * Cout), lambda n: (0, 0, 0)),
            pl.BlockSpec((2, Cout, 1), lambda n: (0, 0, 0)),
        ],
        out_specs=pl.BlockSpec((B, Cout, HW), lambda n: (n, 0, 0)),
        scratch_shapes=[
            pltpu.VMEM((Cout, B * S), jnp.float32),        # zero-bordered staging
            pltpu.VMEM((9 * Cout, B * HW), jnp.float32),   # im2col matrix
        ],
        compiler_params=pltpu.CompilerParams(
            dimension_semantics=("parallel",)),  # image blocks shard across TCs
    )(x_flat, w1, b1, wrb, brb)

    return out_flat.reshape(N, Cout, H, W)          # NCHW, no transposes needed


# ---------------- params & pure-JAX reference ----------------

def init_params(key, ch_in, ch_out):
    ks = jax.random.split(key, 14)

    def uni(k, shape, fan_in):
        bound = 1.0 / (fan_in ** 0.5)
        return jax.random.uniform(k, shape, jnp.float32, -bound, bound)

    params = {
        "w1x1": uni(ks[0], (ch_out, ch_in), ch_in),
        "b1x1": uni(ks[1], (ch_out,), ch_in),
    }
    i = 2
    for name in ("rb1", "rb2"):
        params[name] = {
            "w": uni(ks[i], (ch_out, ch_out, 3, 3), ch_out * 9),
            "b": uni(ks[i + 1], (ch_out,), ch_out * 9),
            "gamma": 1.0 + 0.1 * jax.random.normal(ks[i + 2], (ch_out,), jnp.float32),
            "beta": 0.1 * jax.random.normal(ks[i + 3], (ch_out,), jnp.float32),
            "mean": 0.1 * jax.random.normal(ks[i + 4], (ch_out,), jnp.float32),
            "var": 1.0 + 0.1 * jnp.abs(jax.random.normal(ks[i + 5], (ch_out,), jnp.float32)),
        }
        i += 6
    return params


def ref_forward(x, params):
    dn = ("NCHW", "OIHW", "NCHW")
    w1 = params["w1x1"][:, :, None, None]
    y = lax.conv_general_dilated(x, w1, (1, 1), "VALID", dimension_numbers=dn)
    y = y + params["b1x1"][None, :, None, None]

    def cbr(z, p):
        o = lax.conv_general_dilated(z, p["w"], (1, 1), "SAME", dimension_numbers=dn)
        o = o + p["b"][None, :, None, None]
        o = (o - p["mean"][None, :, None, None]) / jnp.sqrt(
            p["var"][None, :, None, None] + BN_EPS)
        o = o * p["gamma"][None, :, None, None] + p["beta"][None, :, None, None]
        return jnp.maximum(o, 0.0)

    h = y
    for name in ("rb1", "rb2"):
        p = params[name]
        x1 = cbr(h, p)
        x1 = cbr(h + x1, p)
        x1 = cbr(h + x1, p)
        h = x1
    return y + h


if __name__ == "__main__":
    key = jax.random.PRNGKey(0)
    # N=4 exercises the batched grid path (B=2 images/step, grid of 2 steps).
    N, CIN, COUT, H, W = 4, 4, 8, 16, 16
    kx, kp = jax.random.split(key)
    x = jax.random.normal(kx, (N, CIN, H, W), jnp.float32)
    params = init_params(kp, CIN, COUT)

    out = jax.block_until_ready(rrcnn_block(x, params))
    assert out.shape == (N, COUT, H, W), out.shape

    ref = ref_forward(x, params)
    max_err = float(jnp.max(jnp.abs(out - ref)))
    # bf16 dot operands vs. the pure-f32 reference -> slightly wider tolerance.
    assert bool(jnp.allclose(out, ref, rtol=5e-2, atol=5e-2)), max_err

    print("KERNEL_OK")
</pallas_src>

<mosaic_0001>
module attributes {stable_mosaic.version = 11 : i64} {
  func.func @rrcnn_kernel(%arg0: i32, %arg1: memref<2x4x256xbf16, #tpu.memory_space<vmem>>, %arg2: memref<8x4xbf16, #tpu.memory_space<vmem>>, %arg3: memref<8x1xf32, #tpu.memory_space<vmem>>, %arg4: memref<2x8x72xbf16, #tpu.memory_space<vmem>>, %arg5: memref<2x8x1xf32, #tpu.memory_space<vmem>>, %arg6: memref<2x8x256xf32, #tpu.memory_space<vmem>>, %arg7: memref<8x1024xf32, #tpu.memory_space<vmem>>, %arg8: memref<72x512xf32, #tpu.memory_space<vmem>>) attributes {dimension_semantics = [#tpu.dimension_semantics<parallel>], iteration_bounds = array<i64: 2>, scalar_prefetch = 0 : i64, scratch_operands = 2 : i64, tpu.core_type = #tpu.core_type<tc>, window_params = [{transform_indices = @transform_0, window_bounds = array<i64: 2, 4, 256>}, {pipeline_mode = #tpu.pipeline_mode<synchronous>, transform_indices = @transform_1, window_bounds = array<i64: 8, 4>}, {pipeline_mode = #tpu.pipeline_mode<synchronous>, transform_indices = @transform_2, window_bounds = array<i64: 8, 1>}, {pipeline_mode = #tpu.pipeline_mode<synchronous>, transform_indices = @transform_3, window_bounds = array<i64: 2, 8, 72>}, {pipeline_mode = #tpu.pipeline_mode<synchronous>, transform_indices = @transform_4, window_bounds = array<i64: 2, 8, 1>}, {transform_indices = @transform_5, window_bounds = array<i64: 2, 8, 256>}]} {
    %0 = tpu.iota {dimensions = array<i32: 1>} : vector<1x256xi32>
    %c16_i32 = arith.constant 16 : i32
    %c0_i32 = arith.constant 0 : i32
    %1 = arith.cmpi eq, %c16_i32, %c0_i32 : i32
    %c1_i32 = arith.constant 1 : i32
    %2 = arith.select %1, %c1_i32, %c16_i32 : i32
    %3 = vector.broadcast %2 : i32 to vector<1x256xi32>
    %4 = arith.remsi %0, %3 : vector<1x256xi32>
    %c0_i32_0 = arith.constant 0 : i32
    %5 = vector.broadcast %c0_i32_0 : i32 to vector<1x256xi32>
    %6 = arith.cmpi ne, %4, %5 : vector<1x256xi32>
    %c0_i32_1 = arith.constant 0 : i32
    %7 = vector.broadcast %c0_i32_1 : i32 to vector<1x256xi32>
    %8 = arith.cmpi slt, %4, %7 : vector<1x256xi32>
    %c0_i32_2 = arith.constant 0 : i32
    %9 = arith.cmpi slt, %2, %c0_i32_2 : i32
    %10 = vector.broadcast %9 : i1 to vector<1x256xi1>
    %11 = vector.broadcast %10 : vector<1x256xi1> to vector<1x256xi1>
    %12 = arith.xori %8, %11 : vector<1x256xi1>
    %13 = arith.andi %12, %6 : vector<1x256xi1>
    %14 = vector.broadcast %2 : i32 to vector<1x256xi32>
    %15 = arith.addi %4, %14 : vector<1x256xi32>
    %16 = arith.select %13, %15, %4 : vector<1x256xi1>, vector<1x256xi32>
    %c0_i32_3 = arith.constant 0 : i32
    %17 = vector.broadcast %c0_i32_3 : i32 to vector<1x256xi32>
    %18 = arith.cmpi sgt, %16, %17 : vector<1x256xi32>
    %19 = arith.extui %18 : vector<1x256xi1> to vector<1x256xi32>
    %20 = arith.sitofp %19 : vector<1x256xi32> to vector<1x256xf32>
    %c15_i32 = arith.constant 15 : i32
    %21 = vector.broadcast %c15_i32 : i32 to vector<1x256xi32>
    %22 = arith.cmpi slt, %16, %21 : vector<1x256xi32>
    %23 = arith.extui %22 : vector<1x256xi1> to vector<1x256xi32>
    %24 = arith.sitofp %23 : vector<1x256xi32> to vector<1x256xf32>
    %cst = arith.constant 0.000000e+00 : f32
    %25 = vector.broadcast %cst : f32 to vector<8x16xf32>
    %c0 = arith.constant 0 : index
    %c112 = arith.constant 112 : index
    %26 = vector.load %arg7[%c0, %c112] : memref<8x1024xf32, #tpu.memory_space<vmem>>, vector<8x16xf32>
    tpu.vector_store %arg7[%c0, %c112], %25 {strides = array<i32>} : memref<8x1024xf32, #tpu.memory_space<vmem>>, vector<8x16xf32>,
    %c0_4 = arith.constant 0 : index
    %c384 = arith.constant 384 : index
    %27 = vector.load %arg7[%c0_4, %c384] : memref<8x1024xf32, #tpu.memory_space<vmem>>, vector<8x16xf32>
    tpu.vector_store %arg7[%c0_4, %c384], %25 {strides = array<i32>} : memref<8x1024xf32, #tpu.memory_space<vmem>>, vector<8x16xf32>,
    %c0_5 = arith.constant 0 : index
    %c624 = arith.constant 624 : index
    %28 = vector.load %arg7[%c0_5, %c624] : memref<8x1024xf32, #tpu.memory_space<vmem>>, vector<8x16xf32>
    tpu.vector_store %arg7[%c0_5, %c624], %25 {strides = array<i32>} : memref<8x1024xf32, #tpu.memory_space<vmem>>, vector<8x16xf32>,
    %c0_6 = arith.constant 0 : index
    %c896 = arith.constant 896 : index
    %29 = vector.load %arg7[%c0_6, %c896] : memref<8x1024xf32, #tpu.memory_space<vmem>>, vector<8x16xf32>
    tpu.vector_store %arg7[%c0_6, %c896], %25 {strides = array<i32>} : memref<8x1024xf32, #tpu.memory_space<vmem>>, vector<8x16xf32>,
    %c0_7 = arith.constant 0 : index
    %c0_8 = arith.constant 0 : index
    %c0_9 = arith.constant 0 : index
    %30 = vector.load %arg1[%c0_7, %c0_8, %c0_9] : memref<2x4x256xbf16, #tpu.memory_space<vmem>>, vector<1x4x256xbf16>
    %31 = vector.shape_cast %30 : vector<1x4x256xbf16> to vector<4x256xbf16>
    %c1 = arith.constant 1 : index
    %c0_10 = arith.constant 0 : index
    %c0_11 = arith.constant 0 : index
    %32 = vector.load %arg1[%c1, %c0_10, %c0_11] : memref<2x4x256xbf16, #tpu.memory_space<vmem>>, vector<1x4x256xbf16>
    %33 = vector.shape_cast %32 : vector<1x4x256xbf16> to vector<4x256xbf16>
    %34 = tpu.concatenate %31, %33 in 1 : vector<4x256xbf16>, vector<4x256xbf16> -> vector<4x512xbf16>
    %c0_12 = arith.constant 0 : index
    %c0_13 = arith.constant 0 : index
    %35 = vector.load %arg2[%c0_12, %c0_13] : memref<8x4xbf16, #tpu.memory_space<vmem>>, vector<8x4xbf16>
    %cst_14 = arith.constant dense<0.000000e+00> : vector<8x512xf32>
    %36 = tpu.matmul %35, %34, %cst_14 {dimension_numbers = #tpu.dot_dimension_numbers<[1], [0], [0], [1], [0, 0, 1, 1], [], []>} : vector<8x4xbf16>, vector<4x512xbf16>, vector<8x512xf32> -> vector<8x512xf32>
    %c0_15 = arith.constant 0 : index
    %c0_16 = arith.constant 0 : index
    %37 = vector.load %arg3[%c0_15, %c0_16] : memref<8x1xf32, #tpu.memory_space<vmem>>, vector<8x1xf32>
    %38 = vector.broadcast %37 : vector<8x1xf32> to vector<8x512xf32>
    %39 = arith.addf %36, %38 : vector<8x512xf32>
    %c0_17 = arith.constant 0 : index
    %c0_18 = arith.constant 0 : index
    %c0_19 = arith.constant 0 : index
    %40 = vector.load %arg4[%c0_17, %c0_18, %c0_19] : memref<2x8x72xbf16, #tpu.memory_space<vmem>>, vector<1x8x72xbf16>
    %41 = vector.shape_cast %40 : vector<1x8x72xbf16> to vector<8x72xbf16>
    %c0_20 = arith.constant 0 : index
    %c0_21 = arith.constant 0 : index
    %c0_22 = arith.constant 0 : index
    %42 = vector.load %arg5[%c0_20, %c0_21, %c0_22] : memref<2x8x1xf32, #tpu.memory_space<vmem>>, vector<1x8x1xf32>
    %43 = vector.shape_cast %42 : vector<1x8x1xf32> to vector<8x1xf32>
    %44 = vector.extract_strided_slice %39 {offsets = [0, 0], sizes = [8, 256], strides = [1, 1]} : vector<8x512xf32> to vector<8x256xf32>
    %c0_23 = arith.constant 0 : index
    %c128 = arith.constant 128 : index
    %45 = vector.load %arg7[%c0_23, %c128] : memref<8x1024xf32, #tpu.memory_space<vmem>>, vector<8x256xf32>
    tpu.vector_store %arg7[%c0_23, %c128], %44 {strides = array<i32>} : memref<8x1024xf32, #tpu.memory_space<vmem>>, vector<8x256xf32>,
    %c0_24 = arith.constant 0 : index
    %c112_25 = arith.constant 112 : index
    %46 = vector.load %arg7[%c0_24, %c112_25] : memref<8x1024xf32, #tpu.memory_space<vmem>>, vector<8x256xf32>
    %c1_i32_26 = arith.constant 1 : i32
    %47 = tpu.dynamic_rotate %46 by %c1_i32_26 dim 1 : vector<8x256xf32>, i32 -> vector<8x256xf32>
    %48 = vector.broadcast %20 : vector<1x256xf32> to vector<8x256xf32>
    %49 = arith.mulf %47, %48 : vector<8x256xf32>
    %c0_27 = arith.constant 0 : index
    %c0_28 = arith.constant 0 : index
    %50 = vector.load %arg8[%c0_27, %c0_28] : memref<72x512xf32, #tpu.memory_space<vmem>>, vector<8x256xf32>
    tpu.vector_store %arg8[%c0_27, %c0_28], %49 {strides = array<i32>} : memref<72x512xf32, #tpu.memory_space<vmem>>, vector<8x256xf32>,
    %c8 = arith.constant 8 : index
    %c0_29 = arith.constant 0 : index
    %51 = vector.load %arg8[%c8, %c0_29] : memref<72x512xf32, #tpu.memory_space<vmem>>, vector<8x256xf32>
    tpu.vector_store %arg8[%c8, %c0_29], %46 {strides = array<i32>} : memref<72x512xf32, #tpu.memory_space<vmem>>, vector<8x256xf32>,
    %c255_i32 = arith.constant 255 : i32
    %52 = tpu.dynamic_rotate %46 by %c255_i32 dim 1 : vector<8x256xf32>, i32 -> vector<8x256xf32>
    %53 = vector.broadcast %24 : vector<1x256xf32> to vector<8x256xf32>
    %54 = arith.mulf %52, %53 : vector<8x256xf32>
    %c16 = arith.constant 16 : index
    %c0_30 = arith.constant 0 : index
    %55 = vector.load %arg8[%c16, %c0_30] : memref<72x512xf32, #tpu.memory_space<vmem>>, vector<8x256xf32>
    tpu.vector_store %arg8[%c16, %c0_30], %54 {strides = array<i32>} : memref<72x512xf32, #tpu.memory_space<vmem>>, vector<8x256xf32>,
    %c1_i32_31 = arith.constant 1 : i32
    %56 = tpu.dynamic_rotate %44 by %c1_i32_31 dim 1 : vector<8x256xf32>, i32 -> vector<8x256xf32>
    %57 = vector.broadcast %20 : vector<1x256xf32> to vector<8x256xf32>
    %58 = arith.mulf %56, %57 : vector<8x256xf32>
    %c24 = arith.constant 24 : index
    %c0_32 = arith.constant 0 : index
    %59 = vector.load %arg8[%c24, %c0_32] : memref<72x512xf32, #tpu.memory_space<vmem>>, vector<8x256xf32>
    tpu.vector_store %arg8[%c24, %c0_32], %58 {strides = array<i32>} : memref<72x512xf32, #tpu.memory_space<vmem>>, vector<8x256xf32>,
    %c32 = arith.constant 32 : index
    %c0_33 = arith.constant 0 : index
    %60 = vector.load %arg8[%c32, %c0_33] : memref<72x512xf32, #tpu.memory_space<vmem>>, vector<8x256xf32>
    tpu.vector_store %arg8[%c32, %c0_33], %44 {strides = array<i32>} : memref<72x512xf32, #tpu.memory_space<vmem>>, vector<8x256xf32>,
    %c255_i32_34 = arith.constant 255 : i32
    %61 = tpu.dynamic_rotate %44 by %c255_i32_34 dim 1 : vector<8x256xf32>, i32 -> vector<8x256xf32>
    %62 = vector.broadcast %24 : vector<1x256xf32> to vector<8x256xf32>
    %63 = arith.mulf %61, %62 : vector<8x256xf32>
    %c40 = arith.constant 40 : index
    %c0_35 = arith.constant 0 : index
    %64 = vector.load %arg8[%c40, %c0_35] : memref<72x512xf32, #tpu.memory_space<vmem>>, vector<8x256xf32>
    tpu.vector_store %arg8[%c40, %c0_35], %63 {strides = array<i32>} : memref<72x512xf32, #tpu.memory_space<vmem>>, vector<8x256xf32>,
    %c0_36 = arith.constant 0 : index
    %c144 = arith.constant 144 : index
    %65 = vector.load %arg7[%c0_36, %c144] : memref<8x1024xf32, #tpu.memory_space<vmem>>, vector<8x256xf32>
    %c1_i32_37 = arith.constant 1 : i32
    %66 = tpu.dynamic_rotate %65 by %c1_i32_37 dim 1 : vector<8x256xf32>, i32 -> vector<8x256xf32>
    %67 = vector.broadcast %20 : vector<1x256xf32> to vector<8x256xf32>
    %68 = arith.mulf %66, %67 : vector<8x256xf32>
    %c48 = arith.constant 48 : index
    %c0_38 = arith.constant 0 : index
    %69 = vector.load %arg8[%c48, %c0_38] : memref<72x512xf32, #tpu.memory_space<vmem>>, vector<8x256xf32>
    tpu.vector_store %arg8[%c48, %c0_38], %68 {strides = array<i32>} : memref<72x512xf32, #tpu.memory_space<vmem>>, vector<8x256xf32>,
    %c56 = arith.constant 56 : index
    %c0_39 = arith.constant 0 : index
    %70 = vector.load %arg8[%c56, %c0_39] : memref<72x512xf32, #tpu.memory_space<vmem>>, vector<8x256xf32>
    tpu.vector_store %arg8[%c56, %c0_39], %65 {strides = array<i32>} : memref<72x512xf32, #tpu.memory_space<vmem>>, vector<8x256xf32>,
    %c255_i32_40 = arith.constant 255 : i32
    %71 = tpu.dynamic_rotate %65 by %c255_i32_40 dim 1 : vector<8x256xf32>, i32 -> vector<8x256xf32>
    %72 = vector.broadcast %24 : vector<1x256xf32> to vector<8x256xf32>
    %73 = arith.mulf %71, %72 : vector<8x256xf32>
    %c64 = arith.constant 64 : index
    %c0_41 = arith.constant 0 : index
    %74 = vector.load %arg8[%c64, %c0_41] : memref<72x512xf32, #tpu.memory_space<vmem>>, vector<8x256xf32>
    tpu.vector_store %arg8[%c64, %c0_41], %73 {strides = array<i32>} : memref<72x512xf32, #tpu.memory_space<vmem>>, vector<8x256xf32>,
    %75 = vector.extract_strided_slice %39 {offsets = [0, 256], sizes = [8, 256], strides = [1, 1]} : vector<8x512xf32> to vector<8x256xf32>
    %c0_42 = arith.constant 0 : index
    %c640 = arith.constant 640 : index
    %76 = vector.load %arg7[%c0_42, %c640] : memref<8x1024xf32, #tpu.memory_space<vmem>>, vector<8x256xf32>
    tpu.vector_store %arg7[%c0_42, %c640], %75 {strides = array<i32>} : memref<8x1024xf32, #tpu.memory_space<vmem>>, vector<8x256xf32>,
    %c0_43 = arith.constant 0 : index
    %c624_44 = arith.constant 624 : index
    %77 = vector.load %arg7[%c0_43, %c624_44] : memref<8x1024xf32, #tpu.memory_space<vmem>>, vector<8x256xf32>
    %c1_i32_45 = arith.constant 1 : i32
    %78 = tpu.dynamic_rotate %77 by %c1_i32_45 dim 1 : vector<8x256xf32>, i32 -> vector<8x256xf32>
    %79 = vector.broadcast %20 : vector<1x256xf32> to vector<8x256xf32>
    %80 = arith.mulf %78, %79 : vector<8x256xf32>
    %c0_46 = arith.constant 0 : index
    %c256 = arith.constant 256 : index
    %81 = vector.load %arg8[%c0_46, %c256] : memref<72x512xf32, #tpu.memory_space<vmem>>, vector<8x256xf32>
    tpu.vector_store %arg8[%c0_46, %c256], %80 {strides = array<i32>} : memref<72x512xf32, #tpu.memory_space<vmem>>, vector<8x256xf32>,
    %c8_47 = arith.constant 8 : index
    %c256_48 = arith.constant 256 : index
    %82 = vector.load %arg8[%c8_47, %c256_48] : memref<72x512xf32, #tpu.memory_space<vmem>>, vector<8x256xf32>
    tpu.vector_store %arg8[%c8_47, %c256_48], %77 {strides = array<i32>} : memref<72x512xf32, #tpu.memory_space<vmem>>, vector<8x256xf32>,
    %c255_i32_49 = arith.constant 255 : i32
    %83 = tpu.dynamic_rotate %77 by %c255_i32_49 dim 1 : vector<8x256xf32>, i32 -> vector<8x256xf32>
    %84 = vector.broadcast %24 : vector<1x256xf32> to vector<8x256xf32>
    %85 = arith.mulf %83, %84 : vector<8x256xf32>
    %c16_50 = arith.constant 16 : index
    %c256_51 = arith.constant 256 : index
    %86 = vector.load %arg8[%c16_50, %c256_51] : memref<72x512xf32, #tpu.memory_space<vmem>>, vector<8x256xf32>
    tpu.vector_store %arg8[%c16_50, %c256_51], %85 {strides = array<i32>} : memref<72x512xf32, #tpu.memory_space<vmem>>, vector<8x256xf32>,
    %c1_i32_52 = arith.constant 1 : i32
    %87 = tpu.dynamic_rotate %75 by %c1_i32_52 dim 1 : vector<8x256xf32>, i32 -> vector<8x256xf32>
    %88 = vector.broadcast %20 : vector<1x256xf32> to vector<8x256xf32>
    %89 = arith.mulf %87, %88 : vector<8x256xf32>
    %c24_53 = arith.constant 24 : index
    %c256_54 = arith.constant 256 : index
    %90 = vector.load %arg8[%c24_53, %c256_54] : memref<72x512xf32, #tpu.memory_space<vmem>>, vector<8x256xf32>
    tpu.vector_store %arg8[%c24_53, %c256_54], %89 {strides = array<i32>} : memref<72x512xf32, #tpu.memory_space<vmem>>, vector<8x256xf32>,
    %c32_55 = arith.constant 32 : index
    %c256_56 = arith.constant 256 : index
    %91 = vector.load %arg8[%c32_55, %c256_56] : memref<72x512xf32, #tpu.memory_space<vmem>>, vector<8x256xf32>
    tpu.vector_store %arg8[%c32_55, %c256_56], %75 {strides = array<i32>} : memref<72x512xf32, #tpu.memory_space<vmem>>, vector<8x256xf32>,
    %c255_i32_57 = arith.constant 255 : i32
    %92 = tpu.dynamic_rotate %75 by %c255_i32_57 dim 1 : vector<8x256xf32>, i32 -> vector<8x256xf32>
    %93 = vector.broadcast %24 : vector<1x256xf32> to vector<8x256xf32>
    %94 = arith.mulf %92, %93 : vector<8x256xf32>
    %c40_58 = arith.constant 40 : index
    %c256_59 = arith.constant 256 : index
    %95 = vector.load %arg8[%c40_58, %c256_59] : memref<72x512xf32, #tpu.memory_space<vmem>>, vector<8x256xf32>
    tpu.vector_store %arg8[%c40_58, %c256_59], %94 {strides = array<i32>} : memref<72x512xf32, #tpu.memory_space<vmem>>, vector<8x256xf32>,
    %c0_60 = arith.constant 0 : index
    %c656 = arith.constant 656 : index
    %96 = vector.load %arg7[%c0_60, %c656] : memref<8x1024xf32, #tpu.memory_space<vmem>>, vector<8x256xf32>
    %c1_i32_61 = arith.constant 1 : i32
    %97 = tpu.dynamic_rotate %96 by %c1_i32_61 dim 1 : vector<8x256xf32>, i32 -> vector<8x256xf32>
    %98 = vector.broadcast %20 : vector<1x256xf32> to vector<8x256xf32>
    %99 = arith.mulf %97, %98 : vector<8x256xf32>
    %c48_62 = arith.constant 48 : index
    %c256_63 = arith.constant 256 : index
    %100 = vector.load %arg8[%c48_62, %c256_63] : memref<72x512xf32, #tpu.memory_space<vmem>>, vector<8x256xf32>
    tpu.vector_store %arg8[%c48_62, %c256_63], %99 {strides = array<i32>} : memref<72x512xf32, #tpu.memory_space<vmem>>, vector<8x256xf32>,
    %c56_64 = arith.constant 56 : index
    %c256_65 = arith.constant 256 : index
    %101 = vector.load %arg8[%c56_64, %c256_65] : memref<72x512xf32, #tpu.memory_space<vmem>>, vector<8x256xf32>
    tpu.vector_store %arg8[%c56_64, %c256_65], %96 {strides = array<i32>} : memref<72x512xf32, #tpu.memory_space<vmem>>, vector<8x256xf32>,
    %c255_i32_66 = arith.constant 255 : i32
    %102 = tpu.dynamic_rotate %96 by %c255_i32_66 dim 1 : vector<8x256xf32>, i32 -> vector<8x256xf32>
    %103 = vector.broadcast %24 : vector<1x256xf32> to vector<8x256xf32>
    %104 = arith.mulf %102, %103 : vector<8x256xf32>
    %c64_67 = arith.constant 64 : index
    %c256_68 = arith.constant 256 : index
    %105 = vector.load %arg8[%c64_67, %c256_68] : memref<72x512xf32, #tpu.memory_space<vmem>>, vector<8x256xf32>
    tpu.vector_store %arg8[%c64_67, %c256_68], %104 {strides = array<i32>} : memref<72x512xf32, #tpu.memory_space<vmem>>, vector<8x256xf32>,
    %c0_69 = arith.constant 0 : index
    %c0_70 = arith.constant 0 : index
    %106 = vector.load %arg8[%c0_69, %c0_70] : memref<72x512xf32, #tpu.memory_space<vmem>>, vector<72x512xf32>
    %107 = arith.truncf %106 : vector<72x512xf32> to vector<72x512xbf16>
    %cst_71 = arith.constant dense<0.000000e+00> : vector<8x512xf32>
    %108 = tpu.matmul %41, %107, %cst_71 {dimension_numbers = #tpu.dot_dimension_numbers<[1], [0], [0], [1], [0, 0, 1, 1], [], []>} : vector<8x72xbf16>, vector<72x512xbf16>, vector<8x512xf32> -> vector<8x512xf32>
    %109 = vector.broadcast %43 : vector<8x1xf32> to vector<8x512xf32>
    %110 = arith.addf %108, %109 : vector<8x512xf32>
    %cst_72 = arith.constant 0.000000e+00 : f32
    %111 = vector.broadcast %cst_72 : f32 to vector<8x512xf32>
    %112 = arith.maximumf %110, %111 : vector<8x512xf32>
    %113 = arith.addf %39, %112 : vector<8x512xf32>
    %114 = vector.extract_strided_slice %113 {offsets = [0, 0], sizes = [8, 256], strides = [1, 1]} : vector<8x512xf32> to vector<8x256xf32>
    %c0_73 = arith.constant 0 : index
    %c128_74 = arith.constant 128 : index
    %115 = vector.load %arg7[%c0_73, %c128_74] : memref<8x1024xf32, #tpu.memory_space<vmem>>, vector<8x256xf32>
    tpu.vector_store %arg7[%c0_73, %c128_74], %114 {strides = array<i32>} : memref<8x1024xf32, #tpu.memory_space<vmem>>, vector<8x256xf32>,
    %c0_75 = arith.constant 0 : index
    %c112_76 = arith.constant 112 : index
    %116 = vector.load %arg7[%c0_75, %c112_76] : memref<8x1024xf32, #tpu.memory_space<vmem>>, vector<8x256xf32>
    %c1_i32_77 = arith.constant 1 : i32
    %117 = tpu.dynamic_rotate %116 by %c1_i32_77 dim 1 : vector<8x256xf32>, i32 -> vector<8x256xf32>
    %118 = vector.broadcast %20 : vector<1x256xf32> to vector<8x256xf32>
    %119 = arith.mulf %117, %118 : vector<8x256xf32>
    %c0_78 = arith.constant 0 : index
    %c0_79 = arith.constant 0 : index
    %120 = vector.load %arg8[%c0_78, %c0_79] : memref<72x512xf32, #tpu.memory_space<vmem>>, vector<8x256xf32>
    tpu.vector_store %arg8[%c0_78, %c0_79], %119 {strides = array<i32>} : memref<72x512xf32, #tpu.memory_space<vmem>>, vector<8x256xf32>,
    %c8_80 = arith.constant 8 : index
    %c0_81 = arith.constant 0 : index
    %121 = vector.load %arg8[%c8_80, %c0_81] : memref<72x512xf32, #tpu.memory_space<vmem>>, vector<8x256xf32>
    tpu.vector_store %arg8[%c8_80, %c0_81], %116 {strides = array<i32>} : memref<72x512xf32, #tpu.memory_space<vmem>>, vector<8x256xf32>,
    %c255_i32_82 = arith.constant 255 : i32
    %122 = tpu.dynamic_rotate %116 by %c255_i32_82 dim 1 : vector<8x256xf32>, i32 -> vector<8x256xf32>
    %123 = vector.broadcast %24 : vector<1x256xf32> to vector<8x256xf32>
    %124 = arith.mulf %122, %123 : vector<8x256xf32>
    %c16_83 = arith.constant 16 : index
    %c0_84 = arith.constant 0 : index
    %125 = vector.load %arg8[%c16_83, %c0_84] : memref<72x512xf32, #tpu.memory_space<vmem>>, vector<8x256xf32>
    tpu.vector_store %arg8[%c16_83, %c0_84], %124 {strides = array<i32>} : memref<72x512xf32, #tpu.memory_space<vmem>>, vector<8x256xf32>,
    %c1_i32_85 = arith.constant 1 : i32
    %126 = tpu.dynamic_rotate %114 by %c1_i32_85 dim 1 : vector<8x256xf32>, i32 -> vector<8x256xf32>
    %127 = vector.broadcast %20 : vector<1x256xf32> to vector<8x256xf32>
    %128 = arith.mulf %126, %127 : vector<8x256xf32>
    %c24_86 = arith.constant 24 : index
    %c0_87 = arith.constant 0 : index
    %129 = vector.load %arg8[%c24_86, %c0_87] : memref<72x512xf32, #tpu.memory_space<vmem>>, vector<8x256xf32>
    tpu.vector_store %arg8[%c24_86, %c0_87], %128 {strides = array<i32>} : memref<72x512xf32, #tpu.memory_space<vmem>>, vector<8x256xf32>,
    %c32_88 = arith.constant 32 : index
    %c0_89 = arith.constant 0 : index
    %130 = vector.load %arg8[%c32_88, %c0_89] : memref<72x512xf32, #tpu.memory_space<vmem>>, vector<8x256xf32>
    tpu.vector_store %arg8[%c32_88, %c0_89], %114 {strides = array<i32>} : memref<72x512xf32, #tpu.memory_space<vmem>>, vector<8x256xf32>,
    %c255_i32_90 = arith.constant 255 : i32
    %131 = tpu.dynamic_rotate %114 by %c255_i32_90 dim 1 : vector<8x256xf32>, i32 -> vector<8x256xf32>
    %132 = vector.broadcast %24 : vector<1x256xf32> to vector<8x256xf32>
    %133 = arith.mulf %131, %132 : vector<8x256xf32>
    %c40_91 = arith.constant 40 : index
    %c0_92 = arith.constant 0 : index
    %134 = vector.load %arg8[%c40_91, %c0_92] : memref<72x512xf32, #tpu.memory_space<vmem>>, vector<8x256xf32>
    tpu.vector_store %arg8[%c40_91, %c0_92], %133 {strides = array<i32>} : memref<72x512xf32, #tpu.memory_space<vmem>>, vector<8x256xf32>,
    %c0_93 = arith.constant 0 : index
    %c144_94 = arith.constant 144 : index
    %135 = vector.load %arg7[%c0_93, %c144_94] : memref<8x1024xf32, #tpu.memory_space<vmem>>, vector<8x256xf32>
    %c1_i32_95 = arith.constant 1 : i32
    %136 = tpu.dynamic_rotate %135 by %c1_i32_95 dim 1 : vector<8x256xf32>, i32 -> vector<8x256xf32>
    %137 = vector.broadcast %20 : vector<1x256xf32> to vector<8x256xf32>
    %138 = arith.mulf %136, %137 : vector<8x256xf32>
    %c48_96 = arith.constant 48 : index
    %c0_97 = arith.constant 0 : index
    %139 = vector.load %arg8[%c48_96, %c0_97] : memref<72x512xf32, #tpu.memory_space<vmem>>, vector<8x256xf32>
    tpu.vector_store %arg8[%c48_96, %c0_97], %138 {strides = array<i32>} : memref<72x512xf32, #tpu.memory_space<vmem>>, vector<8x256xf32>,
    %c56_98 = arith.constant 56 : index
    %c0_99 = arith.constant 0 : index
    %140 = vector.load %arg8[%c56_98, %c0_99] : memref<72x512xf32, #tpu.memory_space<vmem>>, vector<8x256xf32>
    tpu.vector_store %arg8[%c56_98, %c0_99], %135 {strides = array<i32>} : memref<72x512xf32, #tpu.memory_space<vmem>>, vector<8x256xf32>,
    %c255_i32_100 = arith.constant 255 : i32
    %141 = tpu.dynamic_rotate %135 by %c255_i32_100 dim 1 : vector<8x256xf32>, i32 -> vector<8x256xf32>
    %142 = vector.broadcast %24 : vector<1x256xf32> to vector<8x256xf32>
    %143 = arith.mulf %141, %142 : vector<8x256xf32>
    %c64_101 = arith.constant 64 : index
    %c0_102 = arith.constant 0 : index
    %144 = vector.load %arg8[%c64_101, %c0_102] : memref<72x512xf32, #tpu.memory_space<vmem>>, vector<8x256xf32>
    tpu.vector_store %arg8[%c64_101, %c0_102], %143 {strides = array<i32>} : memref<72x512xf32, #tpu.memory_space<vmem>>, vector<8x256xf32>,
    %145 = vector.extract_strided_slice %113 {offsets = [0, 256], sizes = [8, 256], strides = [1, 1]} : vector<8x512xf32> to vector<8x256xf32>
    %c0_103 = arith.constant 0 : index
    %c640_104 = arith.constant 640 : index
    %146 = vector.load %arg7[%c0_103, %c640_104] : memref<8x1024xf32, #tpu.memory_space<vmem>>, vector<8x256xf32>
    tpu.vector_store %arg7[%c0_103, %c640_104], %145 {strides = array<i32>} : memref<8x1024xf32, #tpu.memory_space<vmem>>, vector<8x256xf32>,
    %c0_105 = arith.constant 0 : index
    %c624_106 = arith.constant 624 : index
    %147 = vector.load %arg7[%c0_105, %c624_106] : memref<8x1024xf32, #tpu.memory_space<vmem>>, vector<8x256xf32>
    %c1_i32_107 = arith.constant 1 : i32
    %148 = tpu.dynamic_rotate %147 by %c1_i32_107 dim 1 : vector<8x256xf32>, i32 -> vector<8x256xf32>
    %149 = vector.broadcast %20 : vector<1x256xf32> to vector<8x256xf32>
    %150 = arith.mulf %148, %149 : vector<8x256xf32>
    %c0_108 = arith.constant 0 : index
    %c256_109 = arith.constant 256 : index
    %151 = vector.load %arg8[%c0_108, %c256_109] : memref<72x512xf32, #tpu.memory_space<vmem>>, vector<8x256xf32>
    tpu.vector_store %arg8[%c0_108, %c256_109], %150 {strides = array<i32>} : memref<72x512xf32, #tpu.memory_space<vmem>>, vector<8x256xf32>,
    %c8_110 = arith.constant 8 : index
    %c256_111 = arith.constant 256 : index
    %152 = vector.load %arg8[%c8_110, %c256_111] : memref<72x512xf32, #tpu.memory_space<vmem>>, vector<8x256xf32>
    tpu.vector_store %arg8[%c8_110, %c256_111], %147 {strides = array<i32>} : memref<72x512xf32, #tpu.memory_space<vmem>>, vector<8x256xf32>,
    %c255_i32_112 = arith.constant 255 : i32
    %153 = tpu.dynamic_rotate %147 by %c255_i32_112 dim 1 : vector<8x256xf32>, i32 -> vector<8x256xf32>
    %154 = vector.broadcast %24 : vector<1x256xf32> to vector<8x256xf32>
    %155 = arith.mulf %153, %154 : vector<8x256xf32>
    %c16_113 = arith.constant 16 : index
    %c256_114 = arith.constant 256 : index
    %156 = vector.load %arg8[%c16_113, %c256_114] : memref<72x512xf32, #tpu.memory_space<vmem>>, vector<8x256xf32>
    tpu.vector_store %arg8[%c16_113, %c256_114], %155 {strides = array<i32>} : memref<72x512xf32, #tpu.memory_space<vmem>>, vector<8x256xf32>,
    %c1_i32_115 = arith.constant 1 : i32
    %157 = tpu.dynamic_rotate %145 by %c1_i32_115 dim 1 : vector<8x256xf32>, i32 -> vector<8x256xf32>
    %158 = vector.broadcast %20 : vector<1x256xf32> to vector<8x256xf32>
    %159 = arith.mulf %157, %158 : vector<8x256xf32>
    %c24_116 = arith.constant 24 : index
    %c256_117 = arith.constant 256 : index
    %160 = vector.load %arg8[%c24_116, %c256_117] : memref<72x512xf32, #tpu.memory_space<vmem>>, vector<8x256xf32>
    tpu.vector_store %arg8[%c24_116, %c256_117], %159 {strides = array<i32>} : memref<72x512xf32, #tpu.memory_space<vmem>>, vector<8x256xf32>,
    %c32_118 = arith.constant 32 : index
    %c256_119 = arith.constant 256 : index
    %161 = vector.load %arg8[%c32_118, %c256_119] : memref<72x512xf32, #tpu.memory_space<vmem>>, vector<8x256xf32>
    tpu.vector_store %arg8[%c32_118, %c256_119], %145 {strides = array<i32>} : memref<72x512xf32, #tpu.memory_space<vmem>>, vector<8x256xf32>,
    %c255_i32_120 = arith.constant 255 : i32
    %162 = tpu.dynamic_rotate %145 by %c255_i32_120 dim 1 : vector<8x256xf32>, i32 -> vector<8x256xf32>
    %163 = vector.broadcast %24 : vector<1x256xf32> to vector<8x256xf32>
    %164 = arith.mulf %162, %163 : vector<8x256xf32>
    %c40_121 = arith.constant 40 : index
    %c256_122 = arith.constant 256 : index
    %165 = vector.load %arg8[%c40_121, %c256_122] : memref<72x512xf32, #tpu.memory_space<vmem>>, vector<8x256xf32>
    tpu.vector_store %arg8[%c40_121, %c256_122], %164 {strides = array<i32>} : memref<72x512xf32, #tpu.memory_space<vmem>>, vector<8x256xf32>,
    %c0_123 = arith.constant 0 : index
    %c656_124 = arith.constant 656 : index
    %166 = vector.load %arg7[%c0_123, %c656_124] : memref<8x1024xf32, #tpu.memory_space<vmem>>, vector<8x256xf32>
    %c1_i32_125 = arith.constant 1 : i32
    %167 = tpu.dynamic_rotate %166 by %c1_i32_125 dim 1 : vector<8x256xf32>, i32 -> vector<8x256xf32>
    %168 = vector.broadcast %20 : vector<1x256xf32> to vector<8x256xf32>
    %169 = arith.mulf %167, %168 : vector<8x256xf32>
    %c48_126 = arith.constant 48 : index
    %c256_127 = arith.constant 256 : index
    %170 = vector.load %arg8[%c48_126, %c256_127] : memref<72x512xf32, #tpu.memory_space<vmem>>, vector<8x256xf32>
    tpu.vector_store %arg8[%c48_126, %c256_127], %169 {strides = array<i32>} : memref<72x512xf32, #tpu.memory_space<vmem>>, vector<8x256xf32>,
    %c56_128 = arith.constant 56 : index
    %c256_129 = arith.constant 256 : index
    %171 = vector.load %arg8[%c56_128, %c256_129] : memref<72x512xf32, #tpu.memory_space<vmem>>, vector<8x256xf32>
    tpu.vector_store %arg8[%c56_128, %c256_129], %166 {strides = array<i32>} : memref<72x512xf32, #tpu.memory_space<vmem>>, vector<8x256xf32>,
    %c255_i32_130 = arith.constant 255 : i32
    %172 = tpu.dynamic_rotate %166 by %c255_i32_130 dim 1 : vector<8x256xf32>, i32 -> vector<8x256xf32>
    %173 = vector.broadcast %24 : vector<1x256xf32> to vector<8x256xf32>
    %174 = arith.mulf %172, %173 : vector<8x256xf32>
    %c64_131 = arith.constant 64 : index
    %c256_132 = arith.constant 256 : index
    %175 = vector.load %arg8[%c64_131, %c256_132] : memref<72x512xf32, #tpu.memory_space<vmem>>, vector<8x256xf32>
    tpu.vector_store %arg8[%c64_131, %c256_132], %174 {strides = array<i32>} : memref<72x512xf32, #tpu.memory_space<vmem>>, vector<8x256xf32>,
    %c0_133 = arith.constant 0 : index
    %c0_134 = arith.constant 0 : index
    %176 = vector.load %arg8[%c0_133, %c0_134] : memref<72x512xf32, #tpu.memory_space<vmem>>, vector<72x512xf32>
    %177 = arith.truncf %176 : vector<72x512xf32> to vector<72x512xbf16>
    %cst_135 = arith.constant dense<0.000000e+00> : vector<8x512xf32>
    %178 = tpu.matmul %41, %177, %cst_135 {dimension_numbers = #tpu.dot_dimension_numbers<[1], [0], [0], [1], [0, 0, 1, 1], [], []>} : vector<8x72xbf16>, vector<72x512xbf16>, vector<8x512xf32> -> vector<8x512xf32>
    %179 = vector.broadcast %43 : vector<8x1xf32> to vector<8x512xf32>
    %180 = arith.addf %178, %179 : vector<8x512xf32>
    %cst_136 = arith.constant 0.000000e+00 : f32
    %181 = vector.broadcast %cst_136 : f32 to vector<8x512xf32>
    %182 = arith.maximumf %180, %181 : vector<8x512xf32>
    %183 = arith.addf %39, %182 : vector<8x512xf32>
    %184 = vector.extract_strided_slice %183 {offsets = [0, 0], sizes = [8, 256], strides = [1, 1]} : vector<8x512xf32> to vector<8x256xf32>
    %c0_137 = arith.constant 0 : index
    %c128_138 = arith.constant 128 : index
    %185 = vector.load %arg7[%c0_137, %c128_138] : memref<8x1024xf32, #tpu.memory_space<vmem>>, vector<8x256xf32>
    tpu.vector_store %arg7[%c0_137, %c128_138], %184 {strides = array<i32>} : memref<8x1024xf32, #tpu.memory_space<vmem>>, vector<8x256xf32>,
    %c0_139 = arith.constant 0 : index
    %c112_140 = arith.constant 112 : index
    %186 = vector.load %arg7[%c0_139, %c112_140] : memref<8x1024xf32, #tpu.memory_space<vmem>>, vector<8x256xf32>
    %c1_i32_141 = arith.constant 1 : i32
    %187 = tpu.dynamic_rotate %186 by %c1_i32_141 dim 1 : vector<8x256xf32>, i32 -> vector<8x256xf32>
    %188 = vector.broadcast %20 : vector<1x256xf32> to vector<8x256xf32>
    %189 = arith.mulf %187, %188 : vector<8x256xf32>
    %c0_142 = arith.constant 0 : index
    %c0_143 = arith.constant 0 : index
    %190 = vector.load %arg8[%c0_142, %c0_143] : memref<72x512xf32, #tpu.memory_space<vmem>>, vector<8x256xf32>
    tpu.vector_store %arg8[%c0_142, %c0_143], %189 {strides = array<i32>} : memref<72x512xf32, #tpu.memory_space<vmem>>, vector<8x256xf32>,
    %c8_144 = arith.constant 8 : index
    %c0_145 = arith.constant 0 : index
    %191 = vector.load %arg8[%c8_144, %c0_145] : memref<72x512xf32, #tpu.memory_space<vmem>>, vector<8x256xf32>
    tpu.vector_store %arg8[%c8_144, %c0_145], %186 {strides = array<i32>} : memref<72x512xf32, #tpu.memory_space<vmem>>, vector<8x256xf32>,
    %c255_i32_146 = arith.constant 255 : i32
    %192 = tpu.dynamic_rotate %186 by %c255_i32_146 dim 1 : vector<8x256xf32>, i32 -> vector<8x256xf32>
    %193 = vector.broadcast %24 : vector<1x256xf32> to vector<8x256xf32>
    %194 = arith.mulf %192, %193 : vector<8x256xf32>
    %c16_147 = arith.constant 16 : index
    %c0_148 = arith.constant 0 : index
    %195 = vector.load %arg8[%c16_147, %c0_148] : memref<72x512xf32, #tpu.memory_space<vmem>>, vector<8x256xf32>
    tpu.vector_store %arg8[%c16_147, %c0_148], %194 {strides = array<i32>} : memref<72x512xf32, #tpu.memory_space<vmem>>, vector<8x256xf32>,
    %c1_i32_149 = arith.constant 1 : i32
    %196 = tpu.dynamic_rotate %184 by %c1_i32_149 dim 1 : vector<8x256xf32>, i32 -> vector<8x256xf32>
    %197 = vector.broadcast %20 : vector<1x256xf32> to vector<8x256xf32>
    %198 = arith.mulf %196, %197 : vector<8x256xf32>
    %c24_150 = arith.constant 24 : index
    %c0_151 = arith.constant 0 : index
    %199 = vector.load %arg8[%c24_150, %c0_151] : memref<72x512xf32, #tpu.memory_space<vmem>>, vector<8x256xf32>
    tpu.vector_store %arg8[%c24_150, %c0_151], %198 {strides = array<i32>} : memref<72x512xf32, #tpu.memory_space<vmem>>, vector<8x256xf32>,
    %c32_152 = arith.constant 32 : index
    %c0_153 = arith.constant 0 : index
    %200 = vector.load %arg8[%c32_152, %c0_153] : memref<72x512xf32, #tpu.memory_space<vmem>>, vector<8x256xf32>
    tpu.vector_store %arg8[%c32_152, %c0_153], %184 {strides = array<i32>} : memref<72x512xf32, #tpu.memory_space<vmem>>, vector<8x256xf32>,
    %c255_i32_154 = arith.constant 255 : i32
    %201 = tpu.dynamic_rotate %184 by %c255_i32_154 dim 1 : vector<8x256xf32>, i32 -> vector<8x256xf32>
    %202 = vector.broadcast %24 : vector<1x256xf32> to vector<8x256xf32>
    %203 = arith.mulf %201, %202 : vector<8x256xf32>
    %c40_155 = arith.constant 40 : index
    %c0_156 = arith.constant 0 : index
    %204 = vector.load %arg8[%c40_155, %c0_156] : memref<72x512xf32, #tpu.memory_space<vmem>>, vector<8x256xf32>
    tpu.vector_store %arg8[%c40_155, %c0_156], %203 {strides = array<i32>} : memref<72x512xf32, #tpu.memory_space<vmem>>, vector<8x256xf32>,
    %c0_157 = arith.constant 0 : index
    %c144_158 = arith.constant 144 : index
    %205 = vector.load %arg7[%c0_157, %c144_158] : memref<8x1024xf32, #tpu.memory_space<vmem>>, vector<8x256xf32>
    %c1_i32_159 = arith.constant 1 : i32
    %206 = tpu.dynamic_rotate %205 by %c1_i32_159 dim 1 : vector<8x256xf32>, i32 -> vector<8x256xf32>
    %207 = vector.broadcast %20 : vector<1x256xf32> to vector<8x256xf32>
    %208 = arith.mulf %206, %207 : vector<8x256xf32>
    %c48_160 = arith.constant 48 : index
    %c0_161 = arith.constant 0 : index
    %209 = vector.load %arg8[%c48_160, %c0_161] : memref<72x512xf32, #tpu.memory_space<vmem>>, vector<8x256xf32>
    tpu.vector_store %arg8[%c48_160, %c0_161], %208 {strides = array<i32>} : memref<72x512xf32, #tpu.memory_space<vmem>>, vector<8x256xf32>,
    %c56_162 = arith.constant 56 : index
    %c0_163 = arith.constant 0 : index
    %210 = vector.load %arg8[%c56_162, %c0_163] : memref<72x512xf32, #tpu.memory_space<vmem>>, vector<8x256xf32>
    tpu.vector_store %arg8[%c56_162, %c0_163], %205 {strides = array<i32>} : memref<72x512xf32, #tpu.memory_space<vmem>>, vector<8x256xf32>,
    %c255_i32_164 = arith.constant 255 : i32
    %211 = tpu.dynamic_rotate %205 by %c255_i32_164 dim 1 : vector<8x256xf32>, i32 -> vector<8x256xf32>
    %212 = vector.broadcast %24 : vector<1x256xf32> to vector<8x256xf32>
    %213 = arith.mulf %211, %212 : vector<8x256xf32>
    %c64_165 = arith.constant 64 : index
    %c0_166 = arith.constant 0 : index
    %214 = vector.load %arg8[%c64_165, %c0_166] : memref<72x512xf32, #tpu.memory_space<vmem>>, vector<8x256xf32>
    tpu.vector_store %arg8[%c64_165, %c0_166], %213 {strides = array<i32>} : memref<72x512xf32, #tpu.memory_space<vmem>>, vector<8x256xf32>,
    %215 = vector.extract_strided_slice %183 {offsets = [0, 256], sizes = [8, 256], strides = [1, 1]} : vector<8x512xf32> to vector<8x256xf32>
    %c0_167 = arith.constant 0 : index
    %c640_168 = arith.constant 640 : index
    %216 = vector.load %arg7[%c0_167, %c640_168] : memref<8x1024xf32, #tpu.memory_space<vmem>>, vector<8x256xf32>
    tpu.vector_store %arg7[%c0_167, %c640_168], %215 {strides = array<i32>} : memref<8x1024xf32, #tpu.memory_space<vmem>>, vector<8x256xf32>,
    %c0_169 = arith.constant 0 : index
    %c624_170 = arith.constant 624 : index
    %217 = vector.load %arg7[%c0_169, %c624_170] : memref<8x1024xf32, #tpu.memory_space<vmem>>, vector<8x256xf32>
    %c1_i32_171 = arith.constant 1 : i32
    %218 = tpu.dynamic_rotate %217 by %c1_i32_171 dim 1 : vector<8x256xf32>, i32 -> vector<8x256xf32>
    %219 = vector.broadcast %20 : vector<1x256xf32> to vector<8x256xf32>
    %220 = arith.mulf %218, %219 : vector<8x256xf32>
    %c0_172 = arith.constant 0 : index
    %c256_173 = arith.constant 256 : index
    %221 = vector.load %arg8[%c0_172, %c256_173] : memref<72x512xf32, #tpu.memory_space<vmem>>, vector<8x256xf32>
    tpu.vector_store %arg8[%c0_172, %c256_173], %220 {strides = array<i32>} : memref<72x512xf32, #tpu.memory_space<vmem>>, vector<8x256xf32>,
    %c8_174 = arith.constant 8 : index
    %c256_175 = arith.constant 256 : index
    %222 = vector.load %arg8[%c8_174, %c256_175] : memref<72x512xf32, #tpu.memory_space<vmem>>, vector<8x256xf32>
    tpu.vector_store %arg8[%c8_174, %c256_175], %217 {strides = array<i32>} : memref<72x512xf32, #tpu.memory_space<vmem>>, vector<8x256xf32>,
    %c255_i32_176 = arith.constant 255 : i32
    %223 = tpu.dynamic_rotate %217 by %c255_i32_176 dim 1 : vector<8x256xf32>, i32 -> vector<8x256xf32>
    %224 = vector.broadcast %24 : vector<1x256xf32> to vector<8x256xf32>
    %225 = arith.mulf %223, %224 : vector<8x256xf32>
    %c16_177 = arith.constant 16 : index
    %c256_178 = arith.constant 256 : index
    %226 = vector.load %arg8[%c16_177, %c256_178] : memref<72x512xf32, #tpu.memory_space<vmem>>, vector<8x256xf32>
    tpu.vector_store %arg8[%c16_177, %c256_178], %225 {strides = array<i32>} : memref<72x512xf32, #tpu.memory_space<vmem>>, vector<8x256xf32>,
    %c1_i32_179 = arith.constant 1 : i32
    %227 = tpu.dynamic_rotate %215 by %c1_i32_179 dim 1 : vector<8x256xf32>, i32 -> vector<8x256xf32>
    %228 = vector.broadcast %20 : vector<1x256xf32> to vector<8x256xf32>
    %229 = arith.mulf %227, %228 : vector<8x256xf32>
    %c24_180 = arith.constant 24 : index
    %c256_181 = arith.constant 256 : index
    %230 = vector.load %arg8[%c24_180, %c256_181] : memref<72x512xf32, #tpu.memory_space<vmem>>, vector<8x256xf32>
    tpu.vector_store %arg8[%c24_180, %c256_181], %229 {strides = array<i32>} : memref<72x512xf32, #tpu.memory_space<vmem>>, vector<8x256xf32>,
    %c32_182 = arith.constant 32 : index
    %c256_183 = arith.constant 256 : index
    %231 = vector.load %arg8[%c32_182, %c256_183] : memref<72x512xf32, #tpu.memory_space<vmem>>, vector<8x256xf32>
    tpu.vector_store %arg8[%c32_182, %c256_183], %215 {strides = array<i32>} : memref<72x512xf32, #tpu.memory_space<vmem>>, vector<8x256xf32>,
    %c255_i32_184 = arith.constant 255 : i32
    %232 = tpu.dynamic_rotate %215 by %c255_i32_184 dim 1 : vector<8x256xf32>, i32 -> vector<8x256xf32>
    %233 = vector.broadcast %24 : vector<1x256xf32> to vector<8x256xf32>
    %234 = arith.mulf %232, %233 : vector<8x256xf32>
    %c40_185 = arith.constant 40 : index
    %c256_186 = arith.constant 256 : index
    %235 = vector.load %arg8[%c40_185, %c256_186] : memref<72x512xf32, #tpu.memory_space<vmem>>, vector<8x256xf32>
    tpu.vector_store %arg8[%c40_185, %c256_186], %234 {strides = array<i32>} : memref<72x512xf32, #tpu.memory_space<vmem>>, vector<8x256xf32>,
    %c0_187 = arith.constant 0 : index
    %c656_188 = arith.constant 656 : index
    %236 = vector.load %arg7[%c0_187, %c656_188] : memref<8x1024xf32, #tpu.memory_space<vmem>>, vector<8x256xf32>
    %c1_i32_189 = arith.constant 1 : i32
    %237 = tpu.dynamic_rotate %236 by %c1_i32_189 dim 1 : vector<8x256xf32>, i32 -> vector<8x256xf32>
    %238 = vector.broadcast %20 : vector<1x256xf32> to vector<8x256xf32>
    %239 = arith.mulf %237, %238 : vector<8x256xf32>
    %c48_190 = arith.constant 48 : index
    %c256_191 = arith.constant 256 : index
    %240 = vector.load %arg8[%c48_190, %c256_191] : memref<72x512xf32, #tpu.memory_space<vmem>>, vector<8x256xf32>
    tpu.vector_store %arg8[%c48_190, %c256_191], %239 {strides = array<i32>} : memref<72x512xf32, #tpu.memory_space<vmem>>, vector<8x256xf32>,
    %c56_192 = arith.constant 56 : index
    %c256_193 = arith.constant 256 : index
    %241 = vector.load %arg8[%c56_192, %c256_193] : memref<72x512xf32, #tpu.memory_space<vmem>>, vector<8x256xf32>
    tpu.vector_store %arg8[%c56_192, %c256_193], %236 {strides = array<i32>} : memref<72x512xf32, #tpu.memory_space<vmem>>, vector<8x256xf32>,
    %c255_i32_194 = arith.constant 255 : i32
    %242 = tpu.dynamic_rotate %236 by %c255_i32_194 dim 1 : vector<8x256xf32>, i32 -> vector<8x256xf32>
    %243 = vector.broadcast %24 : vector<1x256xf32> to vector<8x256xf32>
    %244 = arith.mulf %242, %243 : vector<8x256xf32>
    %c64_195 = arith.constant 64 : index
    %c256_196 = arith.constant 256 : index
    %245 = vector.load %arg8[%c64_195, %c256_196] : memref<72x512xf32, #tpu.memory_space<vmem>>, vector<8x256xf32>
    tpu.vector_store %arg8[%c64_195, %c256_196], %244 {strides = array<i32>} : memref<72x512xf32, #tpu.memory_space<vmem>>, vector<8x256xf32>,
    %c0_197 = arith.constant 0 : index
    %c0_198 = arith.constant 0 : index
    %246 = vector.load %arg8[%c0_197, %c0_198] : memref<72x512xf32, #tpu.memory_space<vmem>>, vector<72x512xf32>
    %247 = arith.truncf %246 : vector<72x512xf32> to vector<72x512xbf16>
    %cst_199 = arith.constant dense<0.000000e+00> : vector<8x512xf32>
    %248 = tpu.matmul %41, %247, %cst_199 {dimension_numbers = #tpu.dot_dimension_numbers<[1], [0], [0], [1], [0, 0, 1, 1], [], []>} : vector<8x72xbf16>, vector<72x512xbf16>, vector<8x512xf32> -> vector<8x512xf32>
    %249 = vector.broadcast %43 : vector<8x1xf32> to vector<8x512xf32>
    %250 = arith.addf %248, %249 : vector<8x512xf32>
    %cst_200 = arith.constant 0.000000e+00 : f32
    %251 = vector.broadcast %cst_200 : f32 to vector<8x512xf32>
    %252 = arith.maximumf %250, %251 : vector<8x512xf32>
    %c1_201 = arith.constant 1 : index
    %c0_202 = arith.constant 0 : index
    %c0_203 = arith.constant 0 : index
    %253 = vector.load %arg4[%c1_201, %c0_202, %c0_203] : memref<2x8x72xbf16, #tpu.memory_space<vmem>>, vector<1x8x72xbf16>
    %254 = vector.shape_cast %253 : vector<1x8x72xbf16> to vector<8x72xbf16>
    %c1_204 = arith.constant 1 : index
    %c0_205 = arith.constant 0 : index
    %c0_206 = arith.constant 0 : index
    %255 = vector.load %arg5[%c1_204, %c0_205, %c0_206] : memref<2x8x1xf32, #tpu.memory_space<vmem>>, vector<1x8x1xf32>
    %256 = vector.shape_cast %255 : vector<1x8x1xf32> to vector<8x1xf32>
    %257 = vector.extract_strided_slice %252 {offsets = [0, 0], sizes = [8, 256], strides = [1, 1]} : vector<8x512xf32> to vector<8x256xf32>
    %c0_207 = arith.constant 0 : index
    %c128_208 = arith.constant 128 : index
    %258 = vector.load %arg7[%c0_207, %c128_208] : memref<8x1024xf32, #tpu.memory_space<vmem>>, vector<8x256xf32>
    tpu.vector_store %arg7[%c0_207, %c128_208], %257 {strides = array<i32>} : memref<8x1024xf32, #tpu.memory_space<vmem>>, vector<8x256xf32>,
    %c0_209 = arith.constant 0 : index
    %c112_210 = arith.constant 112 : index
    %259 = vector.load %arg7[%c0_209, %c112_210] : memref<8x1024xf32, #tpu.memory_space<vmem>>, vector<8x256xf32>
    %c1_i32_211 = arith.constant 1 : i32
    %260 = tpu.dynamic_rotate %259 by %c1_i32_211 dim 1 : vector<8x256xf32>, i32 -> vector<8x256xf32>
    %261 = vector.broadcast %20 : vector<1x256xf32> to vector<8x256xf32>
    %262 = arith.mulf %260, %261 : vector<8x256xf32>
    %c0_212 = arith.constant 0 : index
    %c0_213 = arith.constant 0 : index
    %263 = vector.load %arg8[%c0_212, %c0_213] : memref<72x512xf32, #tpu.memory_space<vmem>>, vector<8x256xf32>
    tpu.vector_store %arg8[%c0_212, %c0_213], %262 {strides = array<i32>} : memref<72x512xf32, #tpu.memory_space<vmem>>, vector<8x256xf32>,
    %c8_214 = arith.constant 8 : index
    %c0_215 = arith.constant 0 : index
    %264 = vector.load %arg8[%c8_214, %c0_215] : memref<72x512xf32, #tpu.memory_space<vmem>>, vector<8x256xf32>
    tpu.vector_store %arg8[%c8_214, %c0_215], %259 {strides = array<i32>} : memref<72x512xf32, #tpu.memory_space<vmem>>, vector<8x256xf32>,
    %c255_i32_216 = arith.constant 255 : i32
    %265 = tpu.dynamic_rotate %259 by %c255_i32_216 dim 1 : vector<8x256xf32>, i32 -> vector<8x256xf32>
    %266 = vector.broadcast %24 : vector<1x256xf32> to vector<8x256xf32>
    %267 = arith.mulf %265, %266 : vector<8x256xf32>
    %c16_217 = arith.constant 16 : index
    %c0_218 = arith.constant 0 : index
    %268 = vector.load %arg8[%c16_217, %c0_218] : memref<72x512xf32, #tpu.memory_space<vmem>>, vector<8x256xf32>
    tpu.vector_store %arg8[%c16_217, %c0_218], %267 {strides = array<i32>} : memref<72x512xf32, #tpu.memory_space<vmem>>, vector<8x256xf32>,
    %c1_i32_219 = arith.constant 1 : i32
    %269 = tpu.dynamic_rotate %257 by %c1_i32_219 dim 1 : vector<8x256xf32>, i32 -> vector<8x256xf32>
    %270 = vector.broadcast %20 : vector<1x256xf32> to vector<8x256xf32>
    %271 = arith.mulf %269, %270 : vector<8x256xf32>
    %c24_220 = arith.constant 24 : index
    %c0_221 = arith.constant 0 : index
    %272 = vector.load %arg8[%c24_220, %c0_221] : memref<72x512xf32, #tpu.memory_space<vmem>>, vector<8x256xf32>
    tpu.vector_store %arg8[%c24_220, %c0_221], %271 {strides = array<i32>} : memref<72x512xf32, #tpu.memory_space<vmem>>, vector<8x256xf32>,
    %c32_222 = arith.constant 32 : index
    %c0_223 = arith.constant 0 : index
    %273 = vector.load %arg8[%c32_222, %c0_223] : memref<72x512xf32, #tpu.memory_space<vmem>>, vector<8x256xf32>
    tpu.vector_store %arg8[%c32_222, %c0_223], %257 {strides = array<i32>} : memref<72x512xf32, #tpu.memory_space<vmem>>, vector<8x256xf32>,
    %c255_i32_224 = arith.constant 255 : i32
    %274 = tpu.dynamic_rotate %257 by %c255_i32_224 dim 1 : vector<8x256xf32>, i32 -> vector<8x256xf32>
    %275 = vector.broadcast %24 : vector<1x256xf32> to vector<8x256xf32>
    %276 = arith.mulf %274, %275 : vector<8x256xf32>
    %c40_225 = arith.constant 40 : index
    %c0_226 = arith.constant 0 : index
    %277 = vector.load %arg8[%c40_225, %c0_226] : memref<72x512xf32, #tpu.memory_space<vmem>>, vector<8x256xf32>
    tpu.vector_store %arg8[%c40_225, %c0_226], %276 {strides = array<i32>} : memref<72x512xf32, #tpu.memory_space<vmem>>, vector<8x256xf32>,
    %c0_227 = arith.constant 0 : index
    %c144_228 = arith.constant 144 : index
    %278 = vector.load %arg7[%c0_227, %c144_228] : memref<8x1024xf32, #tpu.memory_space<vmem>>, vector<8x256xf32>
    %c1_i32_229 = arith.constant 1 : i32
    %279 = tpu.dynamic_rotate %278 by %c1_i32_229 dim 1 : vector<8x256xf32>, i32 -> vector<8x256xf32>
    %280 = vector.broadcast %20 : vector<1x256xf32> to vector<8x256xf32>
    %281 = arith.mulf %279, %280 : vector<8x256xf32>
    %c48_230 = arith.constant 48 : index
    %c0_231 = arith.constant 0 : index
    %282 = vector.load %arg8[%c48_230, %c0_231] : memref<72x512xf32, #tpu.memory_space<vmem>>, vector<8x256xf32>
    tpu.vector_store %arg8[%c48_230, %c0_231], %281 {strides = array<i32>} : memref<72x512xf32, #tpu.memory_space<vmem>>, vector<8x256xf32>,
    %c56_232 = arith.constant 56 : index
    %c0_233 = arith.constant 0 : index
    %283 = vector.load %arg8[%c56_232, %c0_233] : memref<72x512xf32, #tpu.memory_space<vmem>>, vector<8x256xf32>
    tpu.vector_store %arg8[%c56_232, %c0_233], %278 {strides = array<i32>} : memref<72x512xf32, #tpu.memory_space<vmem>>, vector<8x256xf32>,
    %c255_i32_234 = arith.constant 255 : i32
    %284 = tpu.dynamic_rotate %278 by %c255_i32_234 dim 1 : vector<8x256xf32>, i32 -> vector<8x256xf32>
    %285 = vector.broadcast %24 : vector<1x256xf32> to vector<8x256xf32>
    %286 = arith.mulf %284, %285 : vector<8x256xf32>
    %c64_235 = arith.constant 64 : index
    %c0_236 = arith.constant 0 : index
    %287 = vector.load %arg8[%c64_235, %c0_236] : memref<72x512xf32, #tpu.memory_space<vmem>>, vector<8x256xf32>
    tpu.vector_store %arg8[%c64_235, %c0_236], %286 {strides = array<i32>} : memref<72x512xf32, #tpu.memory_space<vmem>>, vector<8x256xf32>,
    %288 = vector.extract_strided_slice %252 {offsets = [0, 256], sizes = [8, 256], strides = [1, 1]} : vector<8x512xf32> to vector<8x256xf32>
    %c0_237 = arith.constant 0 : index
    %c640_238 = arith.constant 640 : index
    %289 = vector.load %arg7[%c0_237, %c640_238] : memref<8x1024xf32, #tpu.memory_space<vmem>>, vector<8x256xf32>
    tpu.vector_store %arg7[%c0_237, %c640_238], %288 {strides = array<i32>} : memref<8x1024xf32, #tpu.memory_space<vmem>>, vector<8x256xf32>,
    %c0_239 = arith.constant 0 : index
    %c624_240 = arith.constant 624 : index
    %290 = vector.load %arg7[%c0_239, %c624_240] : memref<8x1024xf32, #tpu.memory_space<vmem>>, vector<8x256xf32>
    %c1_i32_241 = arith.constant 1 : i32
    %291 = tpu.dynamic_rotate %290 by %c1_i32_241 dim 1 : vector<8x256xf32>, i32 -> vector<8x256xf32>
    %292 = vector.broadcast %20 : vector<1x256xf32> to vector<8x256xf32>
    %293 = arith.mulf %291, %292 : vector<8x256xf32>
    %c0_242 = arith.constant 0 : index
    %c256_243 = arith.constant 256 : index
    %294 = vector.load %arg8[%c0_242, %c256_243] : memref<72x512xf32, #tpu.memory_space<vmem>>, vector<8x256xf32>
    tpu.vector_store %arg8[%c0_242, %c256_243], %293 {strides = array<i32>} : memref<72x512xf32, #tpu.memory_space<vmem>>, vector<8x256xf32>,
    %c8_244 = arith.constant 8 : index
    %c256_245 = arith.constant 256 : index
    %295 = vector.load %arg8[%c8_244, %c256_245] : memref<72x512xf32, #tpu.memory_space<vmem>>, vector<8x256xf32>
    tpu.vector_store %arg8[%c8_244, %c256_245], %290 {strides = array<i32>} : memref<72x512xf32, #tpu.memory_space<vmem>>, vector<8x256xf32>,
    %c255_i32_246 = arith.constant 255 : i32
    %296 = tpu.dynamic_rotate %290 by %c255_i32_246 dim 1 : vector<8x256xf32>, i32 -> vector<8x256xf32>
    %297 = vector.broadcast %24 : vector<1x256xf32> to vector<8x256xf32>
    %298 = arith.mulf %296, %297 : vector<8x256xf32>
    %c16_247 = arith.constant 16 : index
    %c256_248 = arith.constant 256 : index
    %299 = vector.load %arg8[%c16_247, %c256_248] : memref<72x512xf32, #tpu.memory_space<vmem>>, vector<8x256xf32>
    tpu.vector_store %arg8[%c16_247, %c256_248], %298 {strides = array<i32>} : memref<72x512xf32, #tpu.memory_space<vmem>>, vector<8x256xf32>,
    %c1_i32_249 = arith.constant 1 : i32
    %300 = tpu.dynamic_rotate %288 by %c1_i32_249 dim 1 : vector<8x256xf32>, i32 -> vector<8x256xf32>
    %301 = vector.broadcast %20 : vector<1x256xf32> to vector<8x256xf32>
    %302 = arith.mulf %300, %301 : vector<8x256xf32>
    %c24_250 = arith.constant 24 : index
    %c256_251 = arith.constant 256 : index
    %303 = vector.load %arg8[%c24_250, %c256_251] : memref<72x512xf32, #tpu.memory_space<vmem>>, vector<8x256xf32>
    tpu.vector_store %arg8[%c24_250, %c256_251], %302 {strides = array<i32>} : memref<72x512xf32, #tpu.memory_space<vmem>>, vector<8x256xf32>,
    %c32_252 = arith.constant 32 : index
    %c256_253 = arith.constant 256 : index
    %304 = vector.load %arg8[%c32_252, %c256_253] : memref<72x512xf32, #tpu.memory_space<vmem>>, vector<8x256xf32>
    tpu.vector_store %arg8[%c32_252, %c256_253], %288 {strides = array<i32>} : memref<72x512xf32, #tpu.memory_space<vmem>>, vector<8x256xf32>,
    %c255_i32_254 = arith.constant 255 : i32
    %305 = tpu.dynamic_rotate %288 by %c255_i32_254 dim 1 : vector<8x256xf32>, i32 -> vector<8x256xf32>
    %306 = vector.broadcast %24 : vector<1x256xf32> to vector<8x256xf32>
    %307 = arith.mulf %305, %306 : vector<8x256xf32>
    %c40_255 = arith.constant 40 : index
    %c256_256 = arith.constant 256 : index
    %308 = vector.load %arg8[%c40_255, %c256_256] : memref<72x512xf32, #tpu.memory_space<vmem>>, vector<8x256xf32>
    tpu.vector_store %arg8[%c40_255, %c256_256], %307 {strides = array<i32>} : memref<72x512xf32, #tpu.memory_space<vmem>>, vector<8x256xf32>,
    %c0_257 = arith.constant 0 : index
    %c656_258 = arith.constant 656 : index
    %309 = vector.load %arg7[%c0_257, %c656_258] : memref<8x1024xf32, #tpu.memory_space<vmem>>, vector<8x256xf32>
    %c1_i32_259 = arith.constant 1 : i32
    %310 = tpu.dynamic_rotate %309 by %c1_i32_259 dim 1 : vector<8x256xf32>, i32 -> vector<8x256xf32>
    %311 = vector.broadcast %20 : vector<1x256xf32> to vector<8x256xf32>
    %312 = arith.mulf %310, %311 : vector<8x256xf32>
    %c48_260 = arith.constant 48 : index
    %c256_261 = arith.constant 256 : index
    %313 = vector.load %arg8[%c48_260, %c256_261] : memref<72x512xf32, #tpu.memory_space<vmem>>, vector<8x256xf32>
    tpu.vector_store %arg8[%c48_260, %c256_261], %312 {strides = array<i32>} : memref<72x512xf32, #tpu.memory_space<vmem>>, vector<8x256xf32>,
    %c56_262 = arith.constant 56 : index
    %c256_263 = arith.constant 256 : index
    %314 = vector.load %arg8[%c56_262, %c256_263] : memref<72x512xf32, #tpu.memory_space<vmem>>, vector<8x256xf32>
    tpu.vector_store %arg8[%c56_262, %c256_263], %309 {strides = array<i32>} : memref<72x512xf32, #tpu.memory_space<vmem>>, vector<8x256xf32>,
    %c255_i32_264 = arith.constant 255 : i32
    %315 = tpu.dynamic_rotate %309 by %c255_i32_264 dim 1 : vector<8x256xf32>, i32 -> vector<8x256xf32>
    %316 = vector.broadcast %24 : vector<1x256xf32> to vector<8x256xf32>
    %317 = arith.mulf %315, %316 : vector<8x256xf32>
    %c64_265 = arith.constant 64 : index
    %c256_266 = arith.constant 256 : index
    %318 = vector.load %arg8[%c64_265, %c256_266] : memref<72x512xf32, #tpu.memory_space<vmem>>, vector<8x256xf32>
    tpu.vector_store %arg8[%c64_265, %c256_266], %317 {strides = array<i32>} : memref<72x512xf32, #tpu.memory_space<vmem>>, vector<8x256xf32>,
    %c0_267 = arith.constant 0 : index
    %c0_268 = arith.constant 0 : index
    %319 = vector.load %arg8[%c0_267, %c0_268] : memref<72x512xf32, #tpu.memory_space<vmem>>, vector<72x512xf32>
    %320 = arith.truncf %319 : vector<72x512xf32> to vector<72x512xbf16>
    %cst_269 = arith.constant dense<0.000000e+00> : vector<8x512xf32>
    %321 = tpu.matmul %254, %320, %cst_269 {dimension_numbers = #tpu.dot_dimension_numbers<[1], [0], [0], [1], [0, 0, 1, 1], [], []>} : vector<8x72xbf16>, vector<72x512xbf16>, vector<8x512xf32> -> vector<8x512xf32>
    %322 = vector.broadcast %256 : vector<8x1xf32> to vector<8x512xf32>
    %323 = arith.addf %321, %322 : vector<8x512xf32>
    %cst_270 = arith.constant 0.000000e+00 : f32
    %324 = vector.broadcast %cst_270 : f32 to vector<8x512xf32>
    %325 = arith.maximumf %323, %324 : vector<8x512xf32>
    %326 = arith.addf %252, %325 : vector<8x512xf32>
    %327 = vector.extract_strided_slice %326 {offsets = [0, 0], sizes = [8, 256], strides = [1, 1]} : vector<8x512xf32> to vector<8x256xf32>
    %c0_271 = arith.constant 0 : index
    %c128_272 = arith.constant 128 : index
    %328 = vector.load %arg7[%c0_271, %c128_272] : memref<8x1024xf32, #tpu.memory_space<vmem>>, vector<8x256xf32>
    tpu.vector_store %arg7[%c0_271, %c128_272], %327 {strides = array<i32>} : memref<8x1024xf32, #tpu.memory_space<vmem>>, vector<8x256xf32>,
    %c0_273 = arith.constant 0 : index
    %c112_274 = arith.constant 112 : index
    %329 = vector.load %arg7[%c0_273, %c112_274] : memref<8x1024xf32, #tpu.memory_space<vmem>>, vector<8x256xf32>
    %c1_i32_275 = arith.constant 1 : i32
    %330 = tpu.dynamic_rotate %329 by %c1_i32_275 dim 1 : vector<8x256xf32>, i32 -> vector<8x256xf32>
    %331 = vector.broadcast %20 : vector<1x256xf32> to vector<8x256xf32>
    %332 = arith.mulf %330, %331 : vector<8x256xf32>
    %c0_276 = arith.constant 0 : index
    %c0_277 = arith.constant 0 : index
    %333 = vector.load %arg8[%c0_276, %c0_277] : memref<72x512xf32, #tpu.memory_space<vmem>>, vector<8x256xf32>
    tpu.vector_store %arg8[%c0_276, %c0_277], %332 {strides = array<i32>} : memref<72x512xf32, #tpu.memory_space<vmem>>, vector<8x256xf32>,
    %c8_278 = arith.constant 8 : index
    %c0_279 = arith.constant 0 : index
    %334 = vector.load %arg8[%c8_278, %c0_279] : memref<72x512xf32, #tpu.memory_space<vmem>>, vector<8x256xf32>
    tpu.vector_store %arg8[%c8_278, %c0_279], %329 {strides = array<i32>} : memref<72x512xf32, #tpu.memory_space<vmem>>, vector<8x256xf32>,
    %c255_i32_280 = arith.constant 255 : i32
    %335 = tpu.dynamic_rotate %329 by %c255_i32_280 dim 1 : vector<8x256xf32>, i32 -> vector<8x256xf32>
    %336 = vector.broadcast %24 : vector<1x256xf32> to vector<8x256xf32>
    %337 = arith.mulf %335, %336 : vector<8x256xf32>
    %c16_281 = arith.constant 16 : index
    %c0_282 = arith.constant 0 : index
    %338 = vector.load %arg8[%c16_281, %c0_282] : memref<72x512xf32, #tpu.memory_space<vmem>>, vector<8x256xf32>
    tpu.vector_store %arg8[%c16_281, %c0_282], %337 {strides = array<i32>} : memref<72x512xf32, #tpu.memory_space<vmem>>, vector<8x256xf32>,
    %c1_i32_283 = arith.constant 1 : i32
    %339 = tpu.dynamic_rotate %327 by %c1_i32_283 dim 1 : vector<8x256xf32>, i32 -> vector<8x256xf32>
    %340 = vector.broadcast %20 : vector<1x256xf32> to vector<8x256xf32>
    %341 = arith.mulf %339, %340 : vector<8x256xf32>
    %c24_284 = arith.constant 24 : index
    %c0_285 = arith.constant 0 : index
    %342 = vector.load %arg8[%c24_284, %c0_285] : memref<72x512xf32, #tpu.memory_space<vmem>>, vector<8x256xf32>
    tpu.vector_store %arg8[%c24_284, %c0_285], %341 {strides = array<i32>} : memref<72x512xf32, #tpu.memory_space<vmem>>, vector<8x256xf32>,
    %c32_286 = arith.constant 32 : index
    %c0_287 = arith.constant 0 : index
    %343 = vector.load %arg8[%c32_286, %c0_287] : memref<72x512xf32, #tpu.memory_space<vmem>>, vector<8x256xf32>
    tpu.vector_store %arg8[%c32_286, %c0_287], %327 {strides = array<i32>} : memref<72x512xf32, #tpu.memory_space<vmem>>, vector<8x256xf32>,
    %c255_i32_288 = arith.constant 255 : i32
    %344 = tpu.dynamic_rotate %327 by %c255_i32_288 dim 1 : vector<8x256xf32>, i32 -> vector<8x256xf32>
    %345 = vector.broadcast %24 : vector<1x256xf32> to vector<8x256xf32>
    %346 = arith.mulf %344, %345 : vector<8x256xf32>
    %c40_289 = arith.constant 40 : index
    %c0_290 = arith.constant 0 : index
    %347 = vector.load %arg8[%c40_289, %c0_290] : memref<72x512xf32, #tpu.memory_space<vmem>>, vector<8x256xf32>
    tpu.vector_store %arg8[%c40_289, %c0_290], %346 {strides = array<i32>} : memref<72x512xf32, #tpu.memory_space<vmem>>, vector<8x256xf32>,
    %c0_291 = arith.constant 0 : index
    %c144_292 = arith.constant 144 : index
    %348 = vector.load %arg7[%c0_291, %c144_292] : memref<8x1024xf32, #tpu.memory_space<vmem>>, vector<8x256xf32>
    %c1_i32_293 = arith.constant 1 : i32
    %349 = tpu.dynamic_rotate %348 by %c1_i32_293 dim 1 : vector<8x256xf32>, i32 -> vector<8x256xf32>
    %350 = vector.broadcast %20 : vector<1x256xf32> to vector<8x256xf32>
    %351 = arith.mulf %349, %350 : vector<8x256xf32>
    %c48_294 = arith.constant 48 : index
    %c0_295 = arith.constant 0 : index
    %352 = vector.load %arg8[%c48_294, %c0_295] : memref<72x512xf32, #tpu.memory_space<vmem>>, vector<8x256xf32>
    tpu.vector_store %arg8[%c48_294, %c0_295], %351 {strides = array<i32>} : memref<72x512xf32, #tpu.memory_space<vmem>>, vector<8x256xf32>,
    %c56_296 = arith.constant 56 : index
    %c0_297 = arith.constant 0 : index
    %353 = vector.load %arg8[%c56_296, %c0_297] : memref<72x512xf32, #tpu.memory_space<vmem>>, vector<8x256xf32>
    tpu.vector_store %arg8[%c56_296, %c0_297], %348 {strides = array<i32>} : memref<72x512xf32, #tpu.memory_space<vmem>>, vector<8x256xf32>,
    %c255_i32_298 = arith.constant 255 : i32
    %354 = tpu.dynamic_rotate %348 by %c255_i32_298 dim 1 : vector<8x256xf32>, i32 -> vector<8x256xf32>
    %355 = vector.broadcast %24 : vector<1x256xf32> to vector<8x256xf32>
    %356 = arith.mulf %354, %355 : vector<8x256xf32>
    %c64_299 = arith.constant 64 : index
    %c0_300 = arith.constant 0 : index
    %357 = vector.load %arg8[%c64_299, %c0_300] : memref<72x512xf32, #tpu.memory_space<vmem>>, vector<8x256xf32>
    tpu.vector_store %arg8[%c64_299, %c0_300], %356 {strides = array<i32>} : memref<72x512xf32, #tpu.memory_space<vmem>>, vector<8x256xf32>,
    %358 = vector.extract_strided_slice %326 {offsets = [0, 256], sizes = [8, 256], strides = [1, 1]} : vector<8x512xf32> to vector<8x256xf32>
    %c0_301 = arith.constant 0 : index
    %c640_302 = arith.constant 640 : index
    %359 = vector.load %arg7[%c0_301, %c640_302] : memref<8x1024xf32, #tpu.memory_space<vmem>>, vector<8x256xf32>
    tpu.vector_store %arg7[%c0_301, %c640_302], %358 {strides = array<i32>} : memref<8x1024xf32, #tpu.memory_space<vmem>>, vector<8x256xf32>,
    %c0_303 = arith.constant 0 : index
    %c624_304 = arith.constant 624 : index
    %360 = vector.load %arg7[%c0_303, %c624_304] : memref<8x1024xf32, #tpu.memory_space<vmem>>, vector<8x256xf32>
    %c1_i32_305 = arith.constant 1 : i32
    %361 = tpu.dynamic_rotate %360 by %c1_i32_305 dim 1 : vector<8x256xf32>, i32 -> vector<8x256xf32>
    %362 = vector.broadcast %20 : vector<1x256xf32> to vector<8x256xf32>
    %363 = arith.mulf %361, %362 : vector<8x256xf32>
    %c0_306 = arith.constant 0 : index
    %c256_307 = arith.constant 256 : index
    %364 = vector.load %arg8[%c0_306, %c256_307] : memref<72x512xf32, #tpu.memory_space<vmem>>, vector<8x256xf32>
    tpu.vector_store %arg8[%c0_306, %c256_307], %363 {strides = array<i32>} : memref<72x512xf32, #tpu.memory_space<vmem>>, vector<8x256xf32>,
    %c8_308 = arith.constant 8 : index
    %c256_309 = arith.constant 256 : index
    %365 = vector.load %arg8[%c8_308, %c256_309] : memref<72x512xf32, #tpu.memory_space<vmem>>, vector<8x256xf32>
    tpu.vector_store %arg8[%c8_308, %c256_309], %360 {strides = array<i32>} : memref<72x512xf32, #tpu.memory_space<vmem>>, vector<8x256xf32>,
    %c255_i32_310 = arith.constant 255 : i32
    %366 = tpu.dynamic_rotate %360 by %c255_i32_310 dim 1 : vector<8x256xf32>, i32 -> vector<8x256xf32>
    %367 = vector.broadcast %24 : vector<1x256xf32> to vector<8x256xf32>
    %368 = arith.mulf %366, %367 : vector<8x256xf32>
    %c16_311 = arith.constant 16 : index
    %c256_312 = arith.constant 256 : index
    %369 = vector.load %arg8[%c16_311, %c256_312] : memref<72x512xf32, #tpu.memory_space<vmem>>, vector<8x256xf32>
    tpu.vector_store %arg8[%c16_311, %c256_312], %368 {strides = array<i32>} : memref<72x512xf32, #tpu.memory_space<vmem>>, vector<8x256xf32>,
    %c1_i32_313 = arith.constant 1 : i32
    %370 = tpu.dynamic_rotate %358 by %c1_i32_313 dim 1 : vector<8x256xf32>, i32 -> vector<8x256xf32>
    %371 = vector.broadcast %20 : vector<1x256xf32> to vector<8x256xf32>
    %372 = arith.mulf %370, %371 : vector<8x256xf32>
    %c24_314 = arith.constant 24 : index
    %c256_315 = arith.constant 256 : index
    %373 = vector.load %arg8[%c24_314, %c256_315] : memref<72x512xf32, #tpu.memory_space<vmem>>, vector<8x256xf32>
    tpu.vector_store %arg8[%c24_314, %c256_315], %372 {strides = array<i32>} : memref<72x512xf32, #tpu.memory_space<vmem>>, vector<8x256xf32>,
    %c32_316 = arith.constant 32 : index
    %c256_317 = arith.constant 256 : index
    %374 = vector.load %arg8[%c32_316, %c256_317] : memref<72x512xf32, #tpu.memory_space<vmem>>, vector<8x256xf32>
    tpu.vector_store %arg8[%c32_316, %c256_317], %358 {strides = array<i32>} : memref<72x512xf32, #tpu.memory_space<vmem>>, vector<8x256xf32>,
    %c255_i32_318 = arith.constant 255 : i32
    %375 = tpu.dynamic_rotate %358 by %c255_i32_318 dim 1 : vector<8x256xf32>, i32 -> vector<8x256xf32>
    %376 = vector.broadcast %24 : vector<1x256xf32> to vector<8x256xf32>
    %377 = arith.mulf %375, %376 : vector<8x256xf32>
    %c40_319 = arith.constant 40 : index
    %c256_320 = arith.constant 256 : index
    %378 = vector.load %arg8[%c40_319, %c256_320] : memref<72x512xf32, #tpu.memory_space<vmem>>, vector<8x256xf32>
    tpu.vector_store %arg8[%c40_319, %c256_320], %377 {strides = array<i32>} : memref<72x512xf32, #tpu.memory_space<vmem>>, vector<8x256xf32>,
    %c0_321 = arith.constant 0 : index
    %c656_322 = arith.constant 656 : index
    %379 = vector.load %arg7[%c0_321, %c656_322] : memref<8x1024xf32, #tpu.memory_space<vmem>>, vector<8x256xf32>
    %c1_i32_323 = arith.constant 1 : i32
    %380 = tpu.dynamic_rotate %379 by %c1_i32_323 dim 1 : vector<8x256xf32>, i32 -> vector<8x256xf32>
    %381 = vector.broadcast %20 : vector<1x256xf32> to vector<8x256xf32>
    %382 = arith.mulf %380, %381 : vector<8x256xf32>
    %c48_324 = arith.constant 48 : index
    %c256_325 = arith.constant 256 : index
    %383 = vector.load %arg8[%c48_324, %c256_325] : memref<72x512xf32, #tpu.memory_space<vmem>>, vector<8x256xf32>
    tpu.vector_store %arg8[%c48_324, %c256_325], %382 {strides = array<i32>} : memref<72x512xf32, #tpu.memory_space<vmem>>, vector<8x256xf32>,
    %c56_326 = arith.constant 56 : index
    %c256_327 = arith.constant 256 : index
    %384 = vector.load %arg8[%c56_326, %c256_327] : memref<72x512xf32, #tpu.memory_space<vmem>>, vector<8x256xf32>
    tpu.vector_store %arg8[%c56_326, %c256_327], %379 {strides = array<i32>} : memref<72x512xf32, #tpu.memory_space<vmem>>, vector<8x256xf32>,
    %c255_i32_328 = arith.constant 255 : i32
    %385 = tpu.dynamic_rotate %379 by %c255_i32_328 dim 1 : vector<8x256xf32>, i32 -> vector<8x256xf32>
    %386 = vector.broadcast %24 : vector<1x256xf32> to vector<8x256xf32>
    %387 = arith.mulf %385, %386 : vector<8x256xf32>
    %c64_329 = arith.constant 64 : index
    %c256_330 = arith.constant 256 : index
    %388 = vector.load %arg8[%c64_329, %c256_330] : memref<72x512xf32, #tpu.memory_space<vmem>>, vector<8x256xf32>
    tpu.vector_store %arg8[%c64_329, %c256_330], %387 {strides = array<i32>} : memref<72x512xf32, #tpu.memory_space<vmem>>, vector<8x256xf32>,
    %c0_331 = arith.constant 0 : index
    %c0_332 = arith.constant 0 : index
    %389 = vector.load %arg8[%c0_331, %c0_332] : memref<72x512xf32, #tpu.memory_space<vmem>>, vector<72x512xf32>
    %390 = arith.truncf %389 : vector<72x512xf32> to vector<72x512xbf16>
    %cst_333 = arith.constant dense<0.000000e+00> : vector<8x512xf32>
    %391 = tpu.matmul %254, %390, %cst_333 {dimension_numbers = #tpu.dot_dimension_numbers<[1], [0], [0], [1], [0, 0, 1, 1], [], []>} : vector<8x72xbf16>, vector<72x512xbf16>, vector<8x512xf32> -> vector<8x512xf32>
    %392 = vector.broadcast %256 : vector<8x1xf32> to vector<8x512xf32>
    %393 = arith.addf %391, %392 : vector<8x512xf32>
    %cst_334 = arith.constant 0.000000e+00 : f32
    %394 = vector.broadcast %cst_334 : f32 to vector<8x512xf32>
    %395 = arith.maximumf %393, %394 : vector<8x512xf32>
    %396 = arith.addf %252, %395 : vector<8x512xf32>
    %397 = vector.extract_strided_slice %396 {offsets = [0, 0], sizes = [8, 256], strides = [1, 1]} : vector<8x512xf32> to vector<8x256xf32>
    %c0_335 = arith.constant 0 : index
    %c128_336 = arith.constant 128 : index
    %398 = vector.load %arg7[%c0_335, %c128_336] : memref<8x1024xf32, #tpu.memory_space<vmem>>, vector<8x256xf32>
    tpu.vector_store %arg7[%c0_335, %c128_336], %397 {strides = array<i32>} : memref<8x1024xf32, #tpu.memory_space<vmem>>, vector<8x256xf32>,
    %c0_337 = arith.constant 0 : index
    %c112_338 = arith.constant 112 : index
    %399 = vector.load %arg7[%c0_337, %c112_338] : memref<8x1024xf32, #tpu.memory_space<vmem>>, vector<8x256xf32>
    %c1_i32_339 = arith.constant 1 : i32
    %400 = tpu.dynamic_rotate %399 by %c1_i32_339 dim 1 : vector<8x256xf32>, i32 -> vector<8x256xf32>
    %401 = vector.broadcast %20 : vector<1x256xf32> to vector<8x256xf32>
    %402 = arith.mulf %400, %401 : vector<8x256xf32>
    %c0_340 = arith.constant 0 : index
    %c0_341 = arith.constant 0 : index
    %403 = vector.load %arg8[%c0_340, %c0_341] : memref<72x512xf32, #tpu.memory_space<vmem>>, vector<8x256xf32>
    tpu.vector_store %arg8[%c0_340, %c0_341], %402 {strides = array<i32>} : memref<72x512xf32, #tpu.memory_space<vmem>>, vector<8x256xf32>,
    %c8_342 = arith.constant 8 : index
    %c0_343 = arith.constant 0 : index
    %404 = vector.load %arg8[%c8_342, %c0_343] : memref<72x512xf32, #tpu.memory_space<vmem>>, vector<8x256xf32>
    tpu.vector_store %arg8[%c8_342, %c0_343], %399 {strides = array<i32>} : memref<72x512xf32, #tpu.memory_space<vmem>>, vector<8x256xf32>,
    %c255_i32_344 = arith.constant 255 : i32
    %405 = tpu.dynamic_rotate %399 by %c255_i32_344 dim 1 : vector<8x256xf32>, i32 -> vector<8x256xf32>
    %406 = vector.broadcast %24 : vector<1x256xf32> to vector<8x256xf32>
    %407 = arith.mulf %405, %406 : vector<8x256xf32>
    %c16_345 = arith.constant 16 : index
    %c0_346 = arith.constant 0 : index
    %408 = vector.load %arg8[%c16_345, %c0_346] : memref<72x512xf32, #tpu.memory_space<vmem>>, vector<8x256xf32>
    tpu.vector_store %arg8[%c16_345, %c0_346], %407 {strides = array<i32>} : memref<72x512xf32, #tpu.memory_space<vmem>>, vector<8x256xf32>,
    %c1_i32_347 = arith.constant 1 : i32
    %409 = tpu.dynamic_rotate %397 by %c1_i32_347 dim 1 : vector<8x256xf32>, i32 -> vector<8x256xf32>
    %410 = vector.broadcast %20 : vector<1x256xf32> to vector<8x256xf32>
    %411 = arith.mulf %409, %410 : vector<8x256xf32>
    %c24_348 = arith.constant 24 : index
    %c0_349 = arith.constant 0 : index
    %412 = vector.load %arg8[%c24_348, %c0_349] : memref<72x512xf32, #tpu.memory_space<vmem>>, vector<8x256xf32>
    tpu.vector_store %arg8[%c24_348, %c0_349], %411 {strides = array<i32>} : memref<72x512xf32, #tpu.memory_space<vmem>>, vector<8x256xf32>,
    %c32_350 = arith.constant 32 : index
    %c0_351 = arith.constant 0 : index
    %413 = vector.load %arg8[%c32_350, %c0_351] : memref<72x512xf32, #tpu.memory_space<vmem>>, vector<8x256xf32>
    tpu.vector_store %arg8[%c32_350, %c0_351], %397 {strides = array<i32>} : memref<72x512xf32, #tpu.memory_space<vmem>>, vector<8x256xf32>,
    %c255_i32_352 = arith.constant 255 : i32
    %414 = tpu.dynamic_rotate %397 by %c255_i32_352 dim 1 : vector<8x256xf32>, i32 -> vector<8x256xf32>
    %415 = vector.broadcast %24 : vector<1x256xf32> to vector<8x256xf32>
    %416 = arith.mulf %414, %415 : vector<8x256xf32>
    %c40_353 = arith.constant 40 : index
    %c0_354 = arith.constant 0 : index
    %417 = vector.load %arg8[%c40_353, %c0_354] : memref<72x512xf32, #tpu.memory_space<vmem>>, vector<8x256xf32>
    tpu.vector_store %arg8[%c40_353, %c0_354], %416 {strides = array<i32>} : memref<72x512xf32, #tpu.memory_space<vmem>>, vector<8x256xf32>,
    %c0_355 = arith.constant 0 : index
    %c144_356 = arith.constant 144 : index
    %418 = vector.load %arg7[%c0_355, %c144_356] : memref<8x1024xf32, #tpu.memory_space<vmem>>, vector<8x256xf32>
    %c1_i32_357 = arith.constant 1 : i32
    %419 = tpu.dynamic_rotate %418 by %c1_i32_357 dim 1 : vector<8x256xf32>, i32 -> vector<8x256xf32>
    %420 = vector.broadcast %20 : vector<1x256xf32> to vector<8x256xf32>
    %421 = arith.mulf %419, %420 : vector<8x256xf32>
    %c48_358 = arith.constant 48 : index
    %c0_359 = arith.constant 0 : index
    %422 = vector.load %arg8[%c48_358, %c0_359] : memref<72x512xf32, #tpu.memory_space<vmem>>, vector<8x256xf32>
    tpu.vector_store %arg8[%c48_358, %c0_359], %421 {strides = array<i32>} : memref<72x512xf32, #tpu.memory_space<vmem>>, vector<8x256xf32>,
    %c56_360 = arith.constant 56 : index
    %c0_361 = arith.constant 0 : index
    %423 = vector.load %arg8[%c56_360, %c0_361] : memref<72x512xf32, #tpu.memory_space<vmem>>, vector<8x256xf32>
    tpu.vector_store %arg8[%c56_360, %c0_361], %418 {strides = array<i32>} : memref<72x512xf32, #tpu.memory_space<vmem>>, vector<8x256xf32>,
    %c255_i32_362 = arith.constant 255 : i32
    %424 = tpu.dynamic_rotate %418 by %c255_i32_362 dim 1 : vector<8x256xf32>, i32 -> vector<8x256xf32>
    %425 = vector.broadcast %24 : vector<1x256xf32> to vector<8x256xf32>
    %426 = arith.mulf %424, %425 : vector<8x256xf32>
    %c64_363 = arith.constant 64 : index
    %c0_364 = arith.constant 0 : index
    %427 = vector.load %arg8[%c64_363, %c0_364] : memref<72x512xf32, #tpu.memory_space<vmem>>, vector<8x256xf32>
    tpu.vector_store %arg8[%c64_363, %c0_364], %426 {strides = array<i32>} : memref<72x512xf32, #tpu.memory_space<vmem>>, vector<8x256xf32>,
    %428 = vector.extract_strided_slice %396 {offsets = [0, 256], sizes = [8, 256], strides = [1, 1]} : vector<8x512xf32> to vector<8x256xf32>
    %c0_365 = arith.constant 0 : index
    %c640_366 = arith.constant 640 : index
    %429 = vector.load %arg7[%c0_365, %c640_366] : memref<8x1024xf32, #tpu.memory_space<vmem>>, vector<8x256xf32>
    tpu.vector_store %arg7[%c0_365, %c640_366], %428 {strides = array<i32>} : memref<8x1024xf32, #tpu.memory_space<vmem>>, vector<8x256xf32>,
    %c0_367 = arith.constant 0 : index
    %c624_368 = arith.constant 624 : index
    %430 = vector.load %arg7[%c0_367, %c624_368] : memref<8x1024xf32, #tpu.memory_space<vmem>>, vector<8x256xf32>
    %c1_i32_369 = arith.constant 1 : i32
    %431 = tpu.dynamic_rotate %430 by %c1_i32_369 dim 1 : vector<8x256xf32>, i32 -> vector<8x256xf32>
    %432 = vector.broadcast %20 : vector<1x256xf32> to vector<8x256xf32>
    %433 = arith.mulf %431, %432 : vector<8x256xf32>
    %c0_370 = arith.constant 0 : index
    %c256_371 = arith.constant 256 : index
    %434 = vector.load %arg8[%c0_370, %c256_371] : memref<72x512xf32, #tpu.memory_space<vmem>>, vector<8x256xf32>
    tpu.vector_store %arg8[%c0_370, %c256_371], %433 {strides = array<i32>} : memref<72x512xf32, #tpu.memory_space<vmem>>, vector<8x256xf32>,
    %c8_372 = arith.constant 8 : index
    %c256_373 = arith.constant 256 : index
    %435 = vector.load %arg8[%c8_372, %c256_373] : memref<72x512xf32, #tpu.memory_space<vmem>>, vector<8x256xf32>
    tpu.vector_store %arg8[%c8_372, %c256_373], %430 {strides = array<i32>} : memref<72x512xf32, #tpu.memory_space<vmem>>, vector<8x256xf32>,
    %c255_i32_374 = arith.constant 255 : i32
    %436 = tpu.dynamic_rotate %430 by %c255_i32_374 dim 1 : vector<8x256xf32>, i32 -> vector<8x256xf32>
    %437 = vector.broadcast %24 : vector<1x256xf32> to vector<8x256xf32>
    %438 = arith.mulf %436, %437 : vector<8x256xf32>
    %c16_375 = arith.constant 16 : index
    %c256_376 = arith.constant 256 : index
    %439 = vector.load %arg8[%c16_375, %c256_376] : memref<72x512xf32, #tpu.memory_space<vmem>>, vector<8x256xf32>
    tpu.vector_store %arg8[%c16_375, %c256_376], %438 {strides = array<i32>} : memref<72x512xf32, #tpu.memory_space<vmem>>, vector<8x256xf32>,
    %c1_i32_377 = arith.constant 1 : i32
    %440 = tpu.dynamic_rotate %428 by %c1_i32_377 dim 1 : vector<8x256xf32>, i32 -> vector<8x256xf32>
    %441 = vector.broadcast %20 : vector<1x256xf32> to vector<8x256xf32>
    %442 = arith.mulf %440, %441 : vector<8x256xf32>
    %c24_378 = arith.constant 24 : index
    %c256_379 = arith.constant 256 : index
    %443 = vector.load %arg8[%c24_378, %c256_379] : memref<72x512xf32, #tpu.memory_space<vmem>>, vector<8x256xf32>
    tpu.vector_store %arg8[%c24_378, %c256_379], %442 {strides = array<i32>} : memref<72x512xf32, #tpu.memory_space<vmem>>, vector<8x256xf32>,
    %c32_380 = arith.constant 32 : index
    %c256_381 = arith.constant 256 : index
    %444 = vector.load %arg8[%c32_380, %c256_381] : memref<72x512xf32, #tpu.memory_space<vmem>>, vector<8x256xf32>
    tpu.vector_store %arg8[%c32_380, %c256_381], %428 {strides = array<i32>} : memref<72x512xf32, #tpu.memory_space<vmem>>, vector<8x256xf32>,
    %c255_i32_382 = arith.constant 255 : i32
    %445 = tpu.dynamic_rotate %428 by %c255_i32_382 dim 1 : vector<8x256xf32>, i32 -> vector<8x256xf32>
    %446 = vector.broadcast %24 : vector<1x256xf32> to vector<8x256xf32>
    %447 = arith.mulf %445, %446 : vector<8x256xf32>
    %c40_383 = arith.constant 40 : index
    %c256_384 = arith.constant 256 : index
    %448 = vector.load %arg8[%c40_383, %c256_384] : memref<72x512xf32, #tpu.memory_space<vmem>>, vector<8x256xf32>
    tpu.vector_store %arg8[%c40_383, %c256_384], %447 {strides = array<i32>} : memref<72x512xf32, #tpu.memory_space<vmem>>, vector<8x256xf32>,
    %c0_385 = arith.constant 0 : index
    %c656_386 = arith.constant 656 : index
    %449 = vector.load %arg7[%c0_385, %c656_386] : memref<8x1024xf32, #tpu.memory_space<vmem>>, vector<8x256xf32>
    %c1_i32_387 = arith.constant 1 : i32
    %450 = tpu.dynamic_rotate %449 by %c1_i32_387 dim 1 : vector<8x256xf32>, i32 -> vector<8x256xf32>
    %451 = vector.broadcast %20 : vector<1x256xf32> to vector<8x256xf32>
    %452 = arith.mulf %450, %451 : vector<8x256xf32>
    %c48_388 = arith.constant 48 : index
    %c256_389 = arith.constant 256 : index
    %453 = vector.load %arg8[%c48_388, %c256_389] : memref<72x512xf32, #tpu.memory_space<vmem>>, vector<8x256xf32>
    tpu.vector_store %arg8[%c48_388, %c256_389], %452 {strides = array<i32>} : memref<72x512xf32, #tpu.memory_space<vmem>>, vector<8x256xf32>,
    %c56_390 = arith.constant 56 : index
    %c256_391 = arith.constant 256 : index
    %454 = vector.load %arg8[%c56_390, %c256_391] : memref<72x512xf32, #tpu.memory_space<vmem>>, vector<8x256xf32>
    tpu.vector_store %arg8[%c56_390, %c256_391], %449 {strides = array<i32>} : memref<72x512xf32, #tpu.memory_space<vmem>>, vector<8x256xf32>,
    %c255_i32_392 = arith.constant 255 : i32
    %455 = tpu.dynamic_rotate %449 by %c255_i32_392 dim 1 : vector<8x256xf32>, i32 -> vector<8x256xf32>
    %456 = vector.broadcast %24 : vector<1x256xf32> to vector<8x256xf32>
    %457 = arith.mulf %455, %456 : vector<8x256xf32>
    %c64_393 = arith.constant 64 : index
    %c256_394 = arith.constant 256 : index
    %458 = vector.load %arg8[%c64_393, %c256_394] : memref<72x512xf32, #tpu.memory_space<vmem>>, vector<8x256xf32>
    tpu.vector_store %arg8[%c64_393, %c256_394], %457 {strides = array<i32>} : memref<72x512xf32, #tpu.memory_space<vmem>>, vector<8x256xf32>,
    %c0_395 = arith.constant 0 : index
    %c0_396 = arith.constant 0 : index
    %459 = vector.load %arg8[%c0_395, %c0_396] : memref<72x512xf32, #tpu.memory_space<vmem>>, vector<72x512xf32>
    %460 = arith.truncf %459 : vector<72x512xf32> to vector<72x512xbf16>
    %cst_397 = arith.constant dense<0.000000e+00> : vector<8x512xf32>
    %461 = tpu.matmul %254, %460, %cst_397 {dimension_numbers = #tpu.dot_dimension_numbers<[1], [0], [0], [1], [0, 0, 1, 1], [], []>} : vector<8x72xbf16>, vector<72x512xbf16>, vector<8x512xf32> -> vector<8x512xf32>
    %462 = vector.broadcast %256 : vector<8x1xf32> to vector<8x512xf32>
    %463 = arith.addf %461, %462 : vector<8x512xf32>
    %cst_398 = arith.constant 0.000000e+00 : f32
    %464 = vector.broadcast %cst_398 : f32 to vector<8x512xf32>
    %465 = arith.maximumf %463, %464 : vector<8x512xf32>
    %466 = arith.addf %39, %465 : vector<8x512xf32>
    %467 = vector.extract_strided_slice %466 {offsets = [0, 0], sizes = [8, 256], strides = [1, 1]} : vector<8x512xf32> to vector<8x256xf32>
    %c0_399 = arith.constant 0 : index
    %c0_400 = arith.constant 0 : index
    %c0_401 = arith.constant 0 : index
    %468 = vector.load %arg6[%c0_399, %c0_400, %c0_401] : memref<2x8x256xf32, #tpu.memory_space<vmem>>, vector<1x8x256xf32>
    %469 = vector.shape_cast %468 : vector<1x8x256xf32> to vector<8x256xf32>
    %470 = vector.shape_cast %467 : vector<8x256xf32> to vector<1x8x256xf32>
    tpu.vector_store %arg6[%c0_399, %c0_400, %c0_401], %470 {strides = array<i32>} : memref<2x8x256xf32, #tpu.memory_space<vmem>>, vector<1x8x256xf32>,
    %471 = vector.extract_strided_slice %466 {offsets = [0, 256], sizes = [8, 256], strides = [1, 1]} : vector<8x512xf32> to vector<8x256xf32>
    %c1_402 = arith.constant 1 : index
    %c0_403 = arith.constant 0 : index
    %c0_404 = arith.constant 0 : index
    %472 = vector.load %arg6[%c1_402, %c0_403, %c0_404] : memref<2x8x256xf32, #tpu.memory_space<vmem>>, vector<1x8x256xf32>
    %473 = vector.shape_cast %472 : vector<1x8x256xf32> to vector<8x256xf32>
    %474 = vector.shape_cast %471 : vector<8x256xf32> to vector<1x8x256xf32>
    tpu.vector_store %arg6[%c1_402, %c0_403, %c0_404], %474 {strides = array<i32>} : memref<2x8x256xf32, #tpu.memory_space<vmem>>, vector<1x8x256xf32>,
    return
  }
  func.func @transform_0(%arg0: i32) -> (i32, i32, i32) {
    %c0_i32 = arith.constant 0 : i32
    %c0_i32_0 = arith.constant 0 : i32
    %c0_i32_1 = arith.constant 0 : i32
    return %arg0, %c0_i32, %c0_i32_0 : i32, i32, i32
  }
  func.func @transform_1(%arg0: i32) -> (i32, i32) {
    %c0_i32 = arith.constant 0 : i32
    %c0_i32_0 = arith.constant 0 : i32
    %c0_i32_1 = arith.constant 0 : i32
    return %c0_i32, %c0_i32_0 : i32, i32
  }
  func.func @transform_2(%arg0: i32) -> (i32, i32) {
    %c0_i32 = arith.constant 0 : i32
    %c0_i32_0 = arith.constant 0 : i32
    %c0_i32_1 = arith.constant 0 : i32
    return %c0_i32, %c0_i32_0 : i32, i32
  }
  func.func @transform_3(%arg0: i32) -> (i32, i32, i32) {
    %c0_i32 = arith.constant 0 : i32
    %c0_i32_0 = arith.constant 0 : i32
    %c0_i32_1 = arith.constant 0 : i32
    %c0_i32_2 = arith.constant 0 : i32
    return %c0_i32, %c0_i32_0, %c0_i32_1 : i32, i32, i32
  }
  func.func @transform_4(%arg0: i32) -> (i32, i32, i32) {
    %c0_i32 = arith.constant 0 : i32
    %c0_i32_0 = arith.constant 0 : i32
    %c0_i32_1 = arith.constant 0 : i32
    %c0_i32_2 = arith.constant 0 : i32
    return %c0_i32, %c0_i32_0, %c0_i32_1 : i32, i32, i32
  }
  func.func @transform_5(%arg0: i32) -> (i32, i32, i32) {
    %c0_i32 = arith.constant 0 : i32
    %c0_i32_0 = arith.constant 0 : i32
    %c0_i32_1 = arith.constant 0 : i32
    return %arg0, %c0_i32, %c0_i32_0 : i32, i32, i32
  }
}

</mosaic_0001>

<llo_original>
// kernel: tpu_custom_call.1
$region0: #{tpu_custom_call.1}
  #allocation0 [shape = 'u32[]', space=smem, size = 0x4, offset = 0x4, fixed_abs, tag = 'smem constant byte address 0x4 - core index']
  #allocation1 [shape = 'u32[144,128]{1,0:T(1,128)}', space=vmem, size = 0x12000, scoped, tag = 'internal scratch']
  #allocation2 [shape = 'f32[8,1024]{1,0:T(8,128)}', space=vmem, size = 0x8000, scoped, tag = 'scratch operand']
  #allocation3 [shape = 'f32[72,512]{1,0:T(8,128)}', space=vmem, size = 0x24000, scoped, tag = 'scratch operand']
  %s0 = inlined_call_operand.vmem [shape: bf16[4,4,256], index: 0, kind: input, shape index: {}]
  %s1 = inlined_call_operand.vmem [shape: bf16[8,4], index: 1, kind: input, shape index: {}]
  %s2 = inlined_call_operand.vmem [shape: f32[8,1], index: 2, kind: input, shape index: {}]
  %s3 = inlined_call_operand.vmem [shape: bf16[2,8,72], index: 3, kind: input, shape index: {}]
  %s4 = inlined_call_operand.vmem [shape: f32[2,8,1], index: 4, kind: input, shape index: {}]
  %s5 = inlined_call_operand.hbm [shape: f32[4,8,256], index: 5, kind: output, shape index: {}]
  %s6 = sld [smem:[#allocation0]]
  $region53: #{tpu_custom_call.1} parent=0
    _
  %s8 = ssub.s32 1, %s6
  %s9 = scalar_select 0, %s8, %s6
  $region1: #{tpu_custom_call.1} parent=0
    #allocation4 [shape = 'u8[32768]{0}', space=vmem, size = 0x8000, scoped, tag = 'output window, operand 0']
    #allocation5 [shape = 's32[2]{0}', space=sflag, size = 0x8, scoped, tag = 'scoped memory for tpu_custom_call.1']
    %10 = vsyncpa [#allocation5], 0
    %s11 = scalar_lea.sflag [#allocation5], 1
    %12 = vsyncpa %s11, 0
    loop: start=0, step=1, limit=4
    $region2: #{tpu_custom_call.1} parent=1 // loop_pre_header
      _
    $region3: #{tpu_custom_call.1} parent=1 // loop_header
      %s14 = sphi 0, %s18
      %p15 = scmp.ge.s32.totalorder %s14, 4
      %s24 = sphi 0, %s26
      %s27 = sphi 0, %s24
      %s28 = sphi 0, %s27
      %s44 = sphi 0, %s28
      %s48 = sphi 0, %s48
      %s50 = sphi 0, %s48
      %s51 = sphi 0, %s50
      %s65 = sphi 0, %s51
      %s69 = sphi 0, %s69
      %s71 = sphi 0, %s69
      %s72 = sphi 0, %s71
      %s86 = sphi 0, %s72
      %s90 = sphi 0, %s90
      %s92 = sphi 0, %s90
      %s93 = sphi 0, %s92
      %s107 = sphi 0, %s93
      %s111 = sphi 0, %s111
      %s113 = sphi 0, %s111
      %s114 = sphi 0, %s113
      %s128 = sphi 0, %s114
      %s134 = sphi 0, %s136
      %s137 = sphi 0, %s134
      %s138 = sphi 0, %s137
      %s154 = sphi 0, %s138
    $region4: #{tpu_custom_call.1} parent=1 // loop_header_branch
      %17 = sbr.rel (%p15) target = $region8
    $region5: #{tpu_custom_call.1} parent=1 // loop_body
      %s19 = ssub.s32 %s14, 1
      %s20 = ssub.s32 %s14, 2
      %s21 = sadd.s32 %s14, 1
      %s22 = ssub.s32 %s14, %s21
      %p23 = scmp.eq.s32.totalorder %s22, 0
      %s25 = sadd.s32 %s24, 1
      %s26 = scalar_select %p23, %s24, %s25
      %p29 = pneg %p23
      %p30 = scmp.eq.s32.totalorder %s14, 1
      %p31 = por %p29, %p30
      %p32 = scmp.ne.s32.totalorder %s24, %s27
      %p33 = scmp.eq.s32.totalorder %s14, 0
      %p34 = por %p32, %p33
      %p35 = scmp.ne.s32.totalorder %s24, %s27
      %p36 = scmp.eq.s32.totalorder %s19, 1
      %p37 = por %p35, %p36
      %p38 = scmp.ne.s32.totalorder %s27, %s28
      %p39 = scmp.eq.s32.totalorder %s19, 0
      %p40 = por %p38, %p39
      %p41 = scmp.ne.s32.totalorder %s27, %s28
      %p42 = scmp.eq.s32.totalorder %s20, 1
      %p43 = por %p41, %p42
      %p45 = scmp.ne.s32.totalorder %s28, %s44
      %p46 = scmp.eq.s32.totalorder %s20, 0
      %p47 = por %p45, %p46
      %s49 = sadd.s32 %s48, 1
      %p52 = scmp.eq.s32.totalorder %s14, 1
      %p53 = scmp.ne.s32.totalorder %s48, %s50
      %p54 = scmp.eq.s32.totalorder %s14, 0
      %p55 = por %p53, %p54
      %p56 = scmp.ne.s32.totalorder %s48, %s50
      %p57 = scmp.eq.s32.totalorder %s19, 1
      %p58 = por %p56, %p57
      %p59 = scmp.ne.s32.totalorder %s50, %s51
      %p60 = scmp.eq.s32.totalorder %s19, 0
      %p61 = por %p59, %p60
      %p62 = scmp.ne.s32.totalorder %s50, %s51
      %p63 = scmp.eq.s32.totalorder %s20, 1
      %p64 = por %p62, %p63
      %p66 = scmp.ne.s32.totalorder %s51, %s65
      %p67 = scmp.eq.s32.totalorder %s20, 0
      %p68 = por %p66, %p67
      %s70 = sadd.s32 %s69, 1
      %p73 = scmp.eq.s32.totalorder %s14, 1
      %p74 = scmp.ne.s32.totalorder %s69, %s71
      %p75 = scmp.eq.s32.totalorder %s14, 0
      %p76 = por %p74, %p75
      %p77 = scmp.ne.s32.totalorder %s69, %s71
      %p78 = scmp.eq.s32.totalorder %s19, 1
      %p79 = por %p77, %p78
      %p80 = scmp.ne.s32.totalorder %s71, %s72
      %p81 = scmp.eq.s32.totalorder %s19, 0
      %p82 = por %p80, %p81
      %p83 = scmp.ne.s32.totalorder %s71, %s72
      %p84 = scmp.eq.s32.totalorder %s20, 1
      %p85 = por %p83, %p84
      %p87 = scmp.ne.s32.totalorder %s72, %s86
      %p88 = scmp.eq.s32.totalorder %s20, 0
      %p89 = por %p87, %p88
      %s91 = sadd.s32 %s90, 1
      %p94 = scmp.eq.s32.totalorder %s14, 1
      %p95 = scmp.ne.s32.totalorder %s90, %s92
      %p96 = scmp.eq.s32.totalorder %s14, 0
      %p97 = por %p95, %p96
      %p98 = scmp.ne.s32.totalorder %s90, %s92
      %p99 = scmp.eq.s32.totalorder %s19, 1
      %p100 = por %p98, %p99
      %p101 = scmp.ne.s32.totalorder %s92, %s93
      %p102 = scmp.eq.s32.totalorder %s19, 0
      %p103 = por %p101, %p102
      %p104 = scmp.ne.s32.totalorder %s92, %s93
      %p105 = scmp.eq.s32.totalorder %s20, 1
      %p106 = por %p104, %p105
      %p108 = scmp.ne.s32.totalorder %s93, %s107
      %p109 = scmp.eq.s32.totalorder %s20, 0
      %p110 = por %p108, %p109
      %s112 = sadd.s32 %s111, 1
      %p115 = scmp.eq.s32.totalorder %s14, 1
      %p116 = scmp.ne.s32.totalorder %s111, %s113
      %p117 = scmp.eq.s32.totalorder %s14, 0
      %p118 = por %p116, %p117
      %p119 = scmp.ne.s32.totalorder %s111, %s113
      %p120 = scmp.eq.s32.totalorder %s19, 1
      %p121 = por %p119, %p120
      %p122 = scmp.ne.s32.totalorder %s113, %s114
      %p123 = scmp.eq.s32.totalorder %s19, 0
      %p124 = por %p122, %p123
      %p125 = scmp.ne.s32.totalorder %s113, %s114
      %p126 = scmp.eq.s32.totalorder %s20, 1
      %p127 = por %p125, %p126
      %p129 = scmp.ne.s32.totalorder %s114, %s128
      %p130 = scmp.eq.s32.totalorder %s20, 0
      %p131 = por %p129, %p130
      %s132 = ssub.s32 %s14, %s21
      %p133 = scmp.eq.s32.totalorder %s132, 0
      %s135 = sadd.s32 %s134, 1
      %s136 = scalar_select %p133, %s134, %s135
      %p139 = pneg %p133
      %p140 = scmp.eq.s32.totalorder %s14, 1
      %p141 = por %p139, %p140
      %p142 = scmp.ne.s32.totalorder %s134, %s137
      %p143 = scmp.eq.s32.totalorder %s14, 0
      %p144 = por %p142, %p143
      %p145 = scmp.ne.s32.totalorder %s134, %s137
      %p146 = scmp.eq.s32.totalorder %s19, 1
      %p147 = por %p145, %p146
      %p148 = scmp.ne.s32.totalorder %s137, %s138
      %p149 = scmp.eq.s32.totalorder %s19, 0
      %p150 = por %p148, %p149
      %p151 = scmp.ne.s32.totalorder %s137, %s138
      %p152 = scmp.eq.s32.totalorder %s20, 1
      %p153 = por %p151, %p152
      %p155 = scmp.ne.s32.totalorder %s138, %s154
      %p156 = scmp.eq.s32.totalorder %s20, 0
      %p157 = por %p155, %p156
      %p158 = scmp.le.s32.totalorder 1, %s14
      %p159 = scmp.lt.s32.totalorder %s14, 3
      %p160 = pnand %p158, %p159
      %p161 = pneg %p160
      // Predicated region
      $region9: #{tpu_custom_call.1} parent=5 // pred_check
        _
      $region10: #{tpu_custom_call.1} parent=5 // pred_check_branch
        %163 = sbr.rel (%p160) target = $region12
      $region11: #{tpu_custom_call.1} parent=5 // pred_region
        %s164 = ssub.s32 %s14, 1
        // Predicated region
        $region13: #{tpu_custom_call.1} parent=11 // pred_check
          %p165 = pneg %p61
        $region14: #{tpu_custom_call.1} parent=11 // pred_check_branch
          %167 = sbr.rel (%p165) target = $region16
        $region15: #{tpu_custom_call.1} parent=11 // pred_region
          _
        $region16: #{tpu_custom_call.1} parent=11 // pred_fallthru
          _
        // Predicated region
        $region17: #{tpu_custom_call.1} parent=11 // pred_check
          %p168 = pneg %p82
        $region18: #{tpu_custom_call.1} parent=11 // pred_check_branch
          %170 = sbr.rel (%p168) target = $region20
        $region19: #{tpu_custom_call.1} parent=11 // pred_region
          _
        $region20: #{tpu_custom_call.1} parent=11 // pred_fallthru
          _
        // Predicated region
        $region21: #{tpu_custom_call.1} parent=11 // pred_check
          %p171 = pneg %p103
        $region22: #{tpu_custom_call.1} parent=11 // pred_check_branch
          %173 = sbr.rel (%p171) target = $region24
        $region23: #{tpu_custom_call.1} parent=11 // pred_region
          _
        $region24: #{tpu_custom_call.1} parent=11 // pred_fallthru
          _
        // Predicated region
        $region25: #{tpu_custom_call.1} parent=11 // pred_check
          %p174 = pneg %p124
        $region26: #{tpu_custom_call.1} parent=11 // pred_check_branch
          %176 = sbr.rel (%p174) target = $region28
        $region27: #{tpu_custom_call.1} parent=11 // pred_region
          _
        $region28: #{tpu_custom_call.1} parent=11 // pred_fallthru
          _
      $region12: #{tpu_custom_call.1} parent=5 // pred_fallthru
        _
      %p177 = scmp.lt.s32.totalorder %s14, 2
      // Predicated region
      $region29: #{tpu_custom_call.1} parent=5 // pred_check
        %p178 = pneg %p177
      $region30: #{tpu_custom_call.1} parent=5 // pred_check_branch
        %180 = sbr.rel (%p178) target = $region32
      $region31: #{tpu_custom_call.1} parent=5 // pred_region
        // Predicated region
        $region33: #{tpu_custom_call.1} parent=31 // pred_check
          %p181 = pneg %p34
        $region34: #{tpu_custom_call.1} parent=31 // pred_check_branch
          %183 = sbr.rel (%p181) target = $region36
        $region35: #{tpu_custom_call.1} parent=31 // pred_region
          %s184 = smul.u32 2, %s14
          %p185 = scmp.lt.s32.totalorder %s184, 3
          %s186 = scalar_select %p185, %s184, 3
          %s187 = smul.addr %s186, 2
          %s188 = smul.addr %s187, 2
          %s189 = scalar_lea.vmem %s0, %s188
          %s190 = smul.u32 2, %s14
        $region36: #{tpu_custom_call.1} parent=31 // pred_fallthru
          _
      $region32: #{tpu_custom_call.1} parent=5 // pred_fallthru
        _
      %p191 = scmp.le.s32.totalorder 1, %s14
      %p192 = scmp.lt.s32.totalorder %s14, 3
      %p193 = pnand %p191, %p192
      %p194 = pneg %p193
      // Predicated region
      $region37: #{tpu_custom_call.1} parent=5 // pred_check
        _
      $region38: #{tpu_custom_call.1} parent=5 // pred_check_branch
        %196 = sbr.rel (%p193) target = $region40
      $region39: #{tpu_custom_call.1} parent=5 // pred_region
        %s197 = ssub.s32 %s14, 1
        %s198 = smul.u32 2, %s19
        %p199 = scmp.lt.s32.totalorder %s198, 3
        %s200 = scalar_select %p199, %s198, 3
        %s201 = smul.addr %s200, 2
        %s202 = smul.addr %s201, 2
        %s203 = scalar_lea.vmem %s0, %s202
        %p204 = pneg %p40
        %p205 = pneg %p37
        %p206 = pneg %p61
        %p207 = pneg %p58
        %p208 = pneg %p82
        %p209 = pneg %p79
        %p210 = pneg %p103
        %p211 = pneg %p100
        %p212 = pneg %p124
        %p213 = pneg %p121
        %p214 = pneg %p150
        %p215 = pneg %p147
        %s216 = sand.u32 %s137, 1
        %s217 = scalar_lea.sflag [#allocation5], %s216
        %s218 = sand.u32 %s137, 1
        %s219 = smul.addr %s218, 32
        %s220 = scalar_lea.vmem [#allocation4], %s219
        %s221 = smul.u32 2, %s19
        %p222 = scmp.lt.s32.totalorder %s221, 3
        %s223 = scalar_select %p222, %s221, 3
        %s224 = smul.addr %s223, 2
        %s225 = smul.addr %s224, 2
        %s226 = scalar_lea.vmem %s0, %s225
        %s227 = smul.u32 2, %s19
        %s228 = smul.u32 2, %s19
        %v230 = vlaneseq
        %v231 = vand.u32 %v230, 127
        %v232 = vadd.s32 %v231, 128
        %vm233 = vcmp.lt.s32.totalorder %v231, 0
        %v234 = vsub.s32 0, %v231
        %v235 = vsel %vm233, %v234, %v231
        %v236 = vshrl.u32 %v235, 4
        %v237 = vand.u32 %v235, 15
        %v238 = vsub.s32 0, %v237
        %v239 = vsel %vm233, %v238, %v237
        %vm240 = vcmp.lt.s32.totalorder %v232, 0
        %v241 = vsub.s32 0, %v232
        %v242 = vsel %vm240, %v241, %v232
        %v243 = vshrl.u32 %v242, 4
        %v244 = vand.u32 %v242, 15
        %v245 = vsub.s32 0, %v244
        %v246 = vsel %vm240, %v245, %v244
        %vm247 = vcmp.ne.s32.totalorder %v239, 0
        %vm248 = vcmp.ne.s32.totalorder %v246, 0
        %vm249 = vcmp.lt.s32.totalorder %v239, 0
        %vm250 = vcmp.lt.s32.totalorder %v246, 0
        %vm251 = vmand %vm249, %vm247
        %vm252 = vmand %vm250, %vm248
        %v253 = vadd.s32 %v239, 16
        %v254 = vadd.s32 %v246, 16
        %v255 = vsel %vm251, %v253, %v239
        %v256 = vsel %vm252, %v254, %v246
        %vm257 = vcmp.gt.s32.totalorder %v255, 0
        %vm258 = vcmp.gt.s32.totalorder %v256, 0
        %v259 = vsel %vm257, 1, 0
        %v260 = vsel %vm258, 1, 0
        %v261 = vcvt.s32.f32 %v259
        %v262 = vcvt.s32.f32 %v260
        %vm263 = vcmp.lt.s32.totalorder %v255, 15
        %vm264 = vcmp.lt.s32.totalorder %v256, 15
        %v265 = vsel %vm263, 1, 0
        %v266 = vsel %vm264, 1, 0
        %v267 = vcvt.s32.f32 %v265
        %v268 = vcvt.s32.f32 %v266
        %vm269 = vcmask 1048448
        %270 = vst.msk [vmem:[#allocation2] sm:$0xff] %vm269, 0.0
        %vm271 = vcmask 130048
        %272 = vst.msk [vmem:[#allocation2 + $0x18] sm:$0xff] %vm271, 0.0
        %273 = vst.msk [vmem:[#allocation2 + $0x20] sm:$0xff] %vm269, 0.0
        %274 = vst.msk [vmem:[#allocation2 + $0x38] sm:$0xff] %vm271, 0.0
        %v275 = vld [vmem:[%s226] sm:$0xf]
        %s276 = scalar_lea.vmem %s226, 4
        %v277 = vld [vmem:[%s276] sm:$0xf]
        %v280 = vunpack.c.l.s4 1983009808
        %v281 = vunpack.c.0.s8 %v280
        %v282 = vlaneseq
        %v283 = vshrl.u32 %v282, 7
        %v284 = vsub.s32 %v281, %v283
        %v285 = vrot.slane %v275, %v284
        %v286 = vcombine.high %v285, %v285
        %v289 = vunpack.c.l.s4 1983009808
        %v290 = vunpack.c.0.s8 %v289
        %v291 = vlaneseq
        %v292 = vshrl.u32 %v291, 7
        %v293 = vsub.s32 %v290, %v292
        %v294 = vrot.slane %v277, %v293
        %v295 = vcombine.high %v294, %v294
        %v296 = vld [vmem:[%s1] sm:$0xf]
        %v297 = vld [vmem:[%s2] sm:$0xff]
        %299 = vset.pattern.permute.xlu0 0
        %300 = vperm.xlu0 %299, %v297
        %v301 = vpop.permute.xlu0 %300
        %vm303 = vcmask 31744
        %v305 = vsel %vm303, %v296, 0
        %vm307 = vcmask 1041408
        %v309 = vsel %vm307, %v285, 0
        %v312 = vsel %vm307, %v286, 0
        %v315 = vsel %vm307, %v294, 0
        %v318 = vsel %vm307, %v295, 0
        %320 = vmatprep.subr.bf16.mxu0 %v312
        %321 = vmatpush1.bf16.msra.mxu0 %v309
        %322 = vmatprep.subr.bf16.mxu0 0
        %323 = vmatpush1.bf16.msra.mxu0 0
        %324 = vmatprep.subr.bf16.mxu0 0
        %325 = vmatpush1.bf16.msra.mxu0 0
        %326 = vmatprep.subr.bf16.mxu0 0
        %327 = vmatpush1.bf16.msra.mxu0 0
        %328 = vmatprep.subr.bf16.mxu0 0
        %329 = vmatpush1.bf16.msra.mxu0 0
        %330 = vmatprep.subr.bf16.mxu0 0
        %331 = vmatpush1.bf16.msra.mxu0 0
        %332 = vmatprep.subr.bf16.mxu0 0
        %333 = vmatpush1.bf16.msra.mxu0 0
        %334 = vmatprep.subr.bf16.mxu0 0
        %335 = vmatpush1.bf16.msra.mxu0 0
        %336 = vmatprep.subr.bf16.mxu0 0
        %337 = vmatpush1.bf16.msra.mxu0 0
        %338 = vmatprep.subr.bf16.mxu0 0
        %339 = vmatpush1.bf16.msra.mxu0 0
        %340 = vmatprep.subr.bf16.mxu0 0
        %341 = vmatpush1.bf16.msra.mxu0 0
        %342 = vmatprep.subr.bf16.mxu0 0
        %343 = vmatpush1.bf16.msra.mxu0 0
        %344 = vmatprep.subr.bf16.mxu0 0
        %345 = vmatpush1.bf16.msra.mxu0 0
        %346 = vmatprep.subr.bf16.mxu0 0
        %347 = vmatpush1.bf16.msra.mxu0 0
        %348 = vmatprep.subr.bf16.mxu0 0
        %349 = vmatpush1.bf16.msra.mxu0 0
        %350 = vmatprep.subr.bf16.mxu0 0
        %351 = vmatpush1.bf16.msra.mxu0 0
        %352 = vmatprep.mubr.bf16.mxu0 0
        %353 = vmatmul.mubr.bf16.gmra.mrb[0].mxu0 %v305
        %v354 = vpop.f32.mrb[0].mxu0
        %v355 = vadd.f32 %v301, %v354
        %v356 = vpop.f32.mrb[0].mxu0
        %v357 = vadd.f32 %v301, %v356
        %v358 = vpop.f32.mrb[0].mxu0
        %v359 = vpop.f32.mrb[0].mxu0
        %360 = vdwg.mxu0
        %361 = vmatprep.subr.bf16.mxu0 %v318
        %362 = vmatpush1.bf16.msra.mxu0 %v315
        %363 = vmatprep.subr.bf16.mxu0 0
        %364 = vmatpush1.bf16.msra.mxu0 0
        %365 = vmatprep.subr.bf16.mxu0 0
        %366 = vmatpush1.bf16.msra.mxu0 0
        %367 = vmatprep.subr.bf16.mxu0 0
        %368 = vmatpush1.bf16.msra.mxu0 0
        %369 = vmatprep.subr.bf16.mxu0 0
        %370 = vmatpush1.bf16.msra.mxu0 0
        %371 = vmatprep.subr.bf16.mxu0 0
        %372 = vmatpush1.bf16.msra.mxu0 0
        %373 = vmatprep.subr.bf16.mxu0 0
        %374 = vmatpush1.bf16.msra.mxu0 0
        %375 = vmatprep.subr.bf16.mxu0 0
        %376 = vmatpush1.bf16.msra.mxu0 0
        %377 = vmatprep.subr.bf16.mxu0 0
        %378 = vmatpush1.bf16.msra.mxu0 0
        %379 = vmatprep.subr.bf16.mxu0 0
        %380 = vmatpush1.bf16.msra.mxu0 0
        %381 = vmatprep.subr.bf16.mxu0 0
        %382 = vmatpush1.bf16.msra.mxu0 0
        %383 = vmatprep.subr.bf16.mxu0 0
        %384 = vmatpush1.bf16.msra.mxu0 0
        %385 = vmatprep.subr.bf16.mxu0 0
        %386 = vmatpush1.bf16.msra.mxu0 0
        %387 = vmatprep.subr.bf16.mxu0 0
        %388 = vmatpush1.bf16.msra.mxu0 0
        %389 = vmatprep.subr.bf16.mxu0 0
        %390 = vmatpush1.bf16.msra.mxu0 0
        %391 = vmatprep.subr.bf16.mxu0 0
        %392 = vmatpush1.bf16.msra.mxu0 0
        %393 = vmatprep.mubr.bf16.mxu0 0
        %394 = vmatmul.mubr.bf16.gmra.mrb[0].mxu0 %v305
        %v395 = vpop.f32.mrb[0].mxu0
        %v396 = vadd.f32 %v301, %v395
        %v397 = vpop.f32.mrb[0].mxu0
        %v398 = vadd.f32 %v301, %v397
        %v399 = vpop.f32.mrb[0].mxu0
        %v400 = vpop.f32.mrb[0].mxu0
        %401 = vdwg.mxu0
        %v402 = vld [vmem:[%s3] sm:$0xf]
        %v403 = vld [vmem:[%s4] sm:$0xff]
        %404 = vst [vmem:[#allocation2 + $0x8] sm:$0xff] %v355
        %405 = vst [vmem:[#allocation2 + $0x10] sm:$0xff] %v357
        %v406 = vld [vmem:[#allocation2] sm:$0xff]
        %v407 = vld [vmem:[#allocation2 + $0x8] sm:$0xff]
        %v408 = vld [vmem:[#allocation2 + $0x10] sm:$0xff]
        %412 = vrot.lane.b32.xlu0 %v406, 16
        %v413 = vpop.permute.xlu0 %412
        %414 = vrot.lane.b32.xlu0 %v407, 16
        %v415 = vpop.permute.xlu0 %414
        %416 = vrot.lane.b32.xlu0 %v408, 16
        %v417 = vpop.permute.xlu0 %416
        %v418 = vsel %vm271, %v413, %v415
        %v419 = vsel %vm271, %v415, %v417
        %422 = vrot.lane.b32.xlu0 %v418, 1
        %v423 = vpop.permute.xlu0 %422
        %424 = vrot.lane.b32.xlu0 %v419, 1
        %v425 = vpop.permute.xlu0 %424
        %vm426 = vcmp.lt.s32.totalorder %v231, 1
        %v427 = vsel %vm426, %v423, %v425
        %v428 = vsel %vm426, %v425, %v423
        %v429 = vmul.f32 %v428, %v261
        %v430 = vmul.f32 %v427, %v262
        %431 = vst [vmem:[#allocation3] sm:$0xff] %v429
        %432 = vst [vmem:[#allocation3 + $0x8] sm:$0xff] %v430
        %433 = vst [vmem:[#allocation3 + $0x20] sm:$0xff] %v418
        %434 = vst [vmem:[#allocation3 + $0x28] sm:$0xff] %v419
        %435 = vrot.lane.b32.xlu0 %v418, 127
        %v436 = vpop.permute.xlu0 %435
        %437 = vrot.lane.b32.xlu0 %v419, 127
        %v438 = vpop.permute.xlu0 %437
        %vm439 = vcmp.lt.s32.totalorder %v231, 127
        %v440 = vsel %vm439, %v436, %v438
        %v441 = vsel %vm439, %v438, %v436
        %v442 = vmul.f32 %v440, %v267
        %v443 = vmul.f32 %v441, %v268
        %444 = vst [vmem:[#allocation3 + $0x40] sm:$0xff] %v442
        %445 = vst [vmem:[#allocation3 + $0x48] sm:$0xff] %v443
        %446 = vrot.lane.b32.xlu0 %v355, 1
        %v447 = vpop.permute.xlu0 %446
        %448 = vrot.lane.b32.xlu0 %v357, 1
        %v449 = vpop.permute.xlu0 %448
        %v450 = vsel %vm426, %v447, %v449
        %v451 = vsel %vm426, %v449, %v447
        %v452 = vmul.f32 %v451, %v261
        %v453 = vmul.f32 %v450, %v262
        %454 = vst [vmem:[#allocation3 + $0x60] sm:$0xff] %v452
        %455 = vst [vmem:[#allocation3 + $0x68] sm:$0xff] %v453
        %456 = vst [vmem:[#allocation3 + $0x80] sm:$0xff] %v355
        %457 = vst [vmem:[#allocation3 + $0x88] sm:$0xff] %v357
        %458 = vrot.lane.b32.xlu0 %v355, 127
        %v459 = vpop.permute.xlu0 %458
        %460 = vrot.lane.b32.xlu0 %v357, 127
        %v461 = vpop.permute.xlu0 %460
        %v462 = vsel %vm439, %v459, %v461
        %v463 = vsel %vm439, %v461, %v459
        %v464 = vmul.f32 %v462, %v267
        %v465 = vmul.f32 %v463, %v268
        %466 = vst [vmem:[#allocation3 + $0xa0] sm:$0xff] %v464
        %467 = vst [vmem:[#allocation3 + $0xa8] sm:$0xff] %v465
        %v468 = vld [vmem:[#allocation2 + $0x8] sm:$0xff]
        %v469 = vld [vmem:[#allocation2 + $0x10] sm:$0xff]
        %v470 = vld [vmem:[#allocation2 + $0x18] sm:$0xff]
        %474 = vrot.lane.b32.xlu0 %v468, 112
        %v475 = vpop.permute.xlu0 %474
        %476 = vrot.lane.b32.xlu0 %v469, 112
        %v477 = vpop.permute.xlu0 %476
        %478 = vrot.lane.b32.xlu0 %v470, 112
        %v479 = vpop.permute.xlu0 %478
        %vm480 = vcmask 916480
        %v481 = vsel %vm480, %v475, %v477
        %v482 = vsel %vm480, %v477, %v479
        %485 = vrot.lane.b32.xlu0 %v481, 1
        %v486 = vpop.permute.xlu0 %485
        %487 = vrot.lane.b32.xlu0 %v482, 1
        %v488 = vpop.permute.xlu0 %487
        %v489 = vsel %vm426, %v486, %v488
        %v490 = vsel %vm426, %v488, %v486
        %v491 = vmul.f32 %v490, %v261
        %v492 = vmul.f32 %v489, %v262
        %493 = vst [vmem:[#allocation3 + $0xc0] sm:$0xff] %v491
        %494 = vst [vmem:[#allocation3 + $0xc8] sm:$0xff] %v492
        %495 = vst [vmem:[#allocation3 + $0xe0] sm:$0xff] %v481
        %496 = vst [vmem:[#allocation3 + $0xe8] sm:$0xff] %v482
        %497 = vrot.lane.b32.xlu0 %v481, 127
        %v498 = vpop.permute.xlu0 %497
        %499 = vrot.lane.b32.xlu0 %v482, 127
        %v500 = vpop.permute.xlu0 %499
        %v501 = vsel %vm439, %v498, %v500
        %v502 = vsel %vm439, %v500, %v498
        %v503 = vmul.f32 %v501, %v267
        %v504 = vmul.f32 %v502, %v268
        %505 = vst [vmem:[#allocation3 + $0x100] sm:$0xff] %v503
        %506 = vst [vmem:[#allocation3 + $0x108] sm:$0xff] %v504
        %507 = vst [vmem:[#allocation2 + $0x28] sm:$0xff] %v396
        %508 = vst [vmem:[#allocation2 + $0x30] sm:$0xff] %v398
        %v509 = vld [vmem:[#allocation2 + $0x20] sm:$0xff]
        %v510 = vld [vmem:[#allocation2 + $0x28] sm:$0xff]
        %v511 = vld [vmem:[#allocation2 + $0x30] sm:$0xff]
        %515 = vrot.lane.b32.xlu0 %v509, 16
        %v516 = vpop.permute.xlu0 %515
        %517 = vrot.lane.b32.xlu0 %v510, 16
        %v518 = vpop.permute.xlu0 %517
        %519 = vrot.lane.b32.xlu0 %v511, 16
        %v520 = vpop.permute.xlu0 %519
        %v521 = vsel %vm271, %v516, %v518
        %v522 = vsel %vm271, %v518, %v520
        %525 = vrot.lane.b32.xlu0 %v521, 1
        %v526 = vpop.permute.xlu0 %525
        %527 = vrot.lane.b32.xlu0 %v522, 1
        %v528 = vpop.permute.xlu0 %527
        %v529 = vsel %vm426, %v526, %v528
        %v530 = vsel %vm426, %v528, %v526
        %v531 = vmul.f32 %v530, %v261
        %v532 = vmul.f32 %v529, %v262
        %533 = vst [vmem:[#allocation3 + $0x10] sm:$0xff] %v531
        %534 = vst [vmem:[#allocation3 + $0x18] sm:$0xff] %v532
        %535 = vst [vmem:[#allocation3 + $0x30] sm:$0xff] %v521
        %536 = vst [vmem:[#allocation3 + $0x38] sm:$0xff] %v522
        %537 = vrot.lane.b32.xlu0 %v521, 127
        %v538 = vpop.permute.xlu0 %537
        %539 = vrot.lane.b32.xlu0 %v522, 127
        %v540 = vpop.permute.xlu0 %539
        %v541 = vsel %vm439, %v538, %v540
        %v542 = vsel %vm439, %v540, %v538
        %v543 = vmul.f32 %v541, %v267
        %v544 = vmul.f32 %v542, %v268
        %545 = vst [vmem:[#allocation3 + $0x50] sm:$0xff] %v543
        %546 = vst [vmem:[#allocation3 + $0x58] sm:$0xff] %v544
        %547 = vrot.lane.b32.xlu0 %v396, 1
        %v548 = vpop.permute.xlu0 %547
        %549 = vrot.lane.b32.xlu0 %v398, 1
        %v550 = vpop.permute.xlu0 %549
        %v551 = vsel %vm426, %v548, %v550
        %v552 = vsel %vm426, %v550, %v548
        %v553 = vmul.f32 %v552, %v261
        %v554 = vmul.f32 %v551, %v262
        %555 = vst [vmem:[#allocation3 + $0x70] sm:$0xff] %v553
        %556 = vst [vmem:[#allocation3 + $0x78] sm:$0xff] %v554
        %557 = vst [vmem:[#allocation3 + $0x90] sm:$0xff] %v396
        %558 = vst [vmem:[#allocation3 + $0x98] sm:$0xff] %v398
        %559 = vrot.lane.b32.xlu0 %v396, 127
        %v560 = vpop.permute.xlu0 %559
        %561 = vrot.lane.b32.xlu0 %v398, 127
        %v562 = vpop.permute.xlu0 %561
        %v563 = vsel %vm439, %v560, %v562
        %v564 = vsel %vm439, %v562, %v560
        %v565 = vmul.f32 %v563, %v267
        %v566 = vmul.f32 %v564, %v268
        %567 = vst [vmem:[#allocation3 + $0xb0] sm:$0xff] %v565
        %568 = vst [vmem:[#allocation3 + $0xb8] sm:$0xff] %v566
        %v569 = vld [vmem:[#allocation2 + $0x28] sm:$0xff]
        %v570 = vld [vmem:[#allocation2 + $0x30] sm:$0xff]
        %v571 = vld [vmem:[#allocation2 + $0x38] sm:$0xff]
        %575 = vrot.lane.b32.xlu0 %v569, 112
        %v576 = vpop.permute.xlu0 %575
        %577 = vrot.lane.b32.xlu0 %v570, 112
        %v578 = vpop.permute.xlu0 %577
        %579 = vrot.lane.b32.xlu0 %v571, 112
        %v580 = vpop.permute.xlu0 %579
        %v581 = vsel %vm480, %v576, %v578
        %v582 = vsel %vm480, %v578, %v580
        %585 = vrot.lane.b32.xlu0 %v581, 1
        %v586 = vpop.permute.xlu0 %585
        %587 = vrot.lane.b32.xlu0 %v582, 1
        %v588 = vpop.permute.xlu0 %587
        %v589 = vsel %vm426, %v586, %v588
        %v590 = vsel %vm426, %v588, %v586
        %v591 = vmul.f32 %v590, %v261
        %v592 = vmul.f32 %v589, %v262
        %593 = vst [vmem:[#allocation3 + $0xd0] sm:$0xff] %v591
        %594 = vst [vmem:[#allocation3 + $0xd8] sm:$0xff] %v592
        %595 = vst [vmem:[#allocation3 + $0xf0] sm:$0xff] %v581
        %596 = vst [vmem:[#allocation3 + $0xf8] sm:$0xff] %v582
        %597 = vrot.lane.b32.xlu0 %v581, 127
        %v598 = vpop.permute.xlu0 %597
        %599 = vrot.lane.b32.xlu0 %v582, 127
        %v600 = vpop.permute.xlu0 %599
        %v601 = vsel %vm439, %v598, %v600
        %v602 = vsel %vm439, %v600, %v598
        %v603 = vmul.f32 %v601, %v267
        %v604 = vmul.f32 %v602, %v268
        %605 = vst [vmem:[#allocation3 + $0x110] sm:$0xff] %v603
        %606 = vst [vmem:[#allocation3 + $0x118] sm:$0xff] %v604
        %v607 = vld [vmem:[#allocation3] sm:$0xff]
        %v608 = vld [vmem:[#allocation3 + $0x8] sm:$0xff]
        %v609 = vld [vmem:[#allocation3 + $0x10] sm:$0xff]
        %v610 = vld [vmem:[#allocation3 + $0x18] sm:$0xff]
        %v611 = vld [vmem:[#allocation3 + $0x20] sm:$0xff]
        %v612 = vld [vmem:[#allocation3 + $0x28] sm:$0xff]
        %v613 = vld [vmem:[#allocation3 + $0x30] sm:$0xff]
        %v614 = vld [vmem:[#allocation3 + $0x38] sm:$0xff]
        %v615 = vld [vmem:[#allocation3 + $0x40] sm:$0xff]
        %v616 = vld [vmem:[#allocation3 + $0x48] sm:$0xff]
        %v617 = vld [vmem:[#allocation3 + $0x50] sm:$0xff]
        %v618 = vld [vmem:[#allocation3 + $0x58] sm:$0xff]
        %v619 = vld [vmem:[#allocation3 + $0x60] sm:$0xff]
        %v620 = vld [vmem:[#allocation3 + $0x68] sm:$0xff]
        %v621 = vld [vmem:[#allocation3 + $0x70] sm:$0xff]
        %v622 = vld [vmem:[#allocation3 + $0x78] sm:$0xff]
        %v623 = vld [vmem:[#allocation3 + $0x80] sm:$0xff]
        %v624 = vld [vmem:[#allocation3 + $0x88] sm:$0xff]
        %v625 = vld [vmem:[#allocation3 + $0x90] sm:$0xff]
        %v626 = vld [vmem:[#allocation3 + $0x98] sm:$0xff]
        %v627 = vld [vmem:[#allocation3 + $0xa0] sm:$0xff]
        %v628 = vld [vmem:[#allocation3 + $0xa8] sm:$0xff]
        %v629 = vld [vmem:[#allocation3 + $0xb0] sm:$0xff]
        %v630 = vld [vmem:[#allocation3 + $0xb8] sm:$0xff]
        %v631 = vld [vmem:[#allocation3 + $0xc0] sm:$0xff]
        %v632 = vld [vmem:[#allocation3 + $0xc8] sm:$0xff]
        %v633 = vld [vmem:[#allocation3 + $0xd0] sm:$0xff]
        %v634 = vld [vmem:[#allocation3 + $0xd8] sm:$0xff]
        %v635 = vld [vmem:[#allocation3 + $0xe0] sm:$0xff]
        %v636 = vld [vmem:[#allocation3 + $0xe8] sm:$0xff]
        %v637 = vld [vmem:[#allocation3 + $0xf0] sm:$0xff]
        %v638 = vld [vmem:[#allocation3 + $0xf8] sm:$0xff]
        %v639 = vld [vmem:[#allocation3 + $0x100] sm:$0xff]
        %v640 = vld [vmem:[#allocation3 + $0x108] sm:$0xff]
        %v641 = vld [vmem:[#allocation3 + $0x110] sm:$0xff]
        %v642 = vld [vmem:[#allocation3 + $0x118] sm:$0xff]
        %v643 = vpack.c.bf16 %v611, %v607
        %v644 = vpack.c.bf16 %v612, %v608
        %v645 = vpack.c.bf16 %v613, %v609
        %v646 = vpack.c.bf16 %v614, %v610
        %v647 = vpack.c.bf16 %v619, %v615
        %v648 = vpack.c.bf16 %v620, %v616
        %v649 = vpack.c.bf16 %v621, %v617
        %v650 = vpack.c.bf16 %v622, %v618
        %v651 = vpack.c.bf16 %v627, %v623
        %v652 = vpack.c.bf16 %v628, %v624
        %v653 = vpack.c.bf16 %v629, %v625
        %v654 = vpack.c.bf16 %v630, %v626
        %v655 = vpack.c.bf16 %v635, %v631
        %v656 = vpack.c.bf16 %v636, %v632
        %v657 = vpack.c.bf16 %v637, %v633
        %v658 = vpack.c.bf16 %v638, %v634
        %v659 = vpack.c.bf16 %v639, %v639
        %v660 = vpack.c.bf16 %v640, %v640
        %v661 = vpack.c.bf16 %v641, %v641
        %v662 = vpack.c.bf16 %v642, %v642
        %664 = vset.pattern.permute.xlu0 0
        %665 = vperm.xlu0 %664, %v403
        %v666 = vpop.permute.xlu0 %665
        %vm668 = vcmask 588800
        %v670 = vsel %vm668, %v402, 0
        %vm672 = vcmask 1043456
        %v674 = vsel %vm672, %v659, 0
        %v677 = vsel %vm672, %v660, 0
        %v680 = vsel %vm672, %v661, 0
        %v683 = vsel %vm672, %v662, 0
        %685 = vmatprep.subr.bf16.mxu0 %v644
        %686 = vmatpush1.bf16.msra.mxu0 %v643
        %687 = vmatprep.subr.bf16.mxu0 %v648
        %688 = vmatpush1.bf16.msra.mxu0 %v647
        %689 = vmatprep.subr.bf16.mxu0 %v652
        %690 = vmatpush1.bf16.msra.mxu0 %v651
        %691 = vmatprep.subr.bf16.mxu0 %v656
        %692 = vmatpush1.bf16.msra.mxu0 %v655
        %693 = vmatprep.subr.bf16.mxu0 %v677
        %694 = vmatpush1.bf16.msra.mxu0 %v674
        %695 = vmatprep.subr.bf16.mxu0 0
        %696 = vmatpush1.bf16.msra.mxu0 0
        %697 = vmatprep.subr.bf16.mxu0 0
        %698 = vmatpush1.bf16.msra.mxu0 0
        %699 = vmatprep.subr.bf16.mxu0 0
        %700 = vmatpush1.bf16.msra.mxu0 0
        %701 = vmatprep.subr.bf16.mxu0 0
        %702 = vmatpush1.bf16.msra.mxu0 0
        %703 = vmatprep.subr.bf16.mxu0 0
        %704 = vmatpush1.bf16.msra.mxu0 0
        %705 = vmatprep.subr.bf16.mxu0 0
        %706 = vmatpush1.bf16.msra.mxu0 0
        %707 = vmatprep.subr.bf16.mxu0 0
        %708 = vmatpush1.bf16.msra.mxu0 0
        %709 = vmatprep.subr.bf16.mxu0 0
        %710 = vmatpush1.bf16.msra.mxu0 0
        %711 = vmatprep.subr.bf16.mxu0 0
        %712 = vmatpush1.bf16.msra.mxu0 0
        %713 = vmatprep.subr.bf16.mxu0 0
        %714 = vmatpush1.bf16.msra.mxu0 0
        %715 = vmatprep.subr.bf16.mxu0 0
        %716 = vmatpush1.bf16.msra.mxu0 0
        %717 = vmatprep.mubr.bf16.mxu0 0
        %718 = vmatmul.mubr.bf16.gmra.mrb[0].mxu0 %v670
        %v719 = vpop.f32.mrb[0].mxu0
        %v720 = vadd.f32 %v666, %v719
        %v721 = vpop.f32.mrb[0].mxu0
        %v722 = vadd.f32 %v666, %v721
        %v723 = vpop.f32.mrb[0].mxu0
        %v724 = vpop.f32.mrb[0].mxu0
        %725 = vdwg.mxu0
        %726 = vmatprep.subr.bf16.mxu0 %v646
        %727 = vmatpush1.bf16.msra.mxu0 %v645
        %728 = vmatprep.subr.bf16.mxu0 %v650
        %729 = vmatpush1.bf16.msra.mxu0 %v649
        %730 = vmatprep.subr.bf16.mxu0 %v654
        %731 = vmatpush1.bf16.msra.mxu0 %v653
        %732 = vmatprep.subr.bf16.mxu0 %v658
        %733 = vmatpush1.bf16.msra.mxu0 %v657
        %734 = vmatprep.subr.bf16.mxu0 %v683
        %735 = vmatpush1.bf16.msra.mxu0 %v680
        %736 = vmatprep.subr.bf16.mxu0 0
        %737 = vmatpush1.bf16.msra.mxu0 0
        %738 = vmatprep.subr.bf16.mxu0 0
        %739 = vmatpush1.bf16.msra.mxu0 0
        %740 = vmatprep.subr.bf16.mxu0 0
        %741 = vmatpush1.bf16.msra.mxu0 0
        %742 = vmatprep.subr.bf16.mxu0 0
        %743 = vmatpush1.bf16.msra.mxu0 0
        %744 = vmatprep.subr.bf16.mxu0 0
        %745 = vmatpush1.bf16.msra.mxu0 0
        %746 = vmatprep.subr.bf16.mxu0 0
        %747 = vmatpush1.bf16.msra.mxu0 0
        %748 = vmatprep.subr.bf16.mxu0 0
        %749 = vmatpush1.bf16.msra.mxu0 0
        %750 = vmatprep.subr.bf16.mxu0 0
        %751 = vmatpush1.bf16.msra.mxu0 0
        %752 = vmatprep.subr.bf16.mxu0 0
        %753 = vmatpush1.bf16.msra.mxu0 0
        %754 = vmatprep.subr.bf16.mxu0 0
        %755 = vmatpush1.bf16.msra.mxu0 0
        %756 = vmatprep.subr.bf16.mxu0 0
        %757 = vmatpush1.bf16.msra.mxu0 0
        %758 = vmatprep.mubr.bf16.mxu0 0
        %759 = vmatmul.mubr.bf16.gmra.mrb[0].mxu0 %v670
        %v760 = vpop.f32.mrb[0].mxu0
        %v761 = vadd.f32 %v666, %v760
        %v762 = vpop.f32.mrb[0].mxu0
        %v763 = vadd.f32 %v666, %v762
        %v764 = vpop.f32.mrb[0].mxu0
        %v765 = vpop.f32.mrb[0].mxu0
        %766 = vdwg.mxu0
        %v767 = vmax.f32 %v720, 0.0
        %v768 = vmax.f32 %v722, 0.0
        %v769 = vmax.f32 %v761, 0.0
        %v770 = vmax.f32 %v763, 0.0
        %v771 = vadd.f32 %v355, %v767
        %v772 = vadd.f32 %v357, %v768
        %v773 = vadd.f32 %v396, %v769
        %v774 = vadd.f32 %v398, %v770
        %775 = vst [vmem:[#allocation2 + $0x8] sm:$0xff] %v771
        %776 = vst [vmem:[#allocation2 + $0x10] sm:$0xff] %v772
        %v777 = vld [vmem:[#allocation2] sm:$0xff]
        %v778 = vld [vmem:[#allocation2 + $0x8] sm:$0xff]
        %v779 = vld [vmem:[#allocation2 + $0x10] sm:$0xff]
        %783 = vrot.lane.b32.xlu0 %v777, 16
        %v784 = vpop.permute.xlu0 %783
        %785 = vrot.lane.b32.xlu0 %v778, 16
        %v786 = vpop.permute.xlu0 %785
        %787 = vrot.lane.b32.xlu0 %v779, 16
        %v788 = vpop.permute.xlu0 %787
        %v789 = vsel %vm271, %v784, %v786
        %v790 = vsel %vm271, %v786, %v788
        %793 = vrot.lane.b32.xlu0 %v789, 1
        %v794 = vpop.permute.xlu0 %793
        %795 = vrot.lane.b32.xlu0 %v790, 1
        %v796 = vpop.permute.xlu0 %795
        %v797 = vsel %vm426, %v794, %v796
        %v798 = vsel %vm426, %v796, %v794
        %v799 = vmul.f32 %v798, %v261
        %v800 = vmul.f32 %v797, %v262
        %801 = vst [vmem:[#allocation3] sm:$0xff] %v799
        %802 = vst [vmem:[#allocation3 + $0x8] sm:$0xff] %v800
        %803 = vst [vmem:[#allocation3 + $0x20] sm:$0xff] %v789
        %804 = vst [vmem:[#allocation3 + $0x28] sm:$0xff] %v790
        %805 = vrot.lane.b32.xlu0 %v789, 127
        %v806 = vpop.permute.xlu0 %805
        %807 = vrot.lane.b32.xlu0 %v790, 127
        %v808 = vpop.permute.xlu0 %807
        %v809 = vsel %vm439, %v806, %v808
        %v810 = vsel %vm439, %v808, %v806
        %v811 = vmul.f32 %v809, %v267
        %v812 = vmul.f32 %v810, %v268
        %813 = vst [vmem:[#allocation3 + $0x40] sm:$0xff] %v811
        %814 = vst [vmem:[#allocation3 + $0x48] sm:$0xff] %v812
        %815 = vrot.lane.b32.xlu0 %v771, 1
        %v816 = vpop.permute.xlu0 %815
        %817 = vrot.lane.b32.xlu0 %v772, 1
        %v818 = vpop.permute.xlu0 %817
        %v819 = vsel %vm426, %v816, %v818
        %v820 = vsel %vm426, %v818, %v816
        %v821 = vmul.f32 %v820, %v261
        %v822 = vmul.f32 %v819, %v262
        %823 = vst [vmem:[#allocation3 + $0x60] sm:$0xff] %v821
        %824 = vst [vmem:[#allocation3 + $0x68] sm:$0xff] %v822
        %825 = vst [vmem:[#allocation3 + $0x80] sm:$0xff] %v771
        %826 = vst [vmem:[#allocation3 + $0x88] sm:$0xff] %v772
        %827 = vrot.lane.b32.xlu0 %v771, 127
        %v828 = vpop.permute.xlu0 %827
        %829 = vrot.lane.b32.xlu0 %v772, 127
        %v830 = vpop.permute.xlu0 %829
        %v831 = vsel %vm439, %v828, %v830
        %v832 = vsel %vm439, %v830, %v828
        %v833 = vmul.f32 %v831, %v267
        %v834 = vmul.f32 %v832, %v268
        %835 = vst [vmem:[#allocation3 + $0xa0] sm:$0xff] %v833
        %836 = vst [vmem:[#allocation3 + $0xa8] sm:$0xff] %v834
        %v837 = vld [vmem:[#allocation2 + $0x8] sm:$0xff]
        %v838 = vld [vmem:[#allocation2 + $0x10] sm:$0xff]
        %v839 = vld [vmem:[#allocation2 + $0x18] sm:$0xff]
        %843 = vrot.lane.b32.xlu0 %v837, 112
        %v844 = vpop.permute.xlu0 %843
        %845 = vrot.lane.b32.xlu0 %v838, 112
        %v846 = vpop.permute.xlu0 %845
        %847 = vrot.lane.b32.xlu0 %v839, 112
        %v848 = vpop.permute.xlu0 %847
        %v849 = vsel %vm480, %v844, %v846
        %v850 = vsel %vm480, %v846, %v848
        %853 = vrot.lane.b32.xlu0 %v849, 1
        %v854 = vpop.permute.xlu0 %853
        %855 = vrot.lane.b32.xlu0 %v850, 1
        %v856 = vpop.permute.xlu0 %855
        %v857 = vsel %vm426, %v854, %v856
        %v858 = vsel %vm426, %v856, %v854
        %v859 = vmul.f32 %v858, %v261
        %v860 = vmul.f32 %v857, %v262
        %861 = vst [vmem:[#allocation3 + $0xc0] sm:$0xff] %v859
        %862 = vst [vmem:[#allocation3 + $0xc8] sm:$0xff] %v860
        %863 = vst [vmem:[#allocation3 + $0xe0] sm:$0xff] %v849
        %864 = vst [vmem:[#allocation3 + $0xe8] sm:$0xff] %v850
        %865 = vrot.lane.b32.xlu0 %v849, 127
        %v866 = vpop.permute.xlu0 %865
        %867 = vrot.lane.b32.xlu0 %v850, 127
        %v868 = vpop.permute.xlu0 %867
        %v869 = vsel %vm439, %v866, %v868
        %v870 = vsel %vm439, %v868, %v866
        %v871 = vmul.f32 %v869, %v267
        %v872 = vmul.f32 %v870, %v268
        %873 = vst [vmem:[#allocation3 + $0x100] sm:$0xff] %v871
        %874 = vst [vmem:[#allocation3 + $0x108] sm:$0xff] %v872
        %875 = vst [vmem:[#allocation2 + $0x28] sm:$0xff] %v773
        %876 = vst [vmem:[#allocation2 + $0x30] sm:$0xff] %v774
        %v877 = vld [vmem:[#allocation2 + $0x20] sm:$0xff]
        %v878 = vld [vmem:[#allocation2 + $0x28] sm:$0xff]
        %v879 = vld [vmem:[#allocation2 + $0x30] sm:$0xff]
        %883 = vrot.lane.b32.xlu0 %v877, 16
        %v884 = vpop.permute.xlu0 %883
        %885 = vrot.lane.b32.xlu0 %v878, 16
        %v886 = vpop.permute.xlu0 %885
        %887 = vrot.lane.b32.xlu0 %v879, 16
        %v888 = vpop.permute.xlu0 %887
        %v889 = vsel %vm271, %v884, %v886
        %v890 = vsel %vm271, %v886, %v888
        %893 = vrot.lane.b32.xlu0 %v889, 1
        %v894 = vpop.permute.xlu0 %893
        %895 = vrot.lane.b32.xlu0 %v890, 1
        %v896 = vpop.permute.xlu0 %895
        %v897 = vsel %vm426, %v894, %v896
        %v898 = vsel %vm426, %v896, %v894
        %v899 = vmul.f32 %v898, %v261
        %v900 = vmul.f32 %v897, %v262
        %901 = vst [vmem:[#allocation3 + $0x10] sm:$0xff] %v899
        %902 = vst [vmem:[#allocation3 + $0x18] sm:$0xff] %v900
        %903 = vst [vmem:[#allocation3 + $0x30] sm:$0xff] %v889
        %904 = vst [vmem:[#allocation3 + $0x38] sm:$0xff] %v890
        %905 = vrot.lane.b32.xlu0 %v889, 127
        %v906 = vpop.permute.xlu0 %905
        %907 = vrot.lane.b32.xlu0 %v890, 127
        %v908 = vpop.permute.xlu0 %907
        %v909 = vsel %vm439, %v906, %v908
        %v910 = vsel %vm439, %v908, %v906
        %v911 = vmul.f32 %v909, %v267
        %v912 = vmul.f32 %v910, %v268
        %913 = vst [vmem:[#allocation3 + $0x50] sm:$0xff] %v911
        %914 = vst [vmem:[#allocation3 + $0x58] sm:$0xff] %v912
        %915 = vrot.lane.b32.xlu0 %v773, 1
        %v916 = vpop.permute.xlu0 %915
        %917 = vrot.lane.b32.xlu0 %v774, 1
        %v918 = vpop.permute.xlu0 %917
        %v919 = vsel %vm426, %v916, %v918
        %v920 = vsel %vm426, %v918, %v916
        %v921 = vmul.f32 %v920, %v261
        %v922 = vmul.f32 %v919, %v262
        %923 = vst [vmem:[#allocation3 + $0x70] sm:$0xff] %v921
        %924 = vst [vmem:[#allocation3 + $0x78] sm:$0xff] %v922
        %925 = vst [vmem:[#allocation3 + $0x90] sm:$0xff] %v773
        %926 = vst [vmem:[#allocation3 + $0x98] sm:$0xff] %v774
        %927 = vrot.lane.b32.xlu0 %v773, 127
        %v928 = vpop.permute.xlu0 %927
        %929 = vrot.lane.b32.xlu0 %v774, 127
        %v930 = vpop.permute.xlu0 %929
        %v931 = vsel %vm439, %v928, %v930
        %v932 = vsel %vm439, %v930, %v928
        %v933 = vmul.f32 %v931, %v267
        %v934 = vmul.f32 %v932, %v268
        %935 = vst [vmem:[#allocation3 + $0xb0] sm:$0xff] %v933
        %936 = vst [vmem:[#allocation3 + $0xb8] sm:$0xff] %v934
        %v937 = vld [vmem:[#allocation2 + $0x28] sm:$0xff]
        %v938 = vld [vmem:[#allocation2 + $0x30] sm:$0xff]
        %v939 = vld [vmem:[#allocation2 + $0x38] sm:$0xff]
        %943 = vrot.lane.b32.xlu0 %v937, 112
        %v944 = vpop.permute.xlu0 %943
        %945 = vrot.lane.b32.xlu0 %v938, 112
        %v946 = vpop.permute.xlu0 %945
        %947 = vrot.lane.b32.xlu0 %v939, 112
        %v948 = vpop.permute.xlu0 %947
        %v949 = vsel %vm480, %v944, %v946
        %v950 = vsel %vm480, %v946, %v948
        %953 = vrot.lane.b32.xlu0 %v949, 1
        %v954 = vpop.permute.xlu0 %953
        %955 = vrot.lane.b32.xlu0 %v950, 1
        %v956 = vpop.permute.xlu0 %955
        %v957 = vsel %vm426, %v954, %v956
        %v958 = vsel %vm426, %v956, %v954
        %v959 = vmul.f32 %v958, %v261
        %v960 = vmul.f32 %v957, %v262
        %961 = vst [vmem:[#allocation3 + $0xd0] sm:$0xff] %v959
        %962 = vst [vmem:[#allocation3 + $0xd8] sm:$0xff] %v960
        %963 = vst [vmem:[#allocation3 + $0xf0] sm:$0xff] %v949
        %964 = vst [vmem:[#allocation3 + $0xf8] sm:$0xff] %v950
        %965 = vrot.lane.b32.xlu0 %v949, 127
        %v966 = vpop.permute.xlu0 %965
        %967 = vrot.lane.b32.xlu0 %v950, 127
        %v968 = vpop.permute.xlu0 %967
        %v969 = vsel %vm439, %v966, %v968
        %v970 = vsel %vm439, %v968, %v966
        %v971 = vmul.f32 %v969, %v267
        %v972 = vmul.f32 %v970, %v268
        %973 = vst [vmem:[#allocation3 + $0x110] sm:$0xff] %v971
        %974 = vst [vmem:[#allocation3 + $0x118] sm:$0xff] %v972
        %v975 = vld [vmem:[#allocation3] sm:$0xff]
        %v976 = vld [vmem:[#allocation3 + $0x8] sm:$0xff]
        %v977 = vld [vmem:[#allocation3 + $0x10] sm:$0xff]
        %v978 = vld [vmem:[#allocation3 + $0x18] sm:$0xff]
        %v979 = vld [vmem:[#allocation3 + $0x20] sm:$0xff]
        %v980 = vld [vmem:[#allocation3 + $0x28] sm:$0xff]
        %v981 = vld [vmem:[#allocation3 + $0x30] sm:$0xff]
        %v982 = vld [vmem:[#allocation3 + $0x38] sm:$0xff]
        %v983 = vld [vmem:[#allocation3 + $0x40] sm:$0xff]
        %v984 = vld [vmem:[#allocation3 + $0x48] sm:$0xff]
        %v985 = vld [vmem:[#allocation3 + $0x50] sm:$0xff]
        %v986 = vld [vmem:[#allocation3 + $0x58] sm:$0xff]
        %v987 = vld [vmem:[#allocation3 + $0x60] sm:$0xff]
        %v988 = vld [vmem:[#allocation3 + $0x68] sm:$0xff]
        %v989 = vld [vmem:[#allocation3 + $0x70] sm:$0xff]
        %v990 = vld [vmem:[#allocation3 + $0x78] sm:$0xff]
        %v991 = vld [vmem:[#allocation3 + $0x80] sm:$0xff]
        %v992 = vld [vmem:[#allocation3 + $0x88] sm:$0xff]
        %v993 = vld [vmem:[#allocation3 + $0x90] sm:$0xff]
        %v994 = vld [vmem:[#allocation3 + $0x98] sm:$0xff]
        %v995 = vld [vmem:[#allocation3 + $0xa0] sm:$0xff]
        %v996 = vld [vmem:[#allocation3 + $0xa8] sm:$0xff]
        %v997 = vld [vmem:[#allocation3 + $0xb0] sm:$0xff]
        %v998 = vld [vmem:[#allocation3 + $0xb8] sm:$0xff]
        %v999 = vld [vmem:[#allocation3 + $0xc0] sm:$0xff]
        %v1000 = vld [vmem:[#allocation3 + $0xc8] sm:$0xff]
        %v1001 = vld [vmem:[#allocation3 + $0xd0] sm:$0xff]
        %v1002 = vld [vmem:[#allocation3 + $0xd8] sm:$0xff]
        %v1003 = vld [vmem:[#allocation3 + $0xe0] sm:$0xff]
        %v1004 = vld [vmem:[#allocation3 + $0xe8] sm:$0xff]
        %v1005 = vld [vmem:[#allocation3 + $0xf0] sm:$0xff]
        %v1006 = vld [vmem:[#allocation3 + $0xf8] sm:$0xff]
        %v1007 = vld [vmem:[#allocation3 + $0x100] sm:$0xff]
        %v1008 = vld [vmem:[#allocation3 + $0x108] sm:$0xff]
        %v1009 = vld [vmem:[#allocation3 + $0x110] sm:$0xff]
        %v1010 = vld [vmem:[#allocation3 + $0x118] sm:$0xff]
        %v1011 = vpack.c.bf16 %v979, %v975
        %v1012 = vpack.c.bf16 %v980, %v976
        %v1013 = vpack.c.bf16 %v981, %v977
        %v1014 = vpack.c.bf16 %v982, %v978
        %v1015 = vpack.c.bf16 %v987, %v983
        %v1016 = vpack.c.bf16 %v988, %v984
        %v1017 = vpack.c.bf16 %v989, %v985
        %v1018 = vpack.c.bf16 %v990, %v986
        %v1019 = vpack.c.bf16 %v995, %v991
        %v1020 = vpack.c.bf16 %v996, %v992
        %v1021 = vpack.c.bf16 %v997, %v993
        %v1022 = vpack.c.bf16 %v998, %v994
        %v1023 = vpack.c.bf16 %v1003, %v999
        %v1024 = vpack.c.bf16 %v1004, %v1000
        %v1025 = vpack.c.bf16 %v1005, %v1001
        %v1026 = vpack.c.bf16 %v1006, %v1002
        %v1027 = vpack.c.bf16 %v1007, %v1007
        %v1028 = vpack.c.bf16 %v1008, %v1008
        %v1029 = vpack.c.bf16 %v1009, %v1009
        %v1030 = vpack.c.bf16 %v1010, %v1010
        %v1032 = vsel %vm672, %v1027, 0
        %v1035 = vsel %vm672, %v1028, 0
        %v1038 = vsel %vm672, %v1029, 0
        %v1041 = vsel %vm672, %v1030, 0
        %1043 = vmatprep.subr.bf16.mxu0 %v1012
        %1044 = vmatpush1.bf16.msra.mxu0 %v1011
        %1045 = vmatprep.subr.bf16.mxu0 %v1016
        %1046 = vmatpush1.bf16.msra.mxu0 %v1015
        %1047 = vmatprep.subr.bf16.mxu0 %v1020
        %1048 = vmatpush1.bf16.msra.mxu0 %v1019
        %1049 = vmatprep.subr.bf16.mxu0 %v1024
        %1050 = vmatpush1.bf16.msra.mxu0 %v1023
        %1051 = vmatprep.subr.bf16.mxu0 %v1035
        %1052 = vmatpush1.bf16.msra.mxu0 %v1032
        %1053 = vmatprep.subr.bf16.mxu0 0
        %1054 = vmatpush1.bf16.msra.mxu0 0
        %1055 = vmatprep.subr.bf16.mxu0 0
        %1056 = vmatpush1.bf16.msra.mxu0 0
        %1057 = vmatprep.subr.bf16.mxu0 0
        %1058 = vmatpush1.bf16.msra.mxu0 0
        %1059 = vmatprep.subr.bf16.mxu0 0
        %1060 = vmatpush1.bf16.msra.mxu0 0
        %1061 = vmatprep.subr.bf16.mxu0 0
        %1062 = vmatpush1.bf16.msra.mxu0 0
        %1063 = vmatprep.subr.bf16.mxu0 0
        %1064 = vmatpush1.bf16.msra.mxu0 0
        %1065 = vmatprep.subr.bf16.mxu0 0
        %1066 = vmatpush1.bf16.msra.mxu0 0
        %1067 = vmatprep.subr.bf16.mxu0 0
        %1068 = vmatpush1.bf16.msra.mxu0 0
        %1069 = vmatprep.subr.bf16.mxu0 0
        %1070 = vmatpush1.bf16.msra.mxu0 0
        %1071 = vmatprep.subr.bf16.mxu0 0
        %1072 = vmatpush1.bf16.msra.mxu0 0
        %1073 = vmatprep.subr.bf16.mxu0 0
        %1074 = vmatpush1.bf16.msra.mxu0 0
        %1075 = vmatprep.mubr.bf16.mxu0 0
        %1076 = vmatmul.mubr.bf16.gmra.mrb[0].mxu0 %v670
        %v1077 = vpop.f32.mrb[0].mxu0
        %v1078 = vadd.f32 %v666, %v1077
        %v1079 = vpop.f32.mrb[0].mxu0
        %v1080 = vadd.f32 %v666, %v1079
        %v1081 = vpop.f32.mrb[0].mxu0
        %v1082 = vpop.f32.mrb[0].mxu0
        %1083 = vdwg.mxu0
        %1084 = vmatprep.subr.bf16.mxu0 %v1014
        %1085 = vmatpush1.bf16.msra.mxu0 %v1013
        %1086 = vmatprep.subr.bf16.mxu0 %v1018
        %1087 = vmatpush1.bf16.msra.mxu0 %v1017
        %1088 = vmatprep.subr.bf16.mxu0 %v1022
        %1089 = vmatpush1.bf16.msra.mxu0 %v1021
        %1090 = vmatprep.subr.bf16.mxu0 %v1026
        %1091 = vmatpush1.bf16.msra.mxu0 %v1025
        %1092 = vmatprep.subr.bf16.mxu0 %v1041
        %1093 = vmatpush1.bf16.msra.mxu0 %v1038
        %1094 = vmatprep.subr.bf16.mxu0 0
        %1095 = vmatpush1.bf16.msra.mxu0 0
        %1096 = vmatprep.subr.bf16.mxu0 0
        %1097 = vmatpush1.bf16.msra.mxu0 0
        %1098 = vmatprep.subr.bf16.mxu0 0
        %1099 = vmatpush1.bf16.msra.mxu0 0
        %1100 = vmatprep.subr.bf16.mxu0 0
        %1101 = vmatpush1.bf16.msra.mxu0 0
        %1102 = vmatprep.subr.bf16.mxu0 0
        %1103 = vmatpush1.bf16.msra.mxu0 0
        %1104 = vmatprep.subr.bf16.mxu0 0
        %1105 = vmatpush1.bf16.msra.mxu0 0
        %1106 = vmatprep.subr.bf16.mxu0 0
        %1107 = vmatpush1.bf16.msra.mxu0 0
        %1108 = vmatprep.subr.bf16.mxu0 0
        %1109 = vmatpush1.bf16.msra.mxu0 0
        %1110 = vmatprep.subr.bf16.mxu0 0
        %1111 = vmatpush1.bf16.msra.mxu0 0
        %1112 = vmatprep.subr.bf16.mxu0 0
        %1113 = vmatpush1.bf16.msra.mxu0 0
        %1114 = vmatprep.subr.bf16.mxu0 0
        %1115 = vmatpush1.bf16.msra.mxu0 0
        %1116 = vmatprep.mubr.bf16.mxu0 0
        %1117 = vmatmul.mubr.bf16.gmra.mrb[0].mxu0 %v670
        %v1118 = vpop.f32.mrb[0].mxu0
        %v1119 = vadd.f32 %v666, %v1118
        %v1120 = vpop.f32.mrb[0].mxu0
        %v1121 = vadd.f32 %v666, %v1120
        %v1122 = vpop.f32.mrb[0].mxu0
        %v1123 = vpop.f32.mrb[0].mxu0
        %1124 = vdwg.mxu0
        %v1125 = vmax.f32 %v1078, 0.0
        %v1126 = vmax.f32 %v1080, 0.0
        %v1127 = vmax.f32 %v1119, 0.0
        %v1128 = vmax.f32 %v1121, 0.0
        %v1129 = vadd.f32 %v355, %v1125
        %v1130 = vadd.f32 %v357, %v1126
        %v1131 = vadd.f32 %v396, %v1127
        %v1132 = vadd.f32 %v398, %v1128
        %1133 = vst [vmem:[#allocation2 + $0x8] sm:$0xff] %v1129
        %1134 = vst [vmem:[#allocation2 + $0x10] sm:$0xff] %v1130
        %v1135 = vld [vmem:[#allocation2] sm:$0xff]
        %v1136 = vld [vmem:[#allocation2 + $0x8] sm:$0xff]
        %v1137 = vld [vmem:[#allocation2 + $0x10] sm:$0xff]
        %1141 = vrot.lane.b32.xlu0 %v1135, 16
        %v1142 = vpop.permute.xlu0 %1141
        %1143 = vrot.lane.b32.xlu0 %v1136, 16
        %v1144 = vpop.permute.xlu0 %1143
        %1145 = vrot.lane.b32.xlu0 %v1137, 16
        %v1146 = vpop.permute.xlu0 %1145
        %v1147 = vsel %vm271, %v1142, %v1144
        %v1148 = vsel %vm271, %v1144, %v1146
        %1151 = vrot.lane.b32.xlu0 %v1147, 1
        %v1152 = vpop.permute.xlu0 %1151
        %1153 = vrot.lane.b32.xlu0 %v1148, 1
        %v1154 = vpop.permute.xlu0 %1153
        %v1155 = vsel %vm426, %v1152, %v1154
        %v1156 = vsel %vm426, %v1154, %v1152
        %v1157 = vmul.f32 %v1156, %v261
        %v1158 = vmul.f32 %v1155, %v262
        %1159 = vst [vmem:[#allocation3] sm:$0xff] %v1157
        %1160 = vst [vmem:[#allocation3 + $0x8] sm:$0xff] %v1158
        %1161 = vst [vmem:[#allocation3 + $0x20] sm:$0xff] %v1147
        %1162 = vst [vmem:[#allocation3 + $0x28] sm:$0xff] %v1148
        %1163 = vrot.lane.b32.xlu0 %v1147, 127
        %v1164 = vpop.permute.xlu0 %1163
        %1165 = vrot.lane.b32.xlu0 %v1148, 127
        %v1166 = vpop.permute.xlu0 %1165
        %v1167 = vsel %vm439, %v1164, %v1166
        %v1168 = vsel %vm439, %v1166, %v1164
        %v1169 = vmul.f32 %v1167, %v267
        %v1170 = vmul.f32 %v1168, %v268
        %1171 = vst [vmem:[#allocation3 + $0x40] sm:$0xff] %v1169
        %1172 = vst [vmem:[#allocation3 + $0x48] sm:$0xff] %v1170
        %1173 = vrot.lane.b32.xlu0 %v1129, 1
        %v1174 = vpop.permute.xlu0 %1173
        %1175 = vrot.lane.b32.xlu0 %v1130, 1
        %v1176 = vpop.permute.xlu0 %1175
        %v1177 = vsel %vm426, %v1174, %v1176
        %v1178 = vsel %vm426, %v1176, %v1174
        %v1179 = vmul.f32 %v1178, %v261
        %v1180 = vmul.f32 %v1177, %v262
        %1181 = vst [vmem:[#allocation3 + $0x60] sm:$0xff] %v1179
        %1182 = vst [vmem:[#allocation3 + $0x68] sm:$0xff] %v1180
        %1183 = vst [vmem:[#allocation3 + $0x80] sm:$0xff] %v1129
        %1184 = vst [vmem:[#allocation3 + $0x88] sm:$0xff] %v1130
        %1185 = vrot.lane.b32.xlu0 %v1129, 127
        %v1186 = vpop.permute.xlu0 %1185
        %1187 = vrot.lane.b32.xlu0 %v1130, 127
        %v1188 = vpop.permute.xlu0 %1187
        %v1189 = vsel %vm439, %v1186, %v1188
        %v1190 = vsel %vm439, %v1188, %v1186
        %v1191 = vmul.f32 %v1189, %v267
        %v1192 = vmul.f32 %v1190, %v268
        %1193 = vst [vmem:[#allocation3 + $0xa0] sm:$0xff] %v1191
        %1194 = vst [vmem:[#allocation3 + $0xa8] sm:$0xff] %v1192
        %v1195 = vld [vmem:[#allocation2 + $0x8] sm:$0xff]
        %v1196 = vld [vmem:[#allocation2 + $0x10] sm:$0xff]
        %v1197 = vld [vmem:[#allocation2 + $0x18] sm:$0xff]
        %1201 = vrot.lane.b32.xlu0 %v1195, 112
        %v1202 = vpop.permute.xlu0 %1201
        %1203 = vrot.lane.b32.xlu0 %v1196, 112
        %v1204 = vpop.permute.xlu0 %1203
        %1205 = vrot.lane.b32.xlu0 %v1197, 112
        %v1206 = vpop.permute.xlu0 %1205
        %v1207 = vsel %vm480, %v1202, %v1204
        %v1208 = vsel %vm480, %v1204, %v1206
        %1211 = vrot.lane.b32.xlu0 %v1207, 1
        %v1212 = vpop.permute.xlu0 %1211
        %1213 = vrot.lane.b32.xlu0 %v1208, 1
        %v1214 = vpop.permute.xlu0 %1213
        %v1215 = vsel %vm426, %v1212, %v1214
        %v1216 = vsel %vm426, %v1214, %v1212
        %v1217 = vmul.f32 %v1216, %v261
        %v1218 = vmul.f32 %v1215, %v262
        %1219 = vst [vmem:[#allocation3 + $0xc0] sm:$0xff] %v1217
        %1220 = vst [vmem:[#allocation3 + $0xc8] sm:$0xff] %v1218
        %1221 = vst [vmem:[#allocation3 + $0xe0] sm:$0xff] %v1207
        %1222 = vst [vmem:[#allocation3 + $0xe8] sm:$0xff] %v1208
        %1223 = vrot.lane.b32.xlu0 %v1207, 127
        %v1224 = vpop.permute.xlu0 %1223
        %1225 = vrot.lane.b32.xlu0 %v1208, 127
        %v1226 = vpop.permute.xlu0 %1225
        %v1227 = vsel %vm439, %v1224, %v1226
        %v1228 = vsel %vm439, %v1226, %v1224
        %v1229 = vmul.f32 %v1227, %v267
        %v1230 = vmul.f32 %v1228, %v268
        %1231 = vst [vmem:[#allocation3 + $0x100] sm:$0xff] %v1229
        %1232 = vst [vmem:[#allocation3 + $0x108] sm:$0xff] %v1230
        %1233 = vst [vmem:[#allocation2 + $0x28] sm:$0xff] %v1131
        %1234 = vst [vmem:[#allocation2 + $0x30] sm:$0xff] %v1132
        %v1235 = vld [vmem:[#allocation2 + $0x20] sm:$0xff]
        %v1236 = vld [vmem:[#allocation2 + $0x28] sm:$0xff]
        %v1237 = vld [vmem:[#allocation2 + $0x30] sm:$0xff]
        %1241 = vrot.lane.b32.xlu0 %v1235, 16
        %v1242 = vpop.permute.xlu0 %1241
        %1243 = vrot.lane.b32.xlu0 %v1236, 16
        %v1244 = vpop.permute.xlu0 %1243
        %1245 = vrot.lane.b32.xlu0 %v1237, 16
        %v1246 = vpop.permute.xlu0 %1245
        %v1247 = vsel %vm271, %v1242, %v1244
        %v1248 = vsel %vm271, %v1244, %v1246
        %1251 = vrot.lane.b32.xlu0 %v1247, 1
        %v1252 = vpop.permute.xlu0 %1251
        %1253 = vrot.lane.b32.xlu0 %v1248, 1
        %v1254 = vpop.permute.xlu0 %1253
        %v1255 = vsel %vm426, %v1252, %v1254
        %v1256 = vsel %vm426, %v1254, %v1252
        %v1257 = vmul.f32 %v1256, %v261
        %v1258 = vmul.f32 %v1255, %v262
        %1259 = vst [vmem:[#allocation3 + $0x10] sm:$0xff] %v1257
        %1260 = vst [vmem:[#allocation3 + $0x18] sm:$0xff] %v1258
        %1261 = vst [vmem:[#allocation3 + $0x30] sm:$0xff] %v1247
        %1262 = vst [vmem:[#allocation3 + $0x38] sm:$0xff] %v1248
        %1263 = vrot.lane.b32.xlu0 %v1247, 127
        %v1264 = vpop.permute.xlu0 %1263
        %1265 = vrot.lane.b32.xlu0 %v1248, 127
        %v1266 = vpop.permute.xlu0 %1265
        %v1267 = vsel %vm439, %v1264, %v1266
        %v1268 = vsel %vm439, %v1266, %v1264
        %v1269 = vmul.f32 %v1267, %v267
        %v1270 = vmul.f32 %v1268, %v268
        %1271 = vst [vmem:[#allocation3 + $0x50] sm:$0xff] %v1269
        %1272 = vst [vmem:[#allocation3 + $0x58] sm:$0xff] %v1270
        %1273 = vrot.lane.b32.xlu0 %v1131, 1
        %v1274 = vpop.permute.xlu0 %1273
        %1275 = vrot.lane.b32.xlu0 %v1132, 1
        %v1276 = vpop.permute.xlu0 %1275
        %v1277 = vsel %vm426, %v1274, %v1276
        %v1278 = vsel %vm426, %v1276, %v1274
        %v1279 = vmul.f32 %v1278, %v261
        %v1280 = vmul.f32 %v1277, %v262
        %1281 = vst [vmem:[#allocation3 + $0x70] sm:$0xff] %v1279
        %1282 = vst [vmem:[#allocation3 + $0x78] sm:$0xff] %v1280
        %1283 = vst [vmem:[#allocation3 + $0x90] sm:$0xff] %v1131
        %1284 = vst [vmem:[#allocation3 + $0x98] sm:$0xff] %v1132
        %1285 = vrot.lane.b32.xlu0 %v1131, 127
        %v1286 = vpop.permute.xlu0 %1285
        %1287 = vrot.lane.b32.xlu0 %v1132, 127
        %v1288 = vpop.permute.xlu0 %1287
        %v1289 = vsel %vm439, %v1286, %v1288
        %v1290 = vsel %vm439, %v1288, %v1286
        %v1291 = vmul.f32 %v1289, %v267
        %v1292 = vmul.f32 %v1290, %v268
        %1293 = vst [vmem:[#allocation3 + $0xb0] sm:$0xff] %v1291
        %1294 = vst [vmem:[#allocation3 + $0xb8] sm:$0xff] %v1292
        %v1295 = vld [vmem:[#allocation2 + $0x28] sm:$0xff]
        %v1296 = vld [vmem:[#allocation2 + $0x30] sm:$0xff]
        %v1297 = vld [vmem:[#allocation2 + $0x38] sm:$0xff]
        %1301 = vrot.lane.b32.xlu0 %v1295, 112
        %v1302 = vpop.permute.xlu0 %1301
        %1303 = vrot.lane.b32.xlu0 %v1296, 112
        %v1304 = vpop.permute.xlu0 %1303
        %1305 = vrot.lane.b32.xlu0 %v1297, 112
        %v1306 = vpop.permute.xlu0 %1305
        %v1307 = vsel %vm480, %v1302, %v1304
        %v1308 = vsel %vm480, %v1304, %v1306
        %1311 = vrot.lane.b32.xlu0 %v1307, 1
        %v1312 = vpop.permute.xlu0 %1311
        %1313 = vrot.lane.b32.xlu0 %v1308, 1
        %v1314 = vpop.permute.xlu0 %1313
        %v1315 = vsel %vm426, %v1312, %v1314
        %v1316 = vsel %vm426, %v1314, %v1312
        %v1317 = vmul.f32 %v1316, %v261
        %v1318 = vmul.f32 %v1315, %v262
        %1319 = vst [vmem:[#allocation3 + $0xd0] sm:$0xff] %v1317
        %1320 = vst [vmem:[#allocation3 + $0xd8] sm:$0xff] %v1318
        %1321 = vst [vmem:[#allocation3 + $0xf0] sm:$0xff] %v1307
        %1322 = vst [vmem:[#allocation3 + $0xf8] sm:$0xff] %v1308
        %1323 = vrot.lane.b32.xlu0 %v1307, 127
        %v1324 = vpop.permute.xlu0 %1323
        %1325 = vrot.lane.b32.xlu0 %v1308, 127
        %v1326 = vpop.permute.xlu0 %1325
        %v1327 = vsel %vm439, %v1324, %v1326
        %v1328 = vsel %vm439, %v1326, %v1324
        %v1329 = vmul.f32 %v1327, %v267
        %v1330 = vmul.f32 %v1328, %v268
        %1331 = vst [vmem:[#allocation3 + $0x110] sm:$0xff] %v1329
        %1332 = vst [vmem:[#allocation3 + $0x118] sm:$0xff] %v1330
        %v1333 = vld [vmem:[#allocation3] sm:$0xff]
        %v1334 = vld [vmem:[#allocation3 + $0x8] sm:$0xff]
        %v1335 = vld [vmem:[#allocation3 + $0x10] sm:$0xff]
        %v1336 = vld [vmem:[#allocation3 + $0x18] sm:$0xff]
        %v1337 = vld [vmem:[#allocation3 + $0x20] sm:$0xff]
        %v1338 = vld [vmem:[#allocation3 + $0x28] sm:$0xff]
        %v1339 = vld [vmem:[#allocation3 + $0x30] sm:$0xff]
        %v1340 = vld [vmem:[#allocation3 + $0x38] sm:$0xff]
        %v1341 = vld [vmem:[#allocation3 + $0x40] sm:$0xff]
        %v1342 = vld [vmem:[#allocation3 + $0x48] sm:$0xff]
        %v1343 = vld [vmem:[#allocation3 + $0x50] sm:$0xff]
        %v1344 = vld [vmem:[#allocation3 + $0x58] sm:$0xff]
        %v1345 = vld [vmem:[#allocation3 + $0x60] sm:$0xff]
        %v1346 = vld [vmem:[#allocation3 + $0x68] sm:$0xff]
        %v1347 = vld [vmem:[#allocation3 + $0x70] sm:$0xff]
        %v1348 = vld [vmem:[#allocation3 + $0x78] sm:$0xff]
        %v1349 = vld [vmem:[#allocation3 + $0x80] sm:$0xff]
        %v1350 = vld [vmem:[#allocation3 + $0x88] sm:$0xff]
        %v1351 = vld [vmem:[#allocation3 + $0x90] sm:$0xff]
        %v1352 = vld [vmem:[#allocation3 + $0x98] sm:$0xff]
        %v1353 = vld [vmem:[#allocation3 + $0xa0] sm:$0xff]
        %v1354 = vld [vmem:[#allocation3 + $0xa8] sm:$0xff]
        %v1355 = vld [vmem:[#allocation3 + $0xb0] sm:$0xff]
        %v1356 = vld [vmem:[#allocation3 + $0xb8] sm:$0xff]
        %v1357 = vld [vmem:[#allocation3 + $0xc0] sm:$0xff]
        %v1358 = vld [vmem:[#allocation3 + $0xc8] sm:$0xff]
        %v1359 = vld [vmem:[#allocation3 + $0xd0] sm:$0xff]
        %v1360 = vld [vmem:[#allocation3 + $0xd8] sm:$0xff]
        %v1361 = vld [vmem:[#allocation3 + $0xe0] sm:$0xff]
        %v1362 = vld [vmem:[#allocation3 + $0xe8] sm:$0xff]
        %v1363 = vld [vmem:[#allocation3 + $0xf0] sm:$0xff]
        %v1364 = vld [vmem:[#allocation3 + $0xf8] sm:$0xff]
        %v1365 = vld [vmem:[#allocation3 + $0x100] sm:$0xff]
        %v1366 = vld [vmem:[#allocation3 + $0x108] sm:$0xff]
        %v1367 = vld [vmem:[#allocation3 + $0x110] sm:$0xff]
        %v1368 = vld [vmem:[#allocation3 + $0x118] sm:$0xff]
        %v1369 = vpack.c.bf16 %v1337, %v1333
        %v1370 = vpack.c.bf16 %v1338, %v1334
        %v1371 = vpack.c.bf16 %v1339, %v1335
        %v1372 = vpack.c.bf16 %v1340, %v1336
        %v1373 = vpack.c.bf16 %v1345, %v1341
        %v1374 = vpack.c.bf16 %v1346, %v1342
        %v1375 = vpack.c.bf16 %v1347, %v1343
        %v1376 = vpack.c.bf16 %v1348, %v1344
        %v1377 = vpack.c.bf16 %v1353, %v1349
        %v1378 = vpack.c.bf16 %v1354, %v1350
        %v1379 = vpack.c.bf16 %v1355, %v1351
        %v1380 = vpack.c.bf16 %v1356, %v1352
        %v1381 = vpack.c.bf16 %v1361, %v1357
        %v1382 = vpack.c.bf16 %v1362, %v1358
        %v1383 = vpack.c.bf16 %v1363, %v1359
        %v1384 = vpack.c.bf16 %v1364, %v1360
        %v1385 = vpack.c.bf16 %v1365, %v1365
        %v1386 = vpack.c.bf16 %v1366, %v1366
        %v1387 = vpack.c.bf16 %v1367, %v1367
        %v1388 = vpack.c.bf16 %v1368, %v1368
        %v1390 = vsel %vm672, %v1385, 0
        %v1393 = vsel %vm672, %v1386, 0
        %v1396 = vsel %vm672, %v1387, 0
        %v1399 = vsel %vm672, %v1388, 0
        %1401 = vmatprep.subr.bf16.mxu0 %v1370
        %1402 = vmatpush1.bf16.msra.mxu0 %v1369
        %1403 = vmatprep.subr.bf16.mxu0 %v1374
        %1404 = vmatpush1.bf16.msra.mxu0 %v1373
        %1405 = vmatprep.subr.bf16.mxu0 %v1378
        %1406 = vmatpush1.bf16.msra.mxu0 %v1377
        %1407 = vmatprep.subr.bf16.mxu0 %v1382
        %1408 = vmatpush1.bf16.msra.mxu0 %v1381
        %1409 = vmatprep.subr.bf16.mxu0 %v1393
        %1410 = vmatpush1.bf16.msra.mxu0 %v1390
        %1411 = vmatprep.subr.bf16.mxu0 0
        %1412 = vmatpush1.bf16.msra.mxu0 0
        %1413 = vmatprep.subr.bf16.mxu0 0
        %1414 = vmatpush1.bf16.msra.mxu0 0
        %1415 = vmatprep.subr.bf16.mxu0 0
        %1416 = vmatpush1.bf16.msra.mxu0 0
        %1417 = vmatprep.subr.bf16.mxu0 0
        %1418 = vmatpush1.bf16.msra.mxu0 0
        %1419 = vmatprep.subr.bf16.mxu0 0
        %1420 = vmatpush1.bf16.msra.mxu0 0
        %1421 = vmatprep.subr.bf16.mxu0 0
        %1422 = vmatpush1.bf16.msra.mxu0 0
        %1423 = vmatprep.subr.bf16.mxu0 0
        %1424 = vmatpush1.bf16.msra.mxu0 0
        %1425 = vmatprep.subr.bf16.mxu0 0
        %1426 = vmatpush1.bf16.msra.mxu0 0
        %1427 = vmatprep.subr.bf16.mxu0 0
        %1428 = vmatpush1.bf16.msra.mxu0 0
        %1429 = vmatprep.subr.bf16.mxu0 0
        %1430 = vmatpush1.bf16.msra.mxu0 0
        %1431 = vmatprep.subr.bf16.mxu0 0
        %1432 = vmatpush1.bf16.msra.mxu0 0
        %1433 = vmatprep.mubr.bf16.mxu0 0
        %1434 = vmatmul.mubr.bf16.gmra.mrb[0].mxu0 %v670
        %v1435 = vpop.f32.mrb[0].mxu0
        %v1436 = vadd.f32 %v666, %v1435
        %v1437 = vpop.f32.mrb[0].mxu0
        %v1438 = vadd.f32 %v666, %v1437
        %v1439 = vpop.f32.mrb[0].mxu0
        %v1440 = vpop.f32.mrb[0].mxu0
        %1441 = vdwg.mxu0
        %1442 = vmatprep.subr.bf16.mxu0 %v1372
        %1443 = vmatpush1.bf16.msra.mxu0 %v1371
        %1444 = vmatprep.subr.bf16.mxu0 %v1376
        %1445 = vmatpush1.bf16.msra.mxu0 %v1375
        %1446 = vmatprep.subr.bf16.mxu0 %v1380
        %1447 = vmatpush1.bf16.msra.mxu0 %v1379
        %1448 = vmatprep.subr.bf16.mxu0 %v1384
        %1449 = vmatpush1.bf16.msra.mxu0 %v1383
        %1450 = vmatprep.subr.bf16.mxu0 %v1399
        %1451 = vmatpush1.bf16.msra.mxu0 %v1396
        %1452 = vmatprep.subr.bf16.mxu0 0
        %1453 = vmatpush1.bf16.msra.mxu0 0
        %1454 = vmatprep.subr.bf16.mxu0 0
        %1455 = vmatpush1.bf16.msra.mxu0 0
        %1456 = vmatprep.subr.bf16.mxu0 0
        %1457 = vmatpush1.bf16.msra.mxu0 0
        %1458 = vmatprep.subr.bf16.mxu0 0
        %1459 = vmatpush1.bf16.msra.mxu0 0
        %1460 = vmatprep.subr.bf16.mxu0 0
        %1461 = vmatpush1.bf16.msra.mxu0 0
        %1462 = vmatprep.subr.bf16.mxu0 0
        %1463 = vmatpush1.bf16.msra.mxu0 0
        %1464 = vmatprep.subr.bf16.mxu0 0
        %1465 = vmatpush1.bf16.msra.mxu0 0
        %1466 = vmatprep.subr.bf16.mxu0 0
        %1467 = vmatpush1.bf16.msra.mxu0 0
        %1468 = vmatprep.subr.bf16.mxu0 0
        %1469 = vmatpush1.bf16.msra.mxu0 0
        %1470 = vmatprep.subr.bf16.mxu0 0
        %1471 = vmatpush1.bf16.msra.mxu0 0
        %1472 = vmatprep.subr.bf16.mxu0 0
        %1473 = vmatpush1.bf16.msra.mxu0 0
        %1474 = vmatprep.mubr.bf16.mxu0 0
        %1475 = vmatmul.mubr.bf16.gmra.mrb[0].mxu0 %v670
        %v1476 = vpop.f32.mrb[0].mxu0
        %v1477 = vadd.f32 %v666, %v1476
        %v1478 = vpop.f32.mrb[0].mxu0
        %v1479 = vadd.f32 %v666, %v1478
        %v1480 = vpop.f32.mrb[0].mxu0
        %v1481 = vpop.f32.mrb[0].mxu0
        %1482 = vdwg.mxu0
        %v1483 = vmax.f32 %v1436, 0.0
        %v1484 = vmax.f32 %v1438, 0.0
        %v1485 = vmax.f32 %v1477, 0.0
        %v1486 = vmax.f32 %v1479, 0.0
        %s1487 = scalar_lea.vmem %s3, 4
        %v1488 = vld [vmem:[%s1487] sm:$0xf]
        %s1489 = scalar_lea.vmem %s4, 8
        %v1490 = vld [vmem:[%s1489] sm:$0xff]
        %1491 = vst [vmem:[#allocation2 + $0x8] sm:$0xff] %v1483
        %1492 = vst [vmem:[#allocation2 + $0x10] sm:$0xff] %v1484
        %v1493 = vld [vmem:[#allocation2] sm:$0xff]
        %v1494 = vld [vmem:[#allocation2 + $0x8] sm:$0xff]
        %v1495 = vld [vmem:[#allocation2 + $0x10] sm:$0xff]
        %1499 = vrot.lane.b32.xlu0 %v1493, 16
        %v1500 = vpop.permute.xlu0 %1499
        %1501 = vrot.lane.b32.xlu0 %v1494, 16
        %v1502 = vpop.permute.xlu0 %1501
        %1503 = vrot.lane.b32.xlu0 %v1495, 16
        %v1504 = vpop.permute.xlu0 %1503
        %v1505 = vsel %vm271, %v1500, %v1502
        %v1506 = vsel %vm271, %v1502, %v1504
        %1509 = vrot.lane.b32.xlu0 %v1505, 1
        %v1510 = vpop.permute.xlu0 %1509
        %1511 = vrot.lane.b32.xlu0 %v1506, 1
        %v1512 = vpop.permute.xlu0 %1511
        %v1513 = vsel %vm426, %v1510, %v1512
        %v1514 = vsel %vm426, %v1512, %v1510
        %v1515 = vmul.f32 %v1514, %v261
        %v1516 = vmul.f32 %v1513, %v262
        %1517 = vst [vmem:[#allocation3] sm:$0xff] %v1515
        %1518 = vst [vmem:[#allocation3 + $0x8] sm:$0xff] %v1516
        %1519 = vst [vmem:[#allocation3 + $0x20] sm:$0xff] %v1505
        %1520 = vst [vmem:[#allocation3 + $0x28] sm:$0xff] %v1506
        %1521 = vrot.lane.b32.xlu0 %v1505, 127
        %v1522 = vpop.permute.xlu0 %1521
        %1523 = vrot.lane.b32.xlu0 %v1506, 127
        %v1524 = vpop.permute.xlu0 %1523
        %v1525 = vsel %vm439, %v1522, %v1524
        %v1526 = vsel %vm439, %v1524, %v1522
        %v1527 = vmul.f32 %v1525, %v267
        %v1528 = vmul.f32 %v1526, %v268
        %1529 = vst [vmem:[#allocation3 + $0x40] sm:$0xff] %v1527
        %1530 = vst [vmem:[#allocation3 + $0x48] sm:$0xff] %v1528
        %1531 = vrot.lane.b32.xlu0 %v1483, 1
        %v1532 = vpop.permute.xlu0 %1531
        %1533 = vrot.lane.b32.xlu0 %v1484, 1
        %v1534 = vpop.permute.xlu0 %1533
        %v1535 = vsel %vm426, %v1532, %v1534
        %v1536 = vsel %vm426, %v1534, %v1532
        %v1537 = vmul.f32 %v1536, %v261
        %v1538 = vmul.f32 %v1535, %v262
        %1539 = vst [vmem:[#allocation3 + $0x60] sm:$0xff] %v1537
        %1540 = vst [vmem:[#allocation3 + $0x68] sm:$0xff] %v1538
        %1541 = vst [vmem:[#allocation3 + $0x80] sm:$0xff] %v1483
        %1542 = vst [vmem:[#allocation3 + $0x88] sm:$0xff] %v1484
        %1543 = vrot.lane.b32.xlu0 %v1483, 127
        %v1544 = vpop.permute.xlu0 %1543
        %1545 = vrot.lane.b32.xlu0 %v1484, 127
        %v1546 = vpop.permute.xlu0 %1545
        %v1547 = vsel %vm439, %v1544, %v1546
        %v1548 = vsel %vm439, %v1546, %v1544
        %v1549 = vmul.f32 %v1547, %v267
        %v1550 = vmul.f32 %v1548, %v268
        %1551 = vst [vmem:[#allocation3 + $0xa0] sm:$0xff] %v1549
        %1552 = vst [vmem:[#allocation3 + $0xa8] sm:$0xff] %v1550
        %v1553 = vld [vmem:[#allocation2 + $0x8] sm:$0xff]
        %v1554 = vld [vmem:[#allocation2 + $0x10] sm:$0xff]
        %v1555 = vld [vmem:[#allocation2 + $0x18] sm:$0xff]
        %1559 = vrot.lane.b32.xlu0 %v1553, 112
        %v1560 = vpop.permute.xlu0 %1559
        %1561 = vrot.lane.b32.xlu0 %v1554, 112
        %v1562 = vpop.permute.xlu0 %1561
        %1563 = vrot.lane.b32.xlu0 %v1555, 112
        %v1564 = vpop.permute.xlu0 %1563
        %v1565 = vsel %vm480, %v1560, %v1562
        %v1566 = vsel %vm480, %v1562, %v1564
        %1569 = vrot.lane.b32.xlu0 %v1565, 1
        %v1570 = vpop.permute.xlu0 %1569
        %1571 = vrot.lane.b32.xlu0 %v1566, 1
        %v1572 = vpop.permute.xlu0 %1571
        %v1573 = vsel %vm426, %v1570, %v1572
        %v1574 = vsel %vm426, %v1572, %v1570
        %v1575 = vmul.f32 %v1574, %v261
        %v1576 = vmul.f32 %v1573, %v262
        %1577 = vst [vmem:[#allocation3 + $0xc0] sm:$0xff] %v1575
        %1578 = vst [vmem:[#allocation3 + $0xc8] sm:$0xff] %v1576
        %1579 = vst [vmem:[#allocation3 + $0xe0] sm:$0xff] %v1565
        %1580 = vst [vmem:[#allocation3 + $0xe8] sm:$0xff] %v1566
        %1581 = vrot.lane.b32.xlu0 %v1565, 127
        %v1582 = vpop.permute.xlu0 %1581
        %1583 = vrot.lane.b32.xlu0 %v1566, 127
        %v1584 = vpop.permute.xlu0 %1583
        %v1585 = vsel %vm439, %v1582, %v1584
        %v1586 = vsel %vm439, %v1584, %v1582
        %v1587 = vmul.f32 %v1585, %v267
        %v1588 = vmul.f32 %v1586, %v268
        %1589 = vst [vmem:[#allocation3 + $0x100] sm:$0xff] %v1587
        %1590 = vst [vmem:[#allocation3 + $0x108] sm:$0xff] %v1588
        %1591 = vst [vmem:[#allocation2 + $0x28] sm:$0xff] %v1485
        %1592 = vst [vmem:[#allocation2 + $0x30] sm:$0xff] %v1486
        %v1593 = vld [vmem:[#allocation2 + $0x20] sm:$0xff]
        %v1594 = vld [vmem:[#allocation2 + $0x28] sm:$0xff]
        %v1595 = vld [vmem:[#allocation2 + $0x30] sm:$0xff]
        %1599 = vrot.lane.b32.xlu0 %v1593, 16
        %v1600 = vpop.permute.xlu0 %1599
        %1601 = vrot.lane.b32.xlu0 %v1594, 16
        %v1602 = vpop.permute.xlu0 %1601
        %1603 = vrot.lane.b32.xlu0 %v1595, 16
        %v1604 = vpop.permute.xlu0 %1603
        %v1605 = vsel %vm271, %v1600, %v1602
        %v1606 = vsel %vm271, %v1602, %v1604
        %1609 = vrot.lane.b32.xlu0 %v1605, 1
        %v1610 = vpop.permute.xlu0 %1609
        %1611 = vrot.lane.b32.xlu0 %v1606, 1
        %v1612 = vpop.permute.xlu0 %1611
        %v1613 = vsel %vm426, %v1610, %v1612
        %v1614 = vsel %vm426, %v1612, %v1610
        %v1615 = vmul.f32 %v1614, %v261
        %v1616 = vmul.f32 %v1613, %v262
        %1617 = vst [vmem:[#allocation3 + $0x10] sm:$0xff] %v1615
        %1618 = vst [vmem:[#allocation3 + $0x18] sm:$0xff] %v1616
        %1619 = vst [vmem:[#allocation3 + $0x30] sm:$0xff] %v1605
        %1620 = vst [vmem:[#allocation3 + $0x38] sm:$0xff] %v1606
        %1621 = vrot.lane.b32.xlu0 %v1605, 127
        %v1622 = vpop.permute.xlu0 %1621
        %1623 = vrot.lane.b32.xlu0 %v1606, 127
        %v1624 = vpop.permute.xlu0 %1623
        %v1625 = vsel %vm439, %v1622, %v1624
        %v1626 = vsel %vm439, %v1624, %v1622
        %v1627 = vmul.f32 %v1625, %v267
        %v1628 = vmul.f32 %v1626, %v268
        %1629 = vst [vmem:[#allocation3 + $0x50] sm:$0xff] %v1627
        %1630 = vst [vmem:[#allocation3 + $0x58] sm:$0xff] %v1628
        %1631 = vrot.lane.b32.xlu0 %v1485, 1
        %v1632 = vpop.permute.xlu0 %1631
        %1633 = vrot.lane.b32.xlu0 %v1486, 1
        %v1634 = vpop.permute.xlu0 %1633
        %v1635 = vsel %vm426, %v1632, %v1634
        %v1636 = vsel %vm426, %v1634, %v1632
        %v1637 = vmul.f32 %v1636, %v261
        %v1638 = vmul.f32 %v1635, %v262
        %1639 = vst [vmem:[#allocation3 + $0x70] sm:$0xff] %v1637
        %1640 = vst [vmem:[#allocation3 + $0x78] sm:$0xff] %v1638
        %1641 = vst [vmem:[#allocation3 + $0x90] sm:$0xff] %v1485
        %1642 = vst [vmem:[#allocation3 + $0x98] sm:$0xff] %v1486
        %1643 = vrot.lane.b32.xlu0 %v1485, 127
        %v1644 = vpop.permute.xlu0 %1643
        %1645 = vrot.lane.b32.xlu0 %v1486, 127
        %v1646 = vpop.permute.xlu0 %1645
        %v1647 = vsel %vm439, %v1644, %v1646
        %v1648 = vsel %vm439, %v1646, %v1644
        %v1649 = vmul.f32 %v1647, %v267
        %v1650 = vmul.f32 %v1648, %v268
        %1651 = vst [vmem:[#allocation3 + $0xb0] sm:$0xff] %v1649
        %1652 = vst [vmem:[#allocation3 + $0xb8] sm:$0xff] %v1650
        %v1653 = vld [vmem:[#allocation2 + $0x28] sm:$0xff]
        %v1654 = vld [vmem:[#allocation2 + $0x30] sm:$0xff]
        %v1655 = vld [vmem:[#allocation2 + $0x38] sm:$0xff]
        %1659 = vrot.lane.b32.xlu0 %v1653, 112
        %v1660 = vpop.permute.xlu0 %1659
        %1661 = vrot.lane.b32.xlu0 %v1654, 112
        %v1662 = vpop.permute.xlu0 %1661
        %1663 = vrot.lane.b32.xlu0 %v1655, 112
        %v1664 = vpop.permute.xlu0 %1663
        %v1665 = vsel %vm480, %v1660, %v1662
        %v1666 = vsel %vm480, %v1662, %v1664
        %1669 = vrot.lane.b32.xlu0 %v1665, 1
        %v1670 = vpop.permute.xlu0 %1669
        %1671 = vrot.lane.b32.xlu0 %v1666, 1
        %v1672 = vpop.permute.xlu0 %1671
        %v1673 = vsel %vm426, %v1670, %v1672
        %v1674 = vsel %vm426, %v1672, %v1670
        %v1675 = vmul.f32 %v1674, %v261
        %v1676 = vmul.f32 %v1673, %v262
        %1677 = vst [vmem:[#allocation3 + $0xd0] sm:$0xff] %v1675
        %1678 = vst [vmem:[#allocation3 + $0xd8] sm:$0xff] %v1676
        %1679 = vst [vmem:[#allocation3 + $0xf0] sm:$0xff] %v1665
        %1680 = vst [vmem:[#allocation3 + $0xf8] sm:$0xff] %v1666
        %1681 = vrot.lane.b32.xlu0 %v1665, 127
        %v1682 = vpop.permute.xlu0 %1681
        %1683 = vrot.lane.b32.xlu0 %v1666, 127
        %v1684 = vpop.permute.xlu0 %1683
        %v1685 = vsel %vm439, %v1682, %v1684
        %v1686 = vsel %vm439, %v1684, %v1682
        %v1687 = vmul.f32 %v1685, %v267
        %v1688 = vmul.f32 %v1686, %v268
        %1689 = vst [vmem:[#allocation3 + $0x110] sm:$0xff] %v1687
        %1690 = vst [vmem:[#allocation3 + $0x118] sm:$0xff] %v1688
        %v1691 = vld [vmem:[#allocation3] sm:$0xff]
        %v1692 = vld [vmem:[#allocation3 + $0x8] sm:$0xff]
        %v1693 = vld [vmem:[#allocation3 + $0x10] sm:$0xff]
        %v1694 = vld [vmem:[#allocation3 + $0x18] sm:$0xff]
        %v1695 = vld [vmem:[#allocation3 + $0x20] sm:$0xff]
        %v1696 = vld [vmem:[#allocation3 + $0x28] sm:$0xff]
        %v1697 = vld [vmem:[#allocation3 + $0x30] sm:$0xff]
        %v1698 = vld [vmem:[#allocation3 + $0x38] sm:$0xff]
        %v1699 = vld [vmem:[#allocation3 + $0x40] sm:$0xff]
        %v1700 = vld [vmem:[#allocation3 + $0x48] sm:$0xff]
        %v1701 = vld [vmem:[#allocation3 + $0x50] sm:$0xff]
        %v1702 = vld [vmem:[#allocation3 + $0x58] sm:$0xff]
        %v1703 = vld [vmem:[#allocation3 + $0x60] sm:$0xff]
        %v1704 = vld [vmem:[#allocation3 + $0x68] sm:$0xff]
        %v1705 = vld [vmem:[#allocation3 + $0x70] sm:$0xff]
        %v1706 = vld [vmem:[#allocation3 + $0x78] sm:$0xff]
        %v1707 = vld [vmem:[#allocation3 + $0x80] sm:$0xff]
        %v1708 = vld [vmem:[#allocation3 + $0x88] sm:$0xff]
        %v1709 = vld [vmem:[#allocation3 + $0x90] sm:$0xff]
        %v1710 = vld [vmem:[#allocation3 + $0x98] sm:$0xff]
        %v1711 = vld [vmem:[#allocation3 + $0xa0] sm:$0xff]
        %v1712 = vld [vmem:[#allocation3 + $0xa8] sm:$0xff]
        %v1713 = vld [vmem:[#allocation3 + $0xb0] sm:$0xff]
        %v1714 = vld [vmem:[#allocation3 + $0xb8] sm:$0xff]
        %v1715 = vld [vmem:[#allocation3 + $0xc0] sm:$0xff]
        %v1716 = vld [vmem:[#allocation3 + $0xc8] sm:$0xff]
        %v1717 = vld [vmem:[#allocation3 + $0xd0] sm:$0xff]
        %v1718 = vld [vmem:[#allocation3 + $0xd8] sm:$0xff]
        %v1719 = vld [vmem:[#allocation3 + $0xe0] sm:$0xff]
        %v1720 = vld [vmem:[#allocation3 + $0xe8] sm:$0xff]
        %v1721 = vld [vmem:[#allocation3 + $0xf0] sm:$0xff]
        %v1722 = vld [vmem:[#allocation3 + $0xf8] sm:$0xff]
        %v1723 = vld [vmem:[#allocation3 + $0x100] sm:$0xff]
        %v1724 = vld [vmem:[#allocation3 + $0x108] sm:$0xff]
        %v1725 = vld [vmem:[#allocation3 + $0x110] sm:$0xff]
        %v1726 = vld [vmem:[#allocation3 + $0x118] sm:$0xff]
        %v1727 = vpack.c.bf16 %v1695, %v1691
        %v1728 = vpack.c.bf16 %v1696, %v1692
        %v1729 = vpack.c.bf16 %v1697, %v1693
        %v1730 = vpack.c.bf16 %v1698, %v1694
        %v1731 = vpack.c.bf16 %v1703, %v1699
        %v1732 = vpack.c.bf16 %v1704, %v1700
        %v1733 = vpack.c.bf16 %v1705, %v1701
        %v1734 = vpack.c.bf16 %v1706, %v1702
        %v1735 = vpack.c.bf16 %v1711, %v1707
        %v1736 = vpack.c.bf16 %v1712, %v1708
        %v1737 = vpack.c.bf16 %v1713, %v1709
        %v1738 = vpack.c.bf16 %v1714, %v1710
        %v1739 = vpack.c.bf16 %v1719, %v1715
        %v1740 = vpack.c.bf16 %v1720, %v1716
        %v1741 = vpack.c.bf16 %v1721, %v1717
        %v1742 = vpack.c.bf16 %v1722, %v1718
        %v1743 = vpack.c.bf16 %v1723, %v1723
        %v1744 = vpack.c.bf16 %v1724, %v1724
        %v1745 = vpack.c.bf16 %v1725, %v1725
        %v1746 = vpack.c.bf16 %v1726, %v1726
        %1748 = vset.pattern.permute.xlu0 0
        %1749 = vperm.xlu0 %1748, %v1490
        %v1750 = vpop.permute.xlu0 %1749
        %v1753 = vsel %vm668, %v1488, 0
        %v1756 = vsel %vm672, %v1743, 0
        %v1759 = vsel %vm672, %v1744, 0
        %v1762 = vsel %vm672, %v1745, 0
        %v1765 = vsel %vm672, %v1746, 0
        %1767 = vmatprep.subr.bf16.mxu0 %v1728
        %1768 = vmatpush1.bf16.msra.mxu0 %v1727
        %1769 = vmatprep.subr.bf16.mxu0 %v1732
        %1770 = vmatpush1.bf16.msra.mxu0 %v1731
        %1771 = vmatprep.subr.bf16.mxu0 %v1736
        %1772 = vmatpush1.bf16.msra.mxu0 %v1735
        %1773 = vmatprep.subr.bf16.mxu0 %v1740
        %1774 = vmatpush1.bf16.msra.mxu0 %v1739
        %1775 = vmatprep.subr.bf16.mxu0 %v1759
        %1776 = vmatpush1.bf16.msra.mxu0 %v1756
        %1777 = vmatprep.subr.bf16.mxu0 0
        %1778 = vmatpush1.bf16.msra.mxu0 0
        %1779 = vmatprep.subr.bf16.mxu0 0
        %1780 = vmatpush1.bf16.msra.mxu0 0
        %1781 = vmatprep.subr.bf16.mxu0 0
        %1782 = vmatpush1.bf16.msra.mxu0 0
        %1783 = vmatprep.subr.bf16.mxu0 0
        %1784 = vmatpush1.bf16.msra.mxu0 0
        %1785 = vmatprep.subr.bf16.mxu0 0
        %1786 = vmatpush1.bf16.msra.mxu0 0
        %1787 = vmatprep.subr.bf16.mxu0 0
        %1788 = vmatpush1.bf16.msra.mxu0 0
        %1789 = vmatprep.subr.bf16.mxu0 0
        %1790 = vmatpush1.bf16.msra.mxu0 0
        %1791 = vmatprep.subr.bf16.mxu0 0
        %1792 = vmatpush1.bf16.msra.mxu0 0
        %1793 = vmatprep.subr.bf16.mxu0 0
        %1794 = vmatpush1.bf16.msra.mxu0 0
        %1795 = vmatprep.subr.bf16.mxu0 0
        %1796 = vmatpush1.bf16.msra.mxu0 0
        %1797 = vmatprep.subr.bf16.mxu0 0
        %1798 = vmatpush1.bf16.msra.mxu0 0
        %1799 = vmatprep.mubr.bf16.mxu0 0
        %1800 = vmatmul.mubr.bf16.gmra.mrb[0].mxu0 %v1753
        %v1801 = vpop.f32.mrb[0].mxu0
        %v1802 = vadd.f32 %v1750, %v1801
        %v1803 = vpop.f32.mrb[0].mxu0
        %v1804 = vadd.f32 %v1750, %v1803
        %v1805 = vpop.f32.mrb[0].mxu0
        %v1806 = vpop.f32.mrb[0].mxu0
        %1807 = vdwg.mxu0
        %1808 = vmatprep.subr.bf16.mxu0 %v1730
        %1809 = vmatpush1.bf16.msra.mxu0 %v1729
        %1810 = vmatprep.subr.bf16.mxu0 %v1734
        %1811 = vmatpush1.bf16.msra.mxu0 %v1733
        %1812 = vmatprep.subr.bf16.mxu0 %v1738
        %1813 = vmatpush1.bf16.msra.mxu0 %v1737
        %1814 = vmatprep.subr.bf16.mxu0 %v1742
        %1815 = vmatpush1.bf16.msra.mxu0 %v1741
        %1816 = vmatprep.subr.bf16.mxu0 %v1765
        %1817 = vmatpush1.bf16.msra.mxu0 %v1762
        %1818 = vmatprep.subr.bf16.mxu0 0
        %1819 = vmatpush1.bf16.msra.mxu0 0
        %1820 = vmatprep.subr.bf16.mxu0 0
        %1821 = vmatpush1.bf16.msra.mxu0 0
        %1822 = vmatprep.subr.bf16.mxu0 0
        %1823 = vmatpush1.bf16.msra.mxu0 0
        %1824 = vmatprep.subr.bf16.mxu0 0
        %1825 = vmatpush1.bf16.msra.mxu0 0
        %1826 = vmatprep.subr.bf16.mxu0 0
        %1827 = vmatpush1.bf16.msra.mxu0 0
        %1828 = vmatprep.subr.bf16.mxu0 0
        %1829 = vmatpush1.bf16.msra.mxu0 0
        %1830 = vmatprep.subr.bf16.mxu0 0
        %1831 = vmatpush1.bf16.msra.mxu0 0
        %1832 = vmatprep.subr.bf16.mxu0 0
        %1833 = vmatpush1.bf16.msra.mxu0 0
        %1834 = vmatprep.subr.bf16.mxu0 0
        %1835 = vmatpush1.bf16.msra.mxu0 0
        %1836 = vmatprep.subr.bf16.mxu0 0
        %1837 = vmatpush1.bf16.msra.mxu0 0
        %1838 = vmatprep.subr.bf16.mxu0 0
        %1839 = vmatpush1.bf16.msra.mxu0 0
        %1840 = vmatprep.mubr.bf16.mxu0 0
        %1841 = vmatmul.mubr.bf16.gmra.mrb[0].mxu0 %v1753
        %v1842 = vpop.f32.mrb[0].mxu0
        %v1843 = vadd.f32 %v1750, %v1842
        %v1844 = vpop.f32.mrb[0].mxu0
        %v1845 = vadd.f32 %v1750, %v1844
        %v1846 = vpop.f32.mrb[0].mxu0
        %v1847 = vpop.f32.mrb[0].mxu0
        %1848 = vdwg.mxu0
        %v1849 = vmax.f32 %v1802, 0.0
        %v1850 = vmax.f32 %v1804, 0.0
        %v1851 = vmax.f32 %v1843, 0.0
        %v1852 = vmax.f32 %v1845, 0.0
        %v1853 = vadd.f32 %v1483, %v1849
        %v1854 = vadd.f32 %v1484, %v1850
        %v1855 = vadd.f32 %v1485, %v1851
        %v1856 = vadd.f32 %v1486, %v1852
        %1857 = vst [vmem:[#allocation2 + $0x8] sm:$0xff] %v1853
        %1858 = vst [vmem:[#allocation2 + $0x10] sm:$0xff] %v1854
        %v1859 = vld [vmem:[#allocation2] sm:$0xff]
        %v1860 = vld [vmem:[#allocation2 + $0x8] sm:$0xff]
        %v1861 = vld [vmem:[#allocation2 + $0x10] sm:$0xff]
        %1865 = vrot.lane.b32.xlu0 %v1859, 16
        %v1866 = vpop.permute.xlu0 %1865
        %1867 = vrot.lane.b32.xlu0 %v1860, 16
        %v1868 = vpop.permute.xlu0 %1867
        %1869 = vrot.lane.b32.xlu0 %v1861, 16
        %v1870 = vpop.permute.xlu0 %1869
        %v1871 = vsel %vm271, %v1866, %v1868
        %v1872 = vsel %vm271, %v1868, %v1870
        %1875 = vrot.lane.b32.xlu0 %v1871, 1
        %v1876 = vpop.permute.xlu0 %1875
        %1877 = vrot.lane.b32.xlu0 %v1872, 1
        %v1878 = vpop.permute.xlu0 %1877
        %v1879 = vsel %vm426, %v1876, %v1878
        %v1880 = vsel %vm426, %v1878, %v1876
        %v1881 = vmul.f32 %v1880, %v261
        %v1882 = vmul.f32 %v1879, %v262
        %1883 = vst [vmem:[#allocation3] sm:$0xff] %v1881
        %1884 = vst [vmem:[#allocation3 + $0x8] sm:$0xff] %v1882
        %1885 = vst [vmem:[#allocation3 + $0x20] sm:$0xff] %v1871
        %1886 = vst [vmem:[#allocation3 + $0x28] sm:$0xff] %v1872
        %1887 = vrot.lane.b32.xlu0 %v1871, 127
        %v1888 = vpop.permute.xlu0 %1887
        %1889 = vrot.lane.b32.xlu0 %v1872, 127
        %v1890 = vpop.permute.xlu0 %1889
        %v1891 = vsel %vm439, %v1888, %v1890
        %v1892 = vsel %vm439, %v1890, %v1888
        %v1893 = vmul.f32 %v1891, %v267
        %v1894 = vmul.f32 %v1892, %v268
        %1895 = vst [vmem:[#allocation3 + $0x40] sm:$0xff] %v1893
        %1896 = vst [vmem:[#allocation3 + $0x48] sm:$0xff] %v1894
        %1897 = vrot.lane.b32.xlu0 %v1853, 1
        %v1898 = vpop.permute.xlu0 %1897
        %1899 = vrot.lane.b32.xlu0 %v1854, 1
        %v1900 = vpop.permute.xlu0 %1899
        %v1901 = vsel %vm426, %v1898, %v1900
        %v1902 = vsel %vm426, %v1900, %v1898
        %v1903 = vmul.f32 %v1902, %v261
        %v1904 = vmul.f32 %v1901, %v262
        %1905 = vst [vmem:[#allocation3 + $0x60] sm:$0xff] %v1903
        %1906 = vst [vmem:[#allocation3 + $0x68] sm:$0xff] %v1904
        %1907 = vst [vmem:[#allocation3 + $0x80] sm:$0xff] %v1853
        %1908 = vst [vmem:[#allocation3 + $0x88] sm:$0xff] %v1854
        %1909 = vrot.lane.b32.xlu0 %v1853, 127
        %v1910 = vpop.permute.xlu0 %1909
        %1911 = vrot.lane.b32.xlu0 %v1854, 127
        %v1912 = vpop.permute.xlu0 %1911
        %v1913 = vsel %vm439, %v1910, %v1912
        %v1914 = vsel %vm439, %v1912, %v1910
        %v1915 = vmul.f32 %v1913, %v267
        %v1916 = vmul.f32 %v1914, %v268
        %1917 = vst [vmem:[#allocation3 + $0xa0] sm:$0xff] %v1915
        %1918 = vst [vmem:[#allocation3 + $0xa8] sm:$0xff] %v1916
        %v1919 = vld [vmem:[#allocation2 + $0x8] sm:$0xff]
        %v1920 = vld [vmem:[#allocation2 + $0x10] sm:$0xff]
        %v1921 = vld [vmem:[#allocation2 + $0x18] sm:$0xff]
        %1925 = vrot.lane.b32.xlu0 %v1919, 112
        %v1926 = vpop.permute.xlu0 %1925
        %1927 = vrot.lane.b32.xlu0 %v1920, 112
        %v1928 = vpop.permute.xlu0 %1927
        %1929 = vrot.lane.b32.xlu0 %v1921, 112
        %v1930 = vpop.permute.xlu0 %1929
        %v1931 = vsel %vm480, %v1926, %v1928
        %v1932 = vsel %vm480, %v1928, %v1930
        %1935 = vrot.lane.b32.xlu0 %v1931, 1
        %v1936 = vpop.permute.xlu0 %1935
        %1937 = vrot.lane.b32.xlu0 %v1932, 1
        %v1938 = vpop.permute.xlu0 %1937
        %v1939 = vsel %vm426, %v1936, %v1938
        %v1940 = vsel %vm426, %v1938, %v1936
        %v1941 = vmul.f32 %v1940, %v261
        %v1942 = vmul.f32 %v1939, %v262
        %1943 = vst [vmem:[#allocation3 + $0xc0] sm:$0xff] %v1941
        %1944 = vst [vmem:[#allocation3 + $0xc8] sm:$0xff] %v1942
        %1945 = vst [vmem:[#allocation3 + $0xe0] sm:$0xff] %v1931
        %1946 = vst [vmem:[#allocation3 + $0xe8] sm:$0xff] %v1932
        %1947 = vrot.lane.b32.xlu0 %v1931, 127
        %v1948 = vpop.permute.xlu0 %1947
        %1949 = vrot.lane.b32.xlu0 %v1932, 127
        %v1950 = vpop.permute.xlu0 %1949
        %v1951 = vsel %vm439, %v1948, %v1950
        %v1952 = vsel %vm439, %v1950, %v1948
        %v1953 = vmul.f32 %v1951, %v267
        %v1954 = vmul.f32 %v1952, %v268
        %1955 = vst [vmem:[#allocation3 + $0x100] sm:$0xff] %v1953
        %1956 = vst [vmem:[#allocation3 + $0x108] sm:$0xff] %v1954
        %1957 = vst [vmem:[#allocation2 + $0x28] sm:$0xff] %v1855
        %1958 = vst [vmem:[#allocation2 + $0x30] sm:$0xff] %v1856
        %v1959 = vld [vmem:[#allocation2 + $0x20] sm:$0xff]
        %v1960 = vld [vmem:[#allocation2 + $0x28] sm:$0xff]
        %v1961 = vld [vmem:[#allocation2 + $0x30] sm:$0xff]
        %1965 = vrot.lane.b32.xlu0 %v1959, 16
        %v1966 = vpop.permute.xlu0 %1965
        %1967 = vrot.lane.b32.xlu0 %v1960, 16
        %v1968 = vpop.permute.xlu0 %1967
        %1969 = vrot.lane.b32.xlu0 %v1961, 16
        %v1970 = vpop.permute.xlu0 %1969
        %v1971 = vsel %vm271, %v1966, %v1968
        %v1972 = vsel %vm271, %v1968, %v1970
        %1975 = vrot.lane.b32.xlu0 %v1971, 1
        %v1976 = vpop.permute.xlu0 %1975
        %1977 = vrot.lane.b32.xlu0 %v1972, 1
        %v1978 = vpop.permute.xlu0 %1977
        %v1979 = vsel %vm426, %v1976, %v1978
        %v1980 = vsel %vm426, %v1978, %v1976
        %v1981 = vmul.f32 %v1980, %v261
        %v1982 = vmul.f32 %v1979, %v262
        %1983 = vst [vmem:[#allocation3 + $0x10] sm:$0xff] %v1981
        %1984 = vst [vmem:[#allocation3 + $0x18] sm:$0xff] %v1982
        %1985 = vst [vmem:[#allocation3 + $0x30] sm:$0xff] %v1971
        %1986 = vst [vmem:[#allocation3 + $0x38] sm:$0xff] %v1972
        %1987 = vrot.lane.b32.xlu0 %v1971, 127
        %v1988 = vpop.permute.xlu0 %1987
        %1989 = vrot.lane.b32.xlu0 %v1972, 127
        %v1990 = vpop.permute.xlu0 %1989
        %v1991 = vsel %vm439, %v1988, %v1990
        %v1992 = vsel %vm439, %v1990, %v1988
        %v1993 = vmul.f32 %v1991, %v267
        %v1994 = vmul.f32 %v1992, %v268
        %1995 = vst [vmem:[#allocation3 + $0x50] sm:$0xff] %v1993
        %1996 = vst [vmem:[#allocation3 + $0x58] sm:$0xff] %v1994
        %1997 = vrot.lane.b32.xlu0 %v1855, 1
        %v1998 = vpop.permute.xlu0 %1997
        %1999 = vrot.lane.b32.xlu0 %v1856, 1
        %v2000 = vpop.permute.xlu0 %1999
        %v2001 = vsel %vm426, %v1998, %v2000
        %v2002 = vsel %vm426, %v2000, %v1998
        %v2003 = vmul.f32 %v2002, %v261
        %v2004 = vmul.f32 %v2001, %v262
        %2005 = vst [vmem:[#allocation3 + $0x70] sm:$0xff] %v2003
        %2006 = vst [vmem:[#allocation3 + $0x78] sm:$0xff] %v2004
        %2007 = vst [vmem:[#allocation3 + $0x90] sm:$0xff] %v1855
        %2008 = vst [vmem:[#allocation3 + $0x98] sm:$0xff] %v1856
        %2009 = vrot.lane.b32.xlu0 %v1855, 127
        %v2010 = vpop.permute.xlu0 %2009
        %2011 = vrot.lane.b32.xlu0 %v1856, 127
        %v2012 = vpop.permute.xlu0 %2011
        %v2013 = vsel %vm439, %v2010, %v2012
        %v2014 = vsel %vm439, %v2012, %v2010
        %v2015 = vmul.f32 %v2013, %v267
        %v2016 = vmul.f32 %v2014, %v268
        %2017 = vst [vmem:[#allocation3 + $0xb0] sm:$0xff] %v2015
        %2018 = vst [vmem:[#allocation3 + $0xb8] sm:$0xff] %v2016
        %v2019 = vld [vmem:[#allocation2 + $0x28] sm:$0xff]
        %v2020 = vld [vmem:[#allocation2 + $0x30] sm:$0xff]
        %v2021 = vld [vmem:[#allocation2 + $0x38] sm:$0xff]
        %2025 = vrot.lane.b32.xlu0 %v2019, 112
        %v2026 = vpop.permute.xlu0 %2025
        %2027 = vrot.lane.b32.xlu0 %v2020, 112
        %v2028 = vpop.permute.xlu0 %2027
        %2029 = vrot.lane.b32.xlu0 %v2021, 112
        %v2030 = vpop.permute.xlu0 %2029
        %v2031 = vsel %vm480, %v2026, %v2028
        %v2032 = vsel %vm480, %v2028, %v2030
        %2035 = vrot.lane.b32.xlu0 %v2031, 1
        %v2036 = vpop.permute.xlu0 %2035
        %2037 = vrot.lane.b32.xlu0 %v2032, 1
        %v2038 = vpop.permute.xlu0 %2037
        %v2039 = vsel %vm426, %v2036, %v2038
        %v2040 = vsel %vm426, %v2038, %v2036
        %v2041 = vmul.f32 %v2040, %v261
        %v2042 = vmul.f32 %v2039, %v262
        %2043 = vst [vmem:[#allocation3 + $0xd0] sm:$0xff] %v2041
        %2044 = vst [vmem:[#allocation3 + $0xd8] sm:$0xff] %v2042
        %2045 = vst [vmem:[#allocation3 + $0xf0] sm:$0xff] %v2031
        %2046 = vst [vmem:[#allocation3 + $0xf8] sm:$0xff] %v2032
        %2047 = vrot.lane.b32.xlu0 %v2031, 127
        %v2048 = vpop.permute.xlu0 %2047
        %2049 = vrot.lane.b32.xlu0 %v2032, 127
        %v2050 = vpop.permute.xlu0 %2049
        %v2051 = vsel %vm439, %v2048, %v2050
        %v2052 = vsel %vm439, %v2050, %v2048
        %v2053 = vmul.f32 %v2051, %v267
        %v2054 = vmul.f32 %v2052, %v268
        %2055 = vst [vmem:[#allocation3 + $0x110] sm:$0xff] %v2053
        %2056 = vst [vmem:[#allocation3 + $0x118] sm:$0xff] %v2054
        %v2057 = vld [vmem:[#allocation3] sm:$0xff]
        %v2058 = vld [vmem:[#allocation3 + $0x8] sm:$0xff]
        %v2059 = vld [vmem:[#allocation3 + $0x10] sm:$0xff]
        %v2060 = vld [vmem:[#allocation3 + $0x18] sm:$0xff]
        %v2061 = vld [vmem:[#allocation3 + $0x20] sm:$0xff]
        %v2062 = vld [vmem:[#allocation3 + $0x28] sm:$0xff]
        %v2063 = vld [vmem:[#allocation3 + $0x30] sm:$0xff]
        %v2064 = vld [vmem:[#allocation3 + $0x38] sm:$0xff]
        %v2065 = vld [vmem:[#allocation3 + $0x40] sm:$0xff]
        %v2066 = vld [vmem:[#allocation3 + $0x48] sm:$0xff]
        %v2067 = vld [vmem:[#allocation3 + $0x50] sm:$0xff]
        %v2068 = vld [vmem:[#allocation3 + $0x58] sm:$0xff]
        %v2069 = vld [vmem:[#allocation3 + $0x60] sm:$0xff]
        %v2070 = vld [vmem:[#allocation3 + $0x68] sm:$0xff]
        %v2071 = vld [vmem:[#allocation3 + $0x70] sm:$0xff]
        %v2072 = vld [vmem:[#allocation3 + $0x78] sm:$0xff]
        %v2073 = vld [vmem:[#allocation3 + $0x80] sm:$0xff]
        %v2074 = vld [vmem:[#allocation3 + $0x88] sm:$0xff]
        %v2075 = vld [vmem:[#allocation3 + $0x90] sm:$0xff]
        %v2076 = vld [vmem:[#allocation3 + $0x98] sm:$0xff]
        %v2077 = vld [vmem:[#allocation3 + $0xa0] sm:$0xff]
        %v2078 = vld [vmem:[#allocation3 + $0xa8] sm:$0xff]
        %v2079 = vld [vmem:[#allocation3 + $0xb0] sm:$0xff]
        %v2080 = vld [vmem:[#allocation3 + $0xb8] sm:$0xff]
        %v2081 = vld [vmem:[#allocation3 + $0xc0] sm:$0xff]
        %v2082 = vld [vmem:[#allocation3 + $0xc8] sm:$0xff]
        %v2083 = vld [vmem:[#allocation3 + $0xd0] sm:$0xff]
        %v2084 = vld [vmem:[#allocation3 + $0xd8] sm:$0xff]
        %v2085 = vld [vmem:[#allocation3 + $0xe0] sm:$0xff]
        %v2086 = vld [vmem:[#allocation3 + $0xe8] sm:$0xff]
        %v2087 = vld [vmem:[#allocation3 + $0xf0] sm:$0xff]
        %v2088 = vld [vmem:[#allocation3 + $0xf8] sm:$0xff]
        %v2089 = vld [vmem:[#allocation3 + $0x100] sm:$0xff]
        %v2090 = vld [vmem:[#allocation3 + $0x108] sm:$0xff]
        %v2091 = vld [vmem:[#allocation3 + $0x110] sm:$0xff]
        %v2092 = vld [vmem:[#allocation3 + $0x118] sm:$0xff]
        %v2093 = vpack.c.bf16 %v2061, %v2057
        %v2094 = vpack.c.bf16 %v2062, %v2058
        %v2095 = vpack.c.bf16 %v2063, %v2059
        %v2096 = vpack.c.bf16 %v2064, %v2060
        %v2097 = vpack.c.bf16 %v2069, %v2065
        %v2098 = vpack.c.bf16 %v2070, %v2066
        %v2099 = vpack.c.bf16 %v2071, %v2067
        %v2100 = vpack.c.bf16 %v2072, %v2068
        %v2101 = vpack.c.bf16 %v2077, %v2073
        %v2102 = vpack.c.bf16 %v2078, %v2074
        %v2103 = vpack.c.bf16 %v2079, %v2075
        %v2104 = vpack.c.bf16 %v2080, %v2076
        %v2105 = vpack.c.bf16 %v2085, %v2081
        %v2106 = vpack.c.bf16 %v2086, %v2082
        %v2107 = vpack.c.bf16 %v2087, %v2083
        %v2108 = vpack.c.bf16 %v2088, %v2084
        %v2109 = vpack.c.bf16 %v2089, %v2089
        %v2110 = vpack.c.bf16 %v2090, %v2090
        %v2111 = vpack.c.bf16 %v2091, %v2091
        %v2112 = vpack.c.bf16 %v2092, %v2092
        %v2114 = vsel %vm672, %v2109, 0
        %v2117 = vsel %vm672, %v2110, 0
        %v2120 = vsel %vm672, %v2111, 0
        %v2123 = vsel %vm672, %v2112, 0
        %2125 = vmatprep.subr.bf16.mxu0 %v2094
        %2126 = vmatpush1.bf16.msra.mxu0 %v2093
        %2127 = vmatprep.subr.bf16.mxu0 %v2098
        %2128 = vmatpush1.bf16.msra.mxu0 %v2097
        %2129 = vmatprep.subr.bf16.mxu0 %v2102
        %2130 = vmatpush1.bf16.msra.mxu0 %v2101
        %2131 = vmatprep.subr.bf16.mxu0 %v2106
        %2132 = vmatpush1.bf16.msra.mxu0 %v2105
        %2133 = vmatprep.subr.bf16.mxu0 %v2117
        %2134 = vmatpush1.bf16.msra.mxu0 %v2114
        %2135 = vmatprep.subr.bf16.mxu0 0
        %2136 = vmatpush1.bf16.msra.mxu0 0
        %2137 = vmatprep.subr.bf16.mxu0 0
        %2138 = vmatpush1.bf16.msra.mxu0 0
        %2139 = vmatprep.subr.bf16.mxu0 0
        %2140 = vmatpush1.bf16.msra.mxu0 0
        %2141 = vmatprep.subr.bf16.mxu0 0
        %2142 = vmatpush1.bf16.msra.mxu0 0
        %2143 = vmatprep.subr.bf16.mxu0 0
        %2144 = vmatpush1.bf16.msra.mxu0 0
        %2145 = vmatprep.subr.bf16.mxu0 0
        %2146 = vmatpush1.bf16.msra.mxu0 0
        %2147 = vmatprep.subr.bf16.mxu0 0
        %2148 = vmatpush1.bf16.msra.mxu0 0
        %2149 = vmatprep.subr.bf16.mxu0 0
        %2150 = vmatpush1.bf16.msra.mxu0 0
        %2151 = vmatprep.subr.bf16.mxu0 0
        %2152 = vmatpush1.bf16.msra.mxu0 0
        %2153 = vmatprep.subr.bf16.mxu0 0
        %2154 = vmatpush1.bf16.msra.mxu0 0
        %2155 = vmatprep.subr.bf16.mxu0 0
        %2156 = vmatpush1.bf16.msra.mxu0 0
        %2157 = vmatprep.mubr.bf16.mxu0 0
        %2158 = vmatmul.mubr.bf16.gmra.mrb[0].mxu0 %v1753
        %v2159 = vpop.f32.mrb[0].mxu0
        %v2160 = vadd.f32 %v1750, %v2159
        %v2161 = vpop.f32.mrb[0].mxu0
        %v2162 = vadd.f32 %v1750, %v2161
        %v2163 = vpop.f32.mrb[0].mxu0
        %v2164 = vpop.f32.mrb[0].mxu0
        %2165 = vdwg.mxu0
        %2166 = vmatprep.subr.bf16.mxu0 %v2096
        %2167 = vmatpush1.bf16.msra.mxu0 %v2095
        %2168 = vmatprep.subr.bf16.mxu0 %v2100
        %2169 = vmatpush1.bf16.msra.mxu0 %v2099
        %2170 = vmatprep.subr.bf16.mxu0 %v2104
        %2171 = vmatpush1.bf16.msra.mxu0 %v2103
        %2172 = vmatprep.subr.bf16.mxu0 %v2108
        %2173 = vmatpush1.bf16.msra.mxu0 %v2107
        %2174 = vmatprep.subr.bf16.mxu0 %v2123
        %2175 = vmatpush1.bf16.msra.mxu0 %v2120
        %2176 = vmatprep.subr.bf16.mxu0 0
        %2177 = vmatpush1.bf16.msra.mxu0 0
        %2178 = vmatprep.subr.bf16.mxu0 0
        %2179 = vmatpush1.bf16.msra.mxu0 0
        %2180 = vmatprep.subr.bf16.mxu0 0
        %2181 = vmatpush1.bf16.msra.mxu0 0
        %2182 = vmatprep.subr.bf16.mxu0 0
        %2183 = vmatpush1.bf16.msra.mxu0 0
        %2184 = vmatprep.subr.bf16.mxu0 0
        %2185 = vmatpush1.bf16.msra.mxu0 0
        %2186 = vmatprep.subr.bf16.mxu0 0
        %2187 = vmatpush1.bf16.msra.mxu0 0
        %2188 = vmatprep.subr.bf16.mxu0 0
        %2189 = vmatpush1.bf16.msra.mxu0 0
        %2190 = vmatprep.subr.bf16.mxu0 0
        %2191 = vmatpush1.bf16.msra.mxu0 0
        %2192 = vmatprep.subr.bf16.mxu0 0
        %2193 = vmatpush1.bf16.msra.mxu0 0
        %2194 = vmatprep.subr.bf16.mxu0 0
        %2195 = vmatpush1.bf16.msra.mxu0 0
        %2196 = vmatprep.subr.bf16.mxu0 0
        %2197 = vmatpush1.bf16.msra.mxu0 0
        %2198 = vmatprep.mubr.bf16.mxu0 0
        %2199 = vmatmul.mubr.bf16.gmra.mrb[0].mxu0 %v1753
        %v2200 = vpop.f32.mrb[0].mxu0
        %v2201 = vadd.f32 %v1750, %v2200
        %v2202 = vpop.f32.mrb[0].mxu0
        %v2203 = vadd.f32 %v1750, %v2202
        %v2204 = vpop.f32.mrb[0].mxu0
        %v2205 = vpop.f32.mrb[0].mxu0
        %2206 = vdwg.mxu0
        %v2207 = vmax.f32 %v2160, 0.0
        %v2208 = vmax.f32 %v2162, 0.0
        %v2209 = vmax.f32 %v2201, 0.0
        %v2210 = vmax.f32 %v2203, 0.0
        %v2211 = vadd.f32 %v1483, %v2207
        %v2212 = vadd.f32 %v1484, %v2208
        %v2213 = vadd.f32 %v1485, %v2209
        %v2214 = vadd.f32 %v1486, %v2210
        %2215 = vst [vmem:[#allocation2 + $0x8] sm:$0xff] %v2211
        %2216 = vst [vmem:[#allocation2 + $0x10] sm:$0xff] %v2212
        %v2217 = vld [vmem:[#allocation2] sm:$0xff]
        %v2218 = vld [vmem:[#allocation2 + $0x8] sm:$0xff]
        %v2219 = vld [vmem:[#allocation2 + $0x10] sm:$0xff]
        %2223 = vrot.lane.b32.xlu0 %v2217, 16
        %v2224 = vpop.permute.xlu0 %2223
        %2225 = vrot.lane.b32.xlu0 %v2218, 16
        %v2226 = vpop.permute.xlu0 %2225
        %2227 = vrot.lane.b32.xlu0 %v2219, 16
        %v2228 = vpop.permute.xlu0 %2227
        %v2229 = vsel %vm271, %v2224, %v2226
        %v2230 = vsel %vm271, %v2226, %v2228
        %2233 = vrot.lane.b32.xlu0 %v2229, 1
        %v2234 = vpop.permute.xlu0 %2233
        %2235 = vrot.lane.b32.xlu0 %v2230, 1
        %v2236 = vpop.permute.xlu0 %2235
        %v2237 = vsel %vm426, %v2234, %v2236
        %v2238 = vsel %vm426, %v2236, %v2234
        %v2239 = vmul.f32 %v2238, %v261
        %v2240 = vmul.f32 %v2237, %v262
        %2241 = vst [vmem:[#allocation3] sm:$0xff] %v2239
        %2242 = vst [vmem:[#allocation3 + $0x8] sm:$0xff] %v2240
        %2243 = vst [vmem:[#allocation3 + $0x20] sm:$0xff] %v2229
        %2244 = vst [vmem:[#allocation3 + $0x28] sm:$0xff] %v2230
        %2245 = vrot.lane.b32.xlu0 %v2229, 127
        %v2246 = vpop.permute.xlu0 %2245
        %2247 = vrot.lane.b32.xlu0 %v2230, 127
        %v2248 = vpop.permute.xlu0 %2247
        %v2249 = vsel %vm439, %v2246, %v2248
        %v2250 = vsel %vm439, %v2248, %v2246
        %v2251 = vmul.f32 %v2249, %v267
        %v2252 = vmul.f32 %v2250, %v268
        %2253 = vst [vmem:[#allocation3 + $0x40] sm:$0xff] %v2251
        %2254 = vst [vmem:[#allocation3 + $0x48] sm:$0xff] %v2252
        %2255 = vrot.lane.b32.xlu0 %v2211, 1
        %v2256 = vpop.permute.xlu0 %2255
        %2257 = vrot.lane.b32.xlu0 %v2212, 1
        %v2258 = vpop.permute.xlu0 %2257
        %v2259 = vsel %vm426, %v2256, %v2258
        %v2260 = vsel %vm426, %v2258, %v2256
        %v2261 = vmul.f32 %v2260, %v261
        %v2262 = vmul.f32 %v2259, %v262
        %2263 = vst [vmem:[#allocation3 + $0x60] sm:$0xff] %v2261
        %2264 = vst [vmem:[#allocation3 + $0x68] sm:$0xff] %v2262
        %2265 = vst [vmem:[#allocation3 + $0x80] sm:$0xff] %v2211
        %2266 = vst [vmem:[#allocation3 + $0x88] sm:$0xff] %v2212
        %2267 = vrot.lane.b32.xlu0 %v2211, 127
        %v2268 = vpop.permute.xlu0 %2267
        %2269 = vrot.lane.b32.xlu0 %v2212, 127
        %v2270 = vpop.permute.xlu0 %2269
        %v2271 = vsel %vm439, %v2268, %v2270
        %v2272 = vsel %vm439, %v2270, %v2268
        %v2273 = vmul.f32 %v2271, %v267
        %v2274 = vmul.f32 %v2272, %v268
        %2275 = vst [vmem:[#allocation3 + $0xa0] sm:$0xff] %v2273
        %2276 = vst [vmem:[#allocation3 + $0xa8] sm:$0xff] %v2274
        %v2277 = vld [vmem:[#allocation2 + $0x8] sm:$0xff]
        %v2278 = vld [vmem:[#allocation2 + $0x10] sm:$0xff]
        %v2279 = vld [vmem:[#allocation2 + $0x18] sm:$0xff]
        %2283 = vrot.lane.b32.xlu0 %v2277, 112
        %v2284 = vpop.permute.xlu0 %2283
        %2285 = vrot.lane.b32.xlu0 %v2278, 112
        %v2286 = vpop.permute.xlu0 %2285
        %2287 = vrot.lane.b32.xlu0 %v2279, 112
        %v2288 = vpop.permute.xlu0 %2287
        %v2289 = vsel %vm480, %v2284, %v2286
        %v2290 = vsel %vm480, %v2286, %v2288
        %2293 = vrot.lane.b32.xlu0 %v2289, 1
        %v2294 = vpop.permute.xlu0 %2293
        %2295 = vrot.lane.b32.xlu0 %v2290, 1
        %v2296 = vpop.permute.xlu0 %2295
        %v2297 = vsel %vm426, %v2294, %v2296
        %v2298 = vsel %vm426, %v2296, %v2294
        %v2299 = vmul.f32 %v2298, %v261
        %v2300 = vmul.f32 %v2297, %v262
        %2301 = vst [vmem:[#allocation3 + $0xc0] sm:$0xff] %v2299
        %2302 = vst [vmem:[#allocation3 + $0xc8] sm:$0xff] %v2300
        %2303 = vst [vmem:[#allocation3 + $0xe0] sm:$0xff] %v2289
        %2304 = vst [vmem:[#allocation3 + $0xe8] sm:$0xff] %v2290
        %2305 = vrot.lane.b32.xlu0 %v2289, 127
        %v2306 = vpop.permute.xlu0 %2305
        %2307 = vrot.lane.b32.xlu0 %v2290, 127
        %v2308 = vpop.permute.xlu0 %2307
        %v2309 = vsel %vm439, %v2306, %v2308
        %v2310 = vsel %vm439, %v2308, %v2306
        %v2311 = vmul.f32 %v2309, %v267
        %v2312 = vmul.f32 %v2310, %v268
        %2313 = vst [vmem:[#allocation3 + $0x100] sm:$0xff] %v2311
        %2314 = vst [vmem:[#allocation3 + $0x108] sm:$0xff] %v2312
        %2315 = vst [vmem:[#allocation2 + $0x28] sm:$0xff] %v2213
        %2316 = vst [vmem:[#allocation2 + $0x30] sm:$0xff] %v2214
        %v2317 = vld [vmem:[#allocation2 + $0x20] sm:$0xff]
        %v2318 = vld [vmem:[#allocation2 + $0x28] sm:$0xff]
        %v2319 = vld [vmem:[#allocation2 + $0x30] sm:$0xff]
        %2323 = vrot.lane.b32.xlu0 %v2317, 16
        %v2324 = vpop.permute.xlu0 %2323
        %2325 = vrot.lane.b32.xlu0 %v2318, 16
        %v2326 = vpop.permute.xlu0 %2325
        %2327 = vrot.lane.b32.xlu0 %v2319, 16
        %v2328 = vpop.permute.xlu0 %2327
        %v2329 = vsel %vm271, %v2324, %v2326
        %v2330 = vsel %vm271, %v2326, %v2328
        %2333 = vrot.lane.b32.xlu0 %v2329, 1
        %v2334 = vpop.permute.xlu0 %2333
        %2335 = vrot.lane.b32.xlu0 %v2330, 1
        %v2336 = vpop.permute.xlu0 %2335
        %v2337 = vsel %vm426, %v2334, %v2336
        %v2338 = vsel %vm426, %v2336, %v2334
        %v2339 = vmul.f32 %v2338, %v261
        %v2340 = vmul.f32 %v2337, %v262
        %2341 = vst [vmem:[#allocation3 + $0x10] sm:$0xff] %v2339
        %2342 = vst [vmem:[#allocation3 + $0x18] sm:$0xff] %v2340
        %2343 = vst [vmem:[#allocation3 + $0x30] sm:$0xff] %v2329
        %2344 = vst [vmem:[#allocation3 + $0x38] sm:$0xff] %v2330
        %2345 = vrot.lane.b32.xlu0 %v2329, 127
        %v2346 = vpop.permute.xlu0 %2345
        %2347 = vrot.lane.b32.xlu0 %v2330, 127
        %v2348 = vpop.permute.xlu0 %2347
        %v2349 = vsel %vm439, %v2346, %v2348
        %v2350 = vsel %vm439, %v2348, %v2346
        %v2351 = vmul.f32 %v2349, %v267
        %v2352 = vmul.f32 %v2350, %v268
        %2353 = vst [vmem:[#allocation3 + $0x50] sm:$0xff] %v2351
        %2354 = vst [vmem:[#allocation3 + $0x58] sm:$0xff] %v2352
        %2355 = vrot.lane.b32.xlu0 %v2213, 1
        %v2356 = vpop.permute.xlu0 %2355
        %2357 = vrot.lane.b32.xlu0 %v2214, 1
        %v2358 = vpop.permute.xlu0 %2357
        %v2359 = vsel %vm426, %v2356, %v2358
        %v2360 = vsel %vm426, %v2358, %v2356
        %v2361 = vmul.f32 %v2360, %v261
        %v2362 = vmul.f32 %v2359, %v262
        %2363 = vst [vmem:[#allocation3 + $0x70] sm:$0xff] %v2361
        %2364 = vst [vmem:[#allocation3 + $0x78] sm:$0xff] %v2362
        %2365 = vst [vmem:[#allocation3 + $0x90] sm:$0xff] %v2213
        %2366 = vst [vmem:[#allocation3 + $0x98] sm:$0xff] %v2214
        %2367 = vrot.lane.b32.xlu0 %v2213, 127
        %v2368 = vpop.permute.xlu0 %2367
        %2369 = vrot.lane.b32.xlu0 %v2214, 127
        %v2370 = vpop.permute.xlu0 %2369
        %v2371 = vsel %vm439, %v2368, %v2370
        %v2372 = vsel %vm439, %v2370, %v2368
        %v2373 = vmul.f32 %v2371, %v267
        %v2374 = vmul.f32 %v2372, %v268
        %2375 = vst [vmem:[#allocation3 + $0xb0] sm:$0xff] %v2373
        %2376 = vst [vmem:[#allocation3 + $0xb8] sm:$0xff] %v2374
        %v2377 = vld [vmem:[#allocation2 + $0x28] sm:$0xff]
        %v2378 = vld [vmem:[#allocation2 + $0x30] sm:$0xff]
        %v2379 = vld [vmem:[#allocation2 + $0x38] sm:$0xff]
        %2383 = vrot.lane.b32.xlu0 %v2377, 112
        %v2384 = vpop.permute.xlu0 %2383
        %2385 = vrot.lane.b32.xlu0 %v2378, 112
        %v2386 = vpop.permute.xlu0 %2385
        %2387 = vrot.lane.b32.xlu0 %v2379, 112
        %v2388 = vpop.permute.xlu0 %2387
        %v2389 = vsel %vm480, %v2384, %v2386
        %v2390 = vsel %vm480, %v2386, %v2388
        %2393 = vrot.lane.b32.xlu0 %v2389, 1
        %v2394 = vpop.permute.xlu0 %2393
        %2395 = vrot.lane.b32.xlu0 %v2390, 1
        %v2396 = vpop.permute.xlu0 %2395
        %v2397 = vsel %vm426, %v2394, %v2396
        %v2398 = vsel %vm426, %v2396, %v2394
        %v2399 = vmul.f32 %v2398, %v261
        %v2400 = vmul.f32 %v2397, %v262
        %2401 = vst [vmem:[#allocation3 + $0xd0] sm:$0xff] %v2399
        %2402 = vst [vmem:[#allocation3 + $0xd8] sm:$0xff] %v2400
        %2403 = vst [vmem:[#allocation3 + $0xf0] sm:$0xff] %v2389
        %2404 = vst [vmem:[#allocation3 + $0xf8] sm:$0xff] %v2390
        %2405 = vrot.lane.b32.xlu0 %v2389, 127
        %v2406 = vpop.permute.xlu0 %2405
        %2407 = vrot.lane.b32.xlu0 %v2390, 127
        %v2408 = vpop.permute.xlu0 %2407
        %v2409 = vsel %vm439, %v2406, %v2408
        %v2410 = vsel %vm439, %v2408, %v2406
        %v2411 = vmul.f32 %v2409, %v267
        %v2412 = vmul.f32 %v2410, %v268
        %2413 = vst [vmem:[#allocation3 + $0x110] sm:$0xff] %v2411
        %2414 = vst [vmem:[#allocation3 + $0x118] sm:$0xff] %v2412
        %v2415 = vld [vmem:[#allocation3] sm:$0xff]
        %v2416 = vld [vmem:[#allocation3 + $0x8] sm:$0xff]
        %v2417 = vld [vmem:[#allocation3 + $0x10] sm:$0xff]
        %v2418 = vld [vmem:[#allocation3 + $0x18] sm:$0xff]
        %v2419 = vld [vmem:[#allocation3 + $0x20] sm:$0xff]
        %v2420 = vld [vmem:[#allocation3 + $0x28] sm:$0xff]
        %v2421 = vld [vmem:[#allocation3 + $0x30] sm:$0xff]
        %v2422 = vld [vmem:[#allocation3 + $0x38] sm:$0xff]
        %v2423 = vld [vmem:[#allocation3 + $0x40] sm:$0xff]
        %v2424 = vld [vmem:[#allocation3 + $0x48] sm:$0xff]
        %v2425 = vld [vmem:[#allocation3 + $0x50] sm:$0xff]
        %v2426 = vld [vmem:[#allocation3 + $0x58] sm:$0xff]
        %v2427 = vld [vmem:[#allocation3 + $0x60] sm:$0xff]
        %v2428 = vld [vmem:[#allocation3 + $0x68] sm:$0xff]
        %v2429 = vld [vmem:[#allocation3 + $0x70] sm:$0xff]
        %v2430 = vld [vmem:[#allocation3 + $0x78] sm:$0xff]
        %v2431 = vld [vmem:[#allocation3 + $0x80] sm:$0xff]
        %v2432 = vld [vmem:[#allocation3 + $0x88] sm:$0xff]
        %v2433 = vld [vmem:[#allocation3 + $0x90] sm:$0xff]
        %v2434 = vld [vmem:[#allocation3 + $0x98] sm:$0xff]
        %v2435 = vld [vmem:[#allocation3 + $0xa0] sm:$0xff]
        %v2436 = vld [vmem:[#allocation3 + $0xa8] sm:$0xff]
        %v2437 = vld [vmem:[#allocation3 + $0xb0] sm:$0xff]
        %v2438 = vld [vmem:[#allocation3 + $0xb8] sm:$0xff]
        %v2439 = vld [vmem:[#allocation3 + $0xc0] sm:$0xff]
        %v2440 = vld [vmem:[#allocation3 + $0xc8] sm:$0xff]
        %v2441 = vld [vmem:[#allocation3 + $0xd0] sm:$0xff]
        %v2442 = vld [vmem:[#allocation3 + $0xd8] sm:$0xff]
        %v2443 = vld [vmem:[#allocation3 + $0xe0] sm:$0xff]
        %v2444 = vld [vmem:[#allocation3 + $0xe8] sm:$0xff]
        %v2445 = vld [vmem:[#allocation3 + $0xf0] sm:$0xff]
        %v2446 = vld [vmem:[#allocation3 + $0xf8] sm:$0xff]
        %v2447 = vld [vmem:[#allocation3 + $0x100] sm:$0xff]
        %v2448 = vld [vmem:[#allocation3 + $0x108] sm:$0xff]
        %v2449 = vld [vmem:[#allocation3 + $0x110] sm:$0xff]
        %v2450 = vld [vmem:[#allocation3 + $0x118] sm:$0xff]
        %v2451 = vpack.c.bf16 %v2419, %v2415
        %v2452 = vpack.c.bf16 %v2420, %v2416
        %v2453 = vpack.c.bf16 %v2421, %v2417
        %v2454 = vpack.c.bf16 %v2422, %v2418
        %v2455 = vpack.c.bf16 %v2427, %v2423
        %v2456 = vpack.c.bf16 %v2428, %v2424
        %v2457 = vpack.c.bf16 %v2429, %v2425
        %v2458 = vpack.c.bf16 %v2430, %v2426
        %v2459 = vpack.c.bf16 %v2435, %v2431
        %v2460 = vpack.c.bf16 %v2436, %v2432
        %v2461 = vpack.c.bf16 %v2437, %v2433
        %v2462 = vpack.c.bf16 %v2438, %v2434
        %v2463 = vpack.c.bf16 %v2443, %v2439
        %v2464 = vpack.c.bf16 %v2444, %v2440
        %v2465 = vpack.c.bf16 %v2445, %v2441
        %v2466 = vpack.c.bf16 %v2446, %v2442
        %v2467 = vpack.c.bf16 %v2447, %v2447
        %v2468 = vpack.c.bf16 %v2448, %v2448
        %v2469 = vpack.c.bf16 %v2449, %v2449
        %v2470 = vpack.c.bf16 %v2450, %v2450
        %v2472 = vsel %vm672, %v2467, 0
        %v2475 = vsel %vm672, %v2468, 0
        %v2478 = vsel %vm672, %v2469, 0
        %v2481 = vsel %vm672, %v2470, 0
        %2483 = vmatprep.subr.bf16.mxu0 %v2452
        %2484 = vmatpush1.bf16.msra.mxu0 %v2451
        %2485 = vmatprep.subr.bf16.mxu0 %v2456
        %2486 = vmatpush1.bf16.msra.mxu0 %v2455
        %2487 = vmatprep.subr.bf16.mxu0 %v2460
        %2488 = vmatpush1.bf16.msra.mxu0 %v2459
        %2489 = vmatprep.subr.bf16.mxu0 %v2464
        %2490 = vmatpush1.bf16.msra.mxu0 %v2463
        %2491 = vmatprep.subr.bf16.mxu0 %v2475
        %2492 = vmatpush1.bf16.msra.mxu0 %v2472
        %2493 = vmatprep.subr.bf16.mxu0 0
        %2494 = vmatpush1.bf16.msra.mxu0 0
        %2495 = vmatprep.subr.bf16.mxu0 0
        %2496 = vmatpush1.bf16.msra.mxu0 0
        %2497 = vmatprep.subr.bf16.mxu0 0
        %2498 = vmatpush1.bf16.msra.mxu0 0
        %2499 = vmatprep.subr.bf16.mxu0 0
        %2500 = vmatpush1.bf16.msra.mxu0 0
        %2501 = vmatprep.subr.bf16.mxu0 0
        %2502 = vmatpush1.bf16.msra.mxu0 0
        %2503 = vmatprep.subr.bf16.mxu0 0
        %2504 = vmatpush1.bf16.msra.mxu0 0
        %2505 = vmatprep.subr.bf16.mxu0 0
        %2506 = vmatpush1.bf16.msra.mxu0 0
        %2507 = vmatprep.subr.bf16.mxu0 0
        %2508 = vmatpush1.bf16.msra.mxu0 0
        %2509 = vmatprep.subr.bf16.mxu0 0
        %2510 = vmatpush1.bf16.msra.mxu0 0
        %2511 = vmatprep.subr.bf16.mxu0 0
        %2512 = vmatpush1.bf16.msra.mxu0 0
        %2513 = vmatprep.subr.bf16.mxu0 0
        %2514 = vmatpush1.bf16.msra.mxu0 0
        %2515 = vmatprep.mubr.bf16.mxu0 0
        %2516 = vmatmul.mubr.bf16.gmra.mrb[0].mxu0 %v1753
        %v2517 = vpop.f32.mrb[0].mxu0
        %v2518 = vadd.f32 %v1750, %v2517
        %v2519 = vpop.f32.mrb[0].mxu0
        %v2520 = vadd.f32 %v1750, %v2519
        %v2521 = vpop.f32.mrb[0].mxu0
        %v2522 = vpop.f32.mrb[0].mxu0
        %2523 = vdwg.mxu0
        %2524 = vmatprep.subr.bf16.mxu0 %v2454
        %2525 = vmatpush1.bf16.msra.mxu0 %v2453
        %2526 = vmatprep.subr.bf16.mxu0 %v2458
        %2527 = vmatpush1.bf16.msra.mxu0 %v2457
        %2528 = vmatprep.subr.bf16.mxu0 %v2462
        %2529 = vmatpush1.bf16.msra.mxu0 %v2461
        %2530 = vmatprep.subr.bf16.mxu0 %v2466
        %2531 = vmatpush1.bf16.msra.mxu0 %v2465
        %2532 = vmatprep.subr.bf16.mxu0 %v2481
        %2533 = vmatpush1.bf16.msra.mxu0 %v2478
        %2534 = vmatprep.subr.bf16.mxu0 0
        %2535 = vmatpush1.bf16.msra.mxu0 0
        %2536 = vmatprep.subr.bf16.mxu0 0
        %2537 = vmatpush1.bf16.msra.mxu0 0
        %2538 = vmatprep.subr.bf16.mxu0 0
        %2539 = vmatpush1.bf16.msra.mxu0 0
        %2540 = vmatprep.subr.bf16.mxu0 0
        %2541 = vmatpush1.bf16.msra.mxu0 0
        %2542 = vmatprep.subr.bf16.mxu0 0
        %2543 = vmatpush1.bf16.msra.mxu0 0
        %2544 = vmatprep.subr.bf16.mxu0 0
        %2545 = vmatpush1.bf16.msra.mxu0 0
        %2546 = vmatprep.subr.bf16.mxu0 0
        %2547 = vmatpush1.bf16.msra.mxu0 0
        %2548 = vmatprep.subr.bf16.mxu0 0
        %2549 = vmatpush1.bf16.msra.mxu0 0
        %2550 = vmatprep.subr.bf16.mxu0 0
        %2551 = vmatpush1.bf16.msra.mxu0 0
        %2552 = vmatprep.subr.bf16.mxu0 0
        %2553 = vmatpush1.bf16.msra.mxu0 0
        %2554 = vmatprep.subr.bf16.mxu0 0
        %2555 = vmatpush1.bf16.msra.mxu0 0
        %2556 = vmatprep.mubr.bf16.mxu0 0
        %2557 = vmatmul.mubr.bf16.gmra.mrb[0].mxu0 %v1753
        %v2558 = vpop.f32.mrb[0].mxu0
        %v2559 = vadd.f32 %v1750, %v2558
        %v2560 = vpop.f32.mrb[0].mxu0
        %v2561 = vadd.f32 %v1750, %v2560
        %v2562 = vpop.f32.mrb[0].mxu0
        %v2563 = vpop.f32.mrb[0].mxu0
        %2564 = vdwg.mxu0
        %v2565 = vmax.f32 %v2518, 0.0
        %v2566 = vmax.f32 %v2520, 0.0
        %v2567 = vmax.f32 %v2559, 0.0
        %v2568 = vmax.f32 %v2561, 0.0
        %v2569 = vadd.f32 %v355, %v2565
        %v2570 = vadd.f32 %v357, %v2566
        %v2571 = vadd.f32 %v396, %v2567
        %v2572 = vadd.f32 %v398, %v2568
        %2573 = vst [vmem:[%s220] sm:$0xff] %v2569
        %2574 = vst [vmem:[%s220 + $0x8] sm:$0xff] %v2570
        %s2575 = scalar_lea.vmem %s220, 16 [#allocation4]
        %2576 = vst [vmem:[%s2575] sm:$0xff] %v2571
        %2577 = vst [vmem:[%s2575 + $0x8] sm:$0xff] %v2572
        %s2578 = sand.u32 %s137, 1
        %s2579 = scalar_lea.sflag [#allocation5], %s2578
        %s2580 = sand.u32 %s137, 1
        %s2581 = smul.addr %s2580, 32
        %s2582 = scalar_lea.vmem [#allocation4], %s2581
        // Predicated region
        $region41: #{tpu_custom_call.1} parent=39 // pred_check
          %p2583 = pneg %p147
        $region42: #{tpu_custom_call.1} parent=39 // pred_check_branch
          %2585 = sbr.rel (%p2583) target = $region44
        $region43: #{tpu_custom_call.1} parent=39 // pred_region
          %s2586 = smul.u32 2, %s19
          %s2588 = ssub.s32 512, 512
          %2589 = vsyncadd %s2579, %s2588
          %s2590 = smul.addr %s2586, 2
          %s2591 = smul.addr %s2590, 128
          %s2592 = scalar_lea.hbm %s5, %s2591
          %s2593 = sshll.u32 %s2582, 4
          %s2594 = int_to_ptr.vmem [resolvable:$true] %s2593
          %2599 = dma.vmem_to_hbm [thread:$0]  %s2594, 512, %s2592, %s2579, 256, 256, 16
        $region44: #{tpu_custom_call.1} parent=39 // pred_fallthru
          _
      $region40: #{tpu_custom_call.1} parent=5 // pred_fallthru
        _
      %p2600 = scmp.le.s32.totalorder 2, %s14
      // Predicated region
      $region45: #{tpu_custom_call.1} parent=5 // pred_check
        %p2601 = pneg %p2600
      $region46: #{tpu_custom_call.1} parent=5 // pred_check_branch
        %2603 = sbr.rel (%p2601) target = $region48
      $region47: #{tpu_custom_call.1} parent=5 // pred_region
        %s2604 = ssub.s32 %s14, 2
        // Predicated region
        $region49: #{tpu_custom_call.1} parent=47 // pred_check
          %p2605 = pneg %p153
        $region50: #{tpu_custom_call.1} parent=47 // pred_check_branch
          %2607 = sbr.rel (%p2605) target = $region52
        $region51: #{tpu_custom_call.1} parent=47 // pred_region
          %s2608 = sand.u32 %s138, 1
          %s2609 = scalar_lea.sflag [#allocation5], %s2608
          %s2610 = sand.u32 %s138, 1
          %s2611 = smul.addr %s2610, 32
          %s2612 = scalar_lea.vmem [#allocation4], %s2611
          %2613 = dma.done %s2609, 512
        $region52: #{tpu_custom_call.1} parent=47 // pred_fallthru
          _
      $region48: #{tpu_custom_call.1} parent=5 // pred_fallthru
        _
    $region6: #{tpu_custom_call.1} parent=1 // loop_footer
      %s18 = sadd.s32 1, %s14
    $region7: #{tpu_custom_call.1} parent=1 // loop_footer_branch
      %13 = sbr.rel target = $region3
    $region8: #{tpu_custom_call.1} parent=1 // loop_exit
      _
    %2614 = vsyncpa [#allocation5], 1
    %s2615 = scalar_lea.sflag [#allocation5], 1
    %2616 = vsyncpa %s2615, 1

</llo_original>
